<compile_context>
chip_gen: v5e
topology: v5e:2x2
jax: 0.10.0
libtpu: 0.0.40
codegen_flags: <defaults>
</compile_context>

<pallas_src>
import functools
import math

import jax
import jax.numpy as jnp
from jax import lax
from jax.experimental import pallas as pl
from jax.experimental.pallas import tpu as pltpu

_LANE = 128
_SUB = 8


def _round_up(x, m):
    return (x + m - 1) // m * m


def _apply_act(y, act):
    if act == "leaky_relu":
        return jnp.where(y >= 0, y, 0.2 * y)
    if act == "relu":
        return jnp.maximum(y, 0.0)
    if act == "sigmoid":
        return jax.nn.sigmoid(y)
    return y


def _l2_normalize(x, axis=-1, eps=1e-12):
    n = jnp.sqrt(jnp.sum(x * x, axis=axis, keepdims=True))
    return x / jnp.maximum(n, eps)


# ----------------------------------------------------------------------------
# Generic tiled matmul kernel (all 1x1 / im2col'd k3 convs route through this)
# ----------------------------------------------------------------------------
def _linear_kernel(x_ref, w_ref, b_ref, o_ref, acc_ref, *, act, nk):
    k = pl.program_id(2)

    @pl.when(k == 0)
    def _():
        acc_ref[...] = jnp.zeros_like(acc_ref)

    acc_ref[...] += jnp.dot(x_ref[...], w_ref[...],
                            preferred_element_type=jnp.float32)

    @pl.when(k == nk - 1)
    def _():
        y = acc_ref[...] + b_ref[...]
        o_ref[...] = _apply_act(y, act).astype(o_ref.dtype)


def linear_act(x, w, b, act="none", tm_max=256, tk_max=512, tn_max=512):
    """x: (M, K) f32, w: (K, Nout) f32, b: (Nout,) f32 -> (M, Nout) f32.

    bf16 operands / f32 accumulation; M, K, Nout padded so stores are
    lane-dense and blocks satisfy the (8, 128) constraint.
    """
    M, K = x.shape
    Nout = w.shape[1]
    tm = min(_round_up(M, _SUB), tm_max)
    tk = min(_round_up(K, _LANE), tk_max)
    tn = min(_round_up(Nout, _LANE), tn_max)
    Mp, Kp, Np = _round_up(M, tm), _round_up(K, tk), _round_up(Nout, tn)

    xp = jnp.pad(x, ((0, Mp - M), (0, Kp - K))).astype(jnp.bfloat16)
    wp = jnp.pad(w, ((0, Kp - K), (0, Np - Nout))).astype(jnp.bfloat16)
    bp = jnp.pad(b, (0, Np - Nout)).reshape(1, Np).astype(jnp.float32)
    nk = Kp // tk

    out = pl.pallas_call(
        functools.partial(_linear_kernel, act=act, nk=nk),
        out_shape=jax.ShapeDtypeStruct((Mp, Np), jnp.float32),
        grid=(Mp // tm, Np // tn, nk),
        in_specs=[pl.BlockSpec((tm, tk), lambda i, j, k: (i, k)),
                  pl.BlockSpec((tk, tn), lambda i, j, k: (k, j)),
                  pl.BlockSpec((1, tn), lambda i, j, k: (0, j))],
        out_specs=pl.BlockSpec((tm, tn), lambda i, j, k: (i, j)),
        scratch_shapes=[pltpu.VMEM((tm, tn), jnp.float32)],
        compiler_params=pltpu.CompilerParams(
            dimension_semantics=("parallel", "parallel", "arbitrary")),
    )(xp, wp, bp)
    return out[:M, :Nout]


def linear3(x, w, b, act="none"):
    """x: (..., K) time-major; folds all leading dims into the matmul M dim."""
    lead = x.shape[:-1]
    y = linear_act(x.reshape(-1, x.shape[-1]), w, b, act=act)
    return y.reshape(*lead, y.shape[-1])


def conv1d_k3_tm(x_tm, w_im2col, b, act="none"):
    """Conv1d k=3 pad=1 on time-major (B, N, Cin) via im2col + one matmul."""
    B, N, Cin = x_tm.shape
    xp = jnp.pad(x_tm, ((0, 0), (1, 1), (0, 0)))
    slab = jnp.concatenate([xp[:, 0:N], xp[:, 1:N + 1], xp[:, 2:N + 2]],
                           axis=-1)                       # (B, N, 3*Cin)
    return linear3(slab, w_im2col, b, act=act)


# ----------------------------------------------------------------------------
# Intra-video temporal attention (cosine sim + softmax + residual + ReLU)
# ----------------------------------------------------------------------------
def _intra_attn_kernel(k_ref, v_ref, o_ref, *, relu):
    # key: (1, N, Ck) time-major, value: (1, N, Cv) time-major
    k = k_ref[0].astype(jnp.float32)
    nrm = jnp.sqrt(jnp.sum(k * k, axis=-1, keepdims=True))
    kn = (k / jnp.maximum(nrm, 1e-12)).astype(jnp.bfloat16)
    # s is symmetric; torch's softmax over dim=1 of (B,N,N) followed by
    # bmm(value, w) is, in time-major form, softmax(s, -1) @ value.
    s = lax.dot_general(kn, kn, (((1,), (1,)), ((), ())),
                        preferred_element_type=jnp.float32)          # (N, N)
    s = s - jnp.max(s, axis=-1, keepdims=True)
    e = jnp.exp(s)
    a = e * pl.reciprocal(jnp.sum(e, axis=-1, keepdims=True), approx=True)
    v = v_ref[0]
    out = jnp.dot(a.astype(jnp.bfloat16), v.astype(jnp.bfloat16),
                  preferred_element_type=jnp.float32) + v.astype(jnp.float32)
    if relu:
        out = jnp.maximum(out, 0.0)
    o_ref[0] = out.astype(o_ref.dtype)


def intra_attention(key_tm, value_tm, relu=True):
    B, N, Ck = key_tm.shape
    Cv = value_tm.shape[-1]
    return pl.pallas_call(
        functools.partial(_intra_attn_kernel, relu=relu),
        out_shape=jax.ShapeDtypeStruct((B, N, Cv), jnp.float32),
        grid=(B,),
        in_specs=[pl.BlockSpec((1, N, Ck), lambda b: (b, 0, 0)),
                  pl.BlockSpec((1, N, Cv), lambda b: (b, 0, 0))],
        out_specs=pl.BlockSpec((1, N, Cv), lambda b: (b, 0, 0)),
        compiler_params=pltpu.CompilerParams(
            dimension_semantics=("parallel",)),
    )(key_tm, value_tm)


# ----------------------------------------------------------------------------
# Fused inter-class attention + class-wise softmax combine (online softmax
# over the class grid axis; never materializes the (B, A, C, N) relation)
# ----------------------------------------------------------------------------
def _inter_fused_kernel(vkn_ref, ekn_ref, evaug_ref, o_ref,
                        m_sc, l_sc, acc_sc, *, n_cls, c):
    a_idx = pl.program_id(1)

    @pl.when(a_idx == 0)
    def _():
        m_sc[...] = jnp.full_like(m_sc, -jnp.inf)
        l_sc[...] = jnp.zeros_like(l_sc)
        acc_sc[...] = jnp.zeros_like(acc_sc)

    vk = vkn_ref[0]                                        # (N, Ck) bf16, normalized
    ek = ekn_ref[0]                                        # (P, Ck) bf16, normalized
    s = lax.dot_general(vk, ek, (((1,), (1,)), ((), ())),
                        preferred_element_type=jnp.float32)  # (N, P) cosine sim
    s = s - jnp.max(s, axis=-1, keepdims=True)
    e = jnp.exp(s)
    w = e * pl.reciprocal(jnp.sum(e, axis=-1, keepdims=True), approx=True)
    # evaug = [exem_value | exem_value @ atn_weight]  -> one matmul gives both
    waug = jnp.dot(w.astype(jnp.bfloat16), evaug_ref[0],
                   preferred_element_type=jnp.float32)     # (N, C+1)
    rel = waug[:, :c]                                      # (N, C) relation feat
    t = waug[:, c:c + 1]                                   # (N, 1) class logit

    m_new = jnp.maximum(m_sc[...], t)
    alpha = jnp.exp(m_sc[...] - m_new)
    p = jnp.exp(t - m_new)
    l_sc[...] = alpha * l_sc[...] + p
    acc_sc[...] = alpha * acc_sc[...] + p * rel
    m_sc[...] = m_new

    @pl.when(a_idx == n_cls - 1)
    def _():
        o_ref[0] = (acc_sc[...] *
                    pl.reciprocal(l_sc[...], approx=True)).astype(o_ref.dtype)


def inter_fused_attention(vkn, ekn, ev_aug, c):
    B, N, Ck = vkn.shape
    A, P, _ = ekn.shape
    return pl.pallas_call(
        functools.partial(_inter_fused_kernel, n_cls=A, c=c),
        out_shape=jax.ShapeDtypeStruct((B, N, c), jnp.float32),
        grid=(B, A),
        in_specs=[pl.BlockSpec((1, N, Ck), lambda b, a: (b, 0, 0)),
                  pl.BlockSpec((1, P, Ck), lambda b, a: (a, 0, 0)),
                  pl.BlockSpec((1, P, c + 1), lambda b, a: (a, 0, 0))],
        out_specs=pl.BlockSpec((1, N, c), lambda b, a: (b, 0, 0)),
        scratch_shapes=[pltpu.VMEM((N, 1), jnp.float32),
                        pltpu.VMEM((N, 1), jnp.float32),
                        pltpu.VMEM((N, c), jnp.float32)],
        compiler_params=pltpu.CompilerParams(
            dimension_semantics=("parallel", "arbitrary")),
    )(vkn, ekn, ev_aug)


# ----------------------------------------------------------------------------
# AvgPool1d(k, stride=1, pad=k//2, count_include_pad=True) along time axis,
# applied once to all concatenated channels (k-tap shifted add, O(N*k)).
# ----------------------------------------------------------------------------
def _pool_kernel(x_ref, o_ref, *, n, k):
    xp = x_ref[0]                                          # (n + k - 1, C)
    acc = xp[0:n, :].astype(jnp.float32)
    for d in range(1, k):
        acc = acc + xp[d:d + n, :].astype(jnp.float32)
    o_ref[0] = (acc * (1.0 / k)).astype(o_ref.dtype)


def avg_pool_time(x_tm, k):
    if k <= 1:
        return x_tm
    B, N, C = x_tm.shape
    pad = k // 2
    xp = jnp.pad(x_tm, ((0, 0), (pad, pad), (0, 0)))
    Npad = N + 2 * pad
    return pl.pallas_call(
        functools.partial(_pool_kernel, n=N, k=k),
        out_shape=jax.ShapeDtypeStruct((B, N, C), x_tm.dtype),
        grid=(B,),
        in_specs=[pl.BlockSpec((1, Npad, C), lambda b: (b, 0, 0))],
        out_specs=pl.BlockSpec((1, N, C), lambda b: (b, 0, 0)),
        compiler_params=pltpu.CompilerParams(
            dimension_semantics=("parallel",)),
    )(xp)


# ----------------------------------------------------------------------------
# Model blocks (time-major (B, N, C) everywhere)
# ----------------------------------------------------------------------------
def awm(x_half, p):
    # TODO(synk): external AWM module (args['opt'].AWM) replaced by a fused
    # conv + sigmoid surrogate; second AWM input is unused by the surrogate.
    y = linear3(x_half, p["w"], p["b"])                    # (..., ch+1)
    feat = jnp.where(y[..., :-1] >= 0, y[..., :-1], 0.2 * y[..., :-1])
    atn = jax.nn.sigmoid(y[..., -1:])
    return atn, feat


def classifier_head(x_tm, p):
    # Dropout -> Conv1d(k=3) -> LeakyReLU(0.2) -> Dropout -> Conv1d(k=1)
    h = conv1d_k3_tm(x_tm, p["w1"], p["b1"], act="leaky_relu")
    return linear3(h, p["w2"], p["b2"])


def build_exemplars(all_video_feats, params, ncls1):
    """Exemplar construction; top-k/gather glue stays in plain JAX."""
    # TODO(synk): dataset-driven exemplar sampling replaced with synthetic feats.
    NC, P, S, Cf = all_video_feats.shape
    ch = Cf // 2
    flat = all_video_feats.reshape(NC * P, S, Cf)          # time-major
    v_atn, vfeat = awm(flat[..., :ch], params["vattn"])
    f_atn, ffeat = awm(flat[..., ch:], params["fattn"])
    attn = (v_atn + f_atn) / 2
    nf = jnp.concatenate([vfeat, ffeat], axis=-1)
    nf = linear3(nf, params["fusion_w"], params["fusion_b"], act="leaky_relu")
    cls = classifier_head(nf, params["classifier"])        # (NC*P, S, ncls1)

    xmin = jnp.min(cls, axis=-1, keepdims=True)
    attned = attn * (cls - xmin) + xmin                    # _multiply(include_min)
    fore_bck = jnp.concatenate([attned[..., :-1], cls[..., -1:]], axis=-1)
    fore_bck = fore_bck.reshape(NC, P, S, ncls1)
    feat_ori = nf.reshape(NC, P, S, Cf)

    k = max(1, S // 10)
    cls_idx = jnp.arange(NC)
    fore_scores = fore_bck[cls_idx, :, :, cls_idx]         # (NC, P, S)
    bkg_scores = fore_bck[:, :, :, -1]                     # (NC, P, S)
    _, fidx = lax.top_k(fore_scores, k)
    _, bidx = lax.top_k(bkg_scores, k)
    fsel = jnp.take_along_axis(feat_ori, fidx[..., None], axis=2)
    bsel = jnp.take_along_axis(feat_ori, bidx[..., None], axis=2)
    fore_ex = jnp.mean(fsel, axis=2)                       # (NC, P, Cf)
    bkg_ex = jnp.mean(bsel, axis=2)
    mean_bkg = jnp.mean(bkg_ex, axis=0, keepdims=True)
    return jnp.concatenate([fore_ex, mean_bkg], axis=0)    # (NC+1, P, Cf)


def stcl_act_forward(inputs, params, all_video_feats, n_class, pool_kernel):
    """inputs: (B, N, C) — kept time-major throughout (no transposes)."""
    B, N, C = inputs.shape
    ch = C // 2
    ncls1 = n_class + 1
    mid = params["it_kv_w"].shape[1] - C

    # ---- attention-weighted modality features + fusion + base classifier ----
    v_atn, vfeat = awm(inputs[..., :ch], params["vattn"])
    f_atn, ffeat = awm(inputs[..., ch:], params["fattn"])
    x_atn = (v_atn + f_atn) / 2
    nfeat = jnp.concatenate([vfeat, ffeat], axis=-1)
    nfeat = linear3(nfeat, params["fusion_w"], params["fusion_b"],
                    act="leaky_relu")
    x_cls = classifier_head(nfeat, params["classifier"])

    # ---- intra-video temporal relation branch ----
    itkv = linear3(nfeat, params["it_kv_w"], params["it_kv_b"])  # fused k|v
    layer1_feat = intra_attention(itkv[..., :mid], itkv[..., mid:], relu=True)
    # NOTE: the torch forward also computes a layer-2 intra block whose result
    # is never used by any output; it is dead code and dropped here.
    intra_cls = classifier_head(layer1_feat, params["intra_classifier"])

    # ---- inter-video exemplar relation branch ----
    exem = build_exemplars(all_video_feats, params, ncls1)       # (A, P, C)
    ivkv = linear3(nfeat, params["iv_kv_w"], params["iv_kv_b"])  # fused k|v
    inter_vid_k = ivkv[..., :mid]
    inter_vid_v = ivkv[..., mid:]
    ekv = linear3(exem, params["ie_kv_w"], params["ie_kv_b"])    # fused k|v
    exem_k = ekv[..., :mid]
    exem_v = ekv[..., mid:]

    vkn = _l2_normalize(inter_vid_k, axis=-1)
    ekn = _l2_normalize(exem_k, axis=-1)
    atn_proj = jnp.einsum("apc,c->ap", exem_v, params["clsatn_w"])
    ev_aug = jnp.concatenate([exem_v, atn_proj[..., None]], axis=-1)
    # (clswise_atn_conv bias is a constant shift -> cancels in class softmax.)
    rela = inter_fused_attention(vkn.astype(jnp.bfloat16),
                                 ekn.astype(jnp.bfloat16),
                                 ev_aug.astype(jnp.bfloat16), C)  # (B, N, C)
    inter_out = jnp.maximum(jnp.concatenate([inter_vid_v, rela], axis=-1), 0.0)
    inter_cls = classifier_head(inter_out, params["inter_classifier"])

    # ---- single temporal-pool over all concatenated channels ----
    pooled = avg_pool_time(
        jnp.concatenate([x_cls, intra_cls, inter_cls, x_atn, f_atn, v_atn],
                        axis=-1), pool_kernel)
    x_cls_p = pooled[..., 0:ncls1]
    intra_p = pooled[..., ncls1:2 * ncls1]
    inter_p = pooled[..., 2 * ncls1:3 * ncls1]
    x_atn_p = pooled[..., 3 * ncls1:3 * ncls1 + 1]
    f_atn_p = pooled[..., 3 * ncls1 + 1:3 * ncls1 + 2]
    v_atn_p = pooled[..., 3 * ncls1 + 2:3 * ncls1 + 3]
    cas = 0.55 * x_cls_p + 0.36 * intra_p + 0.09 * inter_p

    return {"feat": nfeat, "cas": cas, "inter_cas": inter_p, "attn": x_atn_p,
            "v_atn": v_atn_p, "f_atn": f_atn_p, "intra_cas": intra_p,
            "cas_origin": x_cls_p}


# ----------------------------------------------------------------------------
# Deterministic parameter init (kaiming_uniform_, bias = 0), stored directly
# in (K, Nout) matmul orientation (k=3 convs stored as im2col (3*Cin, Cout)).
# ----------------------------------------------------------------------------
def kaiming_uniform(key, fan_in, shape):
    bound = math.sqrt(6.0 / fan_in)
    return jax.random.uniform(key, shape, jnp.float32, -bound, bound)


def init_params(key, C, mid, n_class):
    ch = C // 2
    ncls1 = n_class + 1
    keys = iter(jax.random.split(key, 24))

    def lin(cin, cout):
        return (kaiming_uniform(next(keys), cin, (cin, cout)),
                jnp.zeros((cout,), jnp.float32))

    def conv3(cin, cout):
        return (kaiming_uniform(next(keys), cin * 3, (3 * cin, cout)),
                jnp.zeros((cout,), jnp.float32))

    p = {}
    for name in ("vattn", "fattn"):                      # fused [feat | attn]
        w, b = lin(ch, ch + 1)
        p[name] = {"w": w, "b": b}
    p["fusion_w"], p["fusion_b"] = lin(C, C)
    for name, cin in (("classifier", C), ("intra_classifier", C),
                      ("inter_classifier", 2 * C)):
        w1, b1 = conv3(cin, C)
        w2, b2 = lin(C, ncls1)
        p[name] = {"w1": w1, "b1": b1, "w2": w2, "b2": b2}
    p["it_kv_w"], p["it_kv_b"] = lin(C, mid + C)         # fused intra key|value
    p["iv_kv_w"], p["iv_kv_b"] = lin(C, mid + C)         # fused inter-vid key|value
    p["ie_kv_w"], p["ie_kv_b"] = lin(C, mid + C)         # fused inter-exem key|value
    wc, bc = lin(C, 1)
    p["clsatn_w"] = wc[:, 0]                             # (C,)
    p["clsatn_b"] = bc                                   # cancels in class softmax
    return p


# ----------------------------------------------------------------------------
if __name__ == "__main__":
    key = jax.random.PRNGKey(0)
    # Small, shape-consistent stand-ins for the real hyper-params:
    #   n_feature 2048 -> 64 (split 32/32 rgb/flow), intermediate 512 -> 16,
    #   n_class 100 -> 5, seq 16, batch 2, 3 exemplar prototypes of 16 snippets.
    B, N, C = 2, 16, 64
    MID = 16
    N_CLASS = 5
    VID_PROTO_NUM, SNIP_NUM = 3, 16
    POOL_KERNEL = 5  # odd, like max_seqlen // t // 2 * 2 + 1

    k_in, k_vid, k_par = jax.random.split(key, 3)
    inputs = jax.random.normal(k_in, (B, N, C), jnp.float32)
    all_video_feats = jax.random.normal(
        k_vid, (N_CLASS, VID_PROTO_NUM, SNIP_NUM, C), jnp.float32)
    params = init_params(k_par, C, MID, N_CLASS)

    fwd = jax.jit(stcl_act_forward, static_argnums=(3, 4))
    out = fwd(inputs, params, all_video_feats, N_CLASS, POOL_KERNEL)
    out = jax.tree_util.tree_map(jax.block_until_ready, out)

    assert out["cas"].shape == (B, N, N_CLASS + 1)
    assert out["feat"].shape == (B, N, C)
    assert out["attn"].shape == (B, N, 1)
    print("KERNEL_OK")
</pallas_src>

<mosaic_0001>
module attributes {stable_mosaic.version = 11 : i64} {
  func.func @_linear_kernel(%arg0: i32, %arg1: i32, %arg2: i32, %arg3: memref<32x128xbf16, #tpu.memory_space<vmem>>, %arg4: memref<128x128xbf16, #tpu.memory_space<vmem>>, %arg5: memref<1x128xf32, #tpu.memory_space<vmem>>, %arg6: memref<32x128xf32, #tpu.memory_space<vmem>>, %arg7: memref<32x128xf32, #tpu.memory_space<vmem>>) attributes {dimension_semantics = [#tpu.dimension_semantics<parallel>, #tpu.dimension_semantics<parallel>, #tpu.dimension_semantics<arbitrary>], iteration_bounds = array<i64: 1, 1, 1>, scalar_prefetch = 0 : i64, scratch_operands = 1 : i64, tpu.core_type = #tpu.core_type<tc>, window_params = [{transform_indices = @transform_0, window_bounds = array<i64: 32, 128>}, {transform_indices = @transform_1, window_bounds = array<i64: 128, 128>}, {transform_indices = @transform_2, window_bounds = array<i64: 1, 128>}, {transform_indices = @transform_3, window_bounds = array<i64: 32, 128>}]} {
    %c0_i32 = arith.constant 0 : i32
    %0 = arith.cmpi eq, %arg2, %c0_i32 : i32
    %1 = arith.extui %0 : i1 to i32
    %c0_i32_0 = arith.constant 0 : i32
    %2 = arith.cmpi ne, %1, %c0_i32_0 : i32
    scf.if %2 {
      %cst_10 = arith.constant 0.000000e+00 : f32
      %12 = vector.broadcast %cst_10 : f32 to vector<32x128xf32>
      %c0_11 = arith.constant 0 : index
      %c0_12 = arith.constant 0 : index
      %13 = vector.load %arg7[%c0_11, %c0_12] : memref<32x128xf32, #tpu.memory_space<vmem>>, vector<32x128xf32>
      tpu.vector_store %arg7[%c0_11, %c0_12], %12 {strides = array<i32>} : memref<32x128xf32, #tpu.memory_space<vmem>>, vector<32x128xf32>,
    } else {
    }
    %c0 = arith.constant 0 : index
    %c0_1 = arith.constant 0 : index
    %3 = vector.load %arg7[%c0, %c0_1] : memref<32x128xf32, #tpu.memory_space<vmem>>, vector<32x128xf32>
    %c0_2 = arith.constant 0 : index
    %c0_3 = arith.constant 0 : index
    %4 = vector.load %arg3[%c0_2, %c0_3] : memref<32x128xbf16, #tpu.memory_space<vmem>>, vector<32x128xbf16>
    %c0_4 = arith.constant 0 : index
    %c0_5 = arith.constant 0 : index
    %5 = vector.load %arg4[%c0_4, %c0_5] : memref<128x128xbf16, #tpu.memory_space<vmem>>, vector<128x128xbf16>
    %cst = arith.constant dense<0.000000e+00> : vector<32x128xf32>
    %6 = tpu.matmul %4, %5, %cst {dimension_numbers = #tpu.dot_dimension_numbers<[1], [0], [0], [1], [0, 0, 1, 1], [], []>} : vector<32x128xbf16>, vector<128x128xbf16>, vector<32x128xf32> -> vector<32x128xf32>
    %7 = arith.addf %3, %6 : vector<32x128xf32>
    %c0_6 = arith.constant 0 : index
    %c0_7 = arith.constant 0 : index
    %8 = vector.load %arg7[%c0_6, %c0_7] : memref<32x128xf32, #tpu.memory_space<vmem>>, vector<32x128xf32>
    tpu.vector_store %arg7[%c0_6, %c0_7], %7 {strides = array<i32>} : memref<32x128xf32, #tpu.memory_space<vmem>>, vector<32x128xf32>,
    %c0_i32_8 = arith.constant 0 : i32
    %9 = arith.cmpi eq, %arg2, %c0_i32_8 : i32
    %10 = arith.extui %9 : i1 to i32
    %c0_i32_9 = arith.constant 0 : i32
    %11 = arith.cmpi ne, %10, %c0_i32_9 : i32
    scf.if %11 {
      %c0_10 = arith.constant 0 : index
      %c0_11 = arith.constant 0 : index
      %12 = vector.load %arg7[%c0_10, %c0_11] : memref<32x128xf32, #tpu.memory_space<vmem>>, vector<32x128xf32>
      %c0_12 = arith.constant 0 : index
      %c0_13 = arith.constant 0 : index
      %13 = vector.load %arg5[%c0_12, %c0_13] : memref<1x128xf32, #tpu.memory_space<vmem>>, vector<1x128xf32>
      %14 = vector.broadcast %13 : vector<1x128xf32> to vector<32x128xf32>
      %15 = arith.addf %12, %14 : vector<32x128xf32>
      %c0_14 = arith.constant 0 : index
      %c0_15 = arith.constant 0 : index
      %16 = vector.load %arg6[%c0_14, %c0_15] : memref<32x128xf32, #tpu.memory_space<vmem>>, vector<32x128xf32>
      tpu.vector_store %arg6[%c0_14, %c0_15], %15 {strides = array<i32>} : memref<32x128xf32, #tpu.memory_space<vmem>>, vector<32x128xf32>,
    } else {
    }
    return
  }
  func.func @transform_0(%arg0: i32, %arg1: i32, %arg2: i32) -> (i32, i32) {
    %c0_i32 = arith.constant 0 : i32
    return %arg0, %arg2 : i32, i32
  }
  func.func @transform_1(%arg0: i32, %arg1: i32, %arg2: i32) -> (i32, i32) {
    %c0_i32 = arith.constant 0 : i32
    return %arg2, %arg1 : i32, i32
  }
  func.func @transform_2(%arg0: i32, %arg1: i32, %arg2: i32) -> (i32, i32) {
    %c0_i32 = arith.constant 0 : i32
    %c0_i32_0 = arith.constant 0 : i32
    return %c0_i32, %arg1 : i32, i32
  }
  func.func @transform_3(%arg0: i32, %arg1: i32, %arg2: i32) -> (i32, i32) {
    %c0_i32 = arith.constant 0 : i32
    return %arg0, %arg1 : i32, i32
  }
}

module attributes {stable_mosaic.version = 11 : i64} {
  func.func @_linear_kernel(%arg0: i32, %arg1: i32, %arg2: i32, %arg3: memref<32x128xbf16, #tpu.memory_space<vmem>>, %arg4: memref<128x128xbf16, #tpu.memory_space<vmem>>, %arg5: memref<1x128xf32, #tpu.memory_space<vmem>>, %arg6: memref<32x128xf32, #tpu.memory_space<vmem>>, %arg7: memref<32x128xf32, #tpu.memory_space<vmem>>) attributes {dimension_semantics = [#tpu.dimension_semantics<parallel>, #tpu.dimension_semantics<parallel>, #tpu.dimension_semantics<arbitrary>], iteration_bounds = array<i64: 1, 1, 1>, scalar_prefetch = 0 : i64, scratch_operands = 1 : i64, tpu.core_type = #tpu.core_type<tc>, window_params = [{transform_indices = @transform_0, window_bounds = array<i64: 32, 128>}, {transform_indices = @transform_1, window_bounds = array<i64: 128, 128>}, {transform_indices = @transform_2, window_bounds = array<i64: 1, 128>}, {transform_indices = @transform_3, window_bounds = array<i64: 32, 128>}]} {
    %c0_i32 = arith.constant 0 : i32
    %0 = arith.cmpi eq, %arg2, %c0_i32 : i32
    %1 = arith.extui %0 : i1 to i32
    %c0_i32_0 = arith.constant 0 : i32
    %2 = arith.cmpi ne, %1, %c0_i32_0 : i32
    scf.if %2 {
      %cst_10 = arith.constant 0.000000e+00 : f32
      %12 = vector.broadcast %cst_10 : f32 to vector<32x128xf32>
      %c0_11 = arith.constant 0 : index
      %c0_12 = arith.constant 0 : index
      %13 = vector.load %arg7[%c0_11, %c0_12] : memref<32x128xf32, #tpu.memory_space<vmem>>, vector<32x128xf32>
      tpu.vector_store %arg7[%c0_11, %c0_12], %12 {strides = array<i32>} : memref<32x128xf32, #tpu.memory_space<vmem>>, vector<32x128xf32>,
    } else {
    }
    %c0 = arith.constant 0 : index
    %c0_1 = arith.constant 0 : index
    %3 = vector.load %arg7[%c0, %c0_1] : memref<32x128xf32, #tpu.memory_space<vmem>>, vector<32x128xf32>
    %c0_2 = arith.constant 0 : index
    %c0_3 = arith.constant 0 : index
    %4 = vector.load %arg3[%c0_2, %c0_3] : memref<32x128xbf16, #tpu.memory_space<vmem>>, vector<32x128xbf16>
    %c0_4 = arith.constant 0 : index
    %c0_5 = arith.constant 0 : index
    %5 = vector.load %arg4[%c0_4, %c0_5] : memref<128x128xbf16, #tpu.memory_space<vmem>>, vector<128x128xbf16>
    %cst = arith.constant dense<0.000000e+00> : vector<32x128xf32>
    %6 = tpu.matmul %4, %5, %cst {dimension_numbers = #tpu.dot_dimension_numbers<[1], [0], [0], [1], [0, 0, 1, 1], [], []>} : vector<32x128xbf16>, vector<128x128xbf16>, vector<32x128xf32> -> vector<32x128xf32>
    %7 = arith.addf %3, %6 : vector<32x128xf32>
    %c0_6 = arith.constant 0 : index
    %c0_7 = arith.constant 0 : index
    %8 = vector.load %arg7[%c0_6, %c0_7] : memref<32x128xf32, #tpu.memory_space<vmem>>, vector<32x128xf32>
    tpu.vector_store %arg7[%c0_6, %c0_7], %7 {strides = array<i32>} : memref<32x128xf32, #tpu.memory_space<vmem>>, vector<32x128xf32>,
    %c0_i32_8 = arith.constant 0 : i32
    %9 = arith.cmpi eq, %arg2, %c0_i32_8 : i32
    %10 = arith.extui %9 : i1 to i32
    %c0_i32_9 = arith.constant 0 : i32
    %11 = arith.cmpi ne, %10, %c0_i32_9 : i32
    scf.if %11 {
      %c0_10 = arith.constant 0 : index
      %c0_11 = arith.constant 0 : index
      %12 = vector.load %arg7[%c0_10, %c0_11] : memref<32x128xf32, #tpu.memory_space<vmem>>, vector<32x128xf32>
      %c0_12 = arith.constant 0 : index
      %c0_13 = arith.constant 0 : index
      %13 = vector.load %arg5[%c0_12, %c0_13] : memref<1x128xf32, #tpu.memory_space<vmem>>, vector<1x128xf32>
      %14 = vector.broadcast %13 : vector<1x128xf32> to vector<32x128xf32>
      %15 = arith.addf %12, %14 : vector<32x128xf32>
      %cst_14 = arith.constant 0.000000e+00 : f32
      %16 = vector.broadcast %cst_14 : f32 to vector<32x128xf32>
      %17 = arith.cmpf oge, %15, %16 : vector<32x128xf32>
      %cst_15 = arith.constant 2.000000e-01 : f32
      %18 = vector.broadcast %cst_15 : f32 to vector<32x128xf32>
      %19 = arith.mulf %18, %15 : vector<32x128xf32>
      %20 = arith.select %17, %15, %19 : vector<32x128xi1>, vector<32x128xf32>
      %c0_16 = arith.constant 0 : index
      %c0_17 = arith.constant 0 : index
      %21 = vector.load %arg6[%c0_16, %c0_17] : memref<32x128xf32, #tpu.memory_space<vmem>>, vector<32x128xf32>
      tpu.vector_store %arg6[%c0_16, %c0_17], %20 {strides = array<i32>} : memref<32x128xf32, #tpu.memory_space<vmem>>, vector<32x128xf32>,
    } else {
    }
    return
  }
  func.func @transform_0(%arg0: i32, %arg1: i32, %arg2: i32) -> (i32, i32) {
    %c0_i32 = arith.constant 0 : i32
    return %arg0, %arg2 : i32, i32
  }
  func.func @transform_1(%arg0: i32, %arg1: i32, %arg2: i32) -> (i32, i32) {
    %c0_i32 = arith.constant 0 : i32
    return %arg2, %arg1 : i32, i32
  }
  func.func @transform_2(%arg0: i32, %arg1: i32, %arg2: i32) -> (i32, i32) {
    %c0_i32 = arith.constant 0 : i32
    %c0_i32_0 = arith.constant 0 : i32
    return %c0_i32, %arg1 : i32, i32
  }
  func.func @transform_3(%arg0: i32, %arg1: i32, %arg2: i32) -> (i32, i32) {
    %c0_i32 = arith.constant 0 : i32
    return %arg0, %arg1 : i32, i32
  }
}

module attributes {stable_mosaic.version = 11 : i64} {
  func.func @_linear_kernel(%arg0: i32, %arg1: i32, %arg2: i32, %arg3: memref<240x128xbf16, #tpu.memory_space<vmem>>, %arg4: memref<128x128xbf16, #tpu.memory_space<vmem>>, %arg5: memref<1x128xf32, #tpu.memory_space<vmem>>, %arg6: memref<240x128xf32, #tpu.memory_space<vmem>>, %arg7: memref<240x128xf32, #tpu.memory_space<vmem>>) attributes {dimension_semantics = [#tpu.dimension_semantics<parallel>, #tpu.dimension_semantics<parallel>, #tpu.dimension_semantics<arbitrary>], iteration_bounds = array<i64: 1, 1, 1>, scalar_prefetch = 0 : i64, scratch_operands = 1 : i64, tpu.core_type = #tpu.core_type<tc>, window_params = [{transform_indices = @transform_0, window_bounds = array<i64: 240, 128>}, {transform_indices = @transform_1, window_bounds = array<i64: 128, 128>}, {transform_indices = @transform_2, window_bounds = array<i64: 1, 128>}, {transform_indices = @transform_3, window_bounds = array<i64: 240, 128>}]} {
    %c0_i32 = arith.constant 0 : i32
    %0 = arith.cmpi eq, %arg2, %c0_i32 : i32
    %1 = arith.extui %0 : i1 to i32
    %c0_i32_0 = arith.constant 0 : i32
    %2 = arith.cmpi ne, %1, %c0_i32_0 : i32
    scf.if %2 {
      %cst_10 = arith.constant 0.000000e+00 : f32
      %12 = vector.broadcast %cst_10 : f32 to vector<240x128xf32>
      %c0_11 = arith.constant 0 : index
      %c0_12 = arith.constant 0 : index
      %13 = vector.load %arg7[%c0_11, %c0_12] : memref<240x128xf32, #tpu.memory_space<vmem>>, vector<240x128xf32>
      tpu.vector_store %arg7[%c0_11, %c0_12], %12 {strides = array<i32>} : memref<240x128xf32, #tpu.memory_space<vmem>>, vector<240x128xf32>,
    } else {
    }
    %c0 = arith.constant 0 : index
    %c0_1 = arith.constant 0 : index
    %3 = vector.load %arg7[%c0, %c0_1] : memref<240x128xf32, #tpu.memory_space<vmem>>, vector<240x128xf32>
    %c0_2 = arith.constant 0 : index
    %c0_3 = arith.constant 0 : index
    %4 = vector.load %arg3[%c0_2, %c0_3] : memref<240x128xbf16, #tpu.memory_space<vmem>>, vector<240x128xbf16>
    %c0_4 = arith.constant 0 : index
    %c0_5 = arith.constant 0 : index
    %5 = vector.load %arg4[%c0_4, %c0_5] : memref<128x128xbf16, #tpu.memory_space<vmem>>, vector<128x128xbf16>
    %cst = arith.constant dense<0.000000e+00> : vector<240x128xf32>
    %6 = tpu.matmul %4, %5, %cst {dimension_numbers = #tpu.dot_dimension_numbers<[1], [0], [0], [1], [0, 0, 1, 1], [], []>} : vector<240x128xbf16>, vector<128x128xbf16>, vector<240x128xf32> -> vector<240x128xf32>
    %7 = arith.addf %3, %6 : vector<240x128xf32>
    %c0_6 = arith.constant 0 : index
    %c0_7 = arith.constant 0 : index
    %8 = vector.load %arg7[%c0_6, %c0_7] : memref<240x128xf32, #tpu.memory_space<vmem>>, vector<240x128xf32>
    tpu.vector_store %arg7[%c0_6, %c0_7], %7 {strides = array<i32>} : memref<240x128xf32, #tpu.memory_space<vmem>>, vector<240x128xf32>,
    %c0_i32_8 = arith.constant 0 : i32
    %9 = arith.cmpi eq, %arg2, %c0_i32_8 : i32
    %10 = arith.extui %9 : i1 to i32
    %c0_i32_9 = arith.constant 0 : i32
    %11 = arith.cmpi ne, %10, %c0_i32_9 : i32
    scf.if %11 {
      %c0_10 = arith.constant 0 : index
      %c0_11 = arith.constant 0 : index
      %12 = vector.load %arg7[%c0_10, %c0_11] : memref<240x128xf32, #tpu.memory_space<vmem>>, vector<240x128xf32>
      %c0_12 = arith.constant 0 : index
      %c0_13 = arith.constant 0 : index
      %13 = vector.load %arg5[%c0_12, %c0_13] : memref<1x128xf32, #tpu.memory_space<vmem>>, vector<1x128xf32>
      %14 = vector.broadcast %13 : vector<1x128xf32> to vector<240x128xf32>
      %15 = arith.addf %12, %14 : vector<240x128xf32>
      %c0_14 = arith.constant 0 : index
      %c0_15 = arith.constant 0 : index
      %16 = vector.load %arg6[%c0_14, %c0_15] : memref<240x128xf32, #tpu.memory_space<vmem>>, vector<240x128xf32>
      tpu.vector_store %arg6[%c0_14, %c0_15], %15 {strides = array<i32>} : memref<240x128xf32, #tpu.memory_space<vmem>>, vector<240x128xf32>,
    } else {
    }
    return
  }
  func.func @transform_0(%arg0: i32, %arg1: i32, %arg2: i32) -> (i32, i32) {
    %c0_i32 = arith.constant 0 : i32
    return %arg0, %arg2 : i32, i32
  }
  func.func @transform_1(%arg0: i32, %arg1: i32, %arg2: i32) -> (i32, i32) {
    %c0_i32 = arith.constant 0 : i32
    return %arg2, %arg1 : i32, i32
  }
  func.func @transform_2(%arg0: i32, %arg1: i32, %arg2: i32) -> (i32, i32) {
    %c0_i32 = arith.constant 0 : i32
    %c0_i32_0 = arith.constant 0 : i32
    return %c0_i32, %arg1 : i32, i32
  }
  func.func @transform_3(%arg0: i32, %arg1: i32, %arg2: i32) -> (i32, i32) {
    %c0_i32 = arith.constant 0 : i32
    return %arg0, %arg1 : i32, i32
  }
}

module attributes {stable_mosaic.version = 11 : i64} {
  func.func @_linear_kernel(%arg0: i32, %arg1: i32, %arg2: i32, %arg3: memref<240x128xbf16, #tpu.memory_space<vmem>>, %arg4: memref<128x128xbf16, #tpu.memory_space<vmem>>, %arg5: memref<1x128xf32, #tpu.memory_space<vmem>>, %arg6: memref<240x128xf32, #tpu.memory_space<vmem>>, %arg7: memref<240x128xf32, #tpu.memory_space<vmem>>) attributes {dimension_semantics = [#tpu.dimension_semantics<parallel>, #tpu.dimension_semantics<parallel>, #tpu.dimension_semantics<arbitrary>], iteration_bounds = array<i64: 1, 1, 1>, scalar_prefetch = 0 : i64, scratch_operands = 1 : i64, tpu.core_type = #tpu.core_type<tc>, window_params = [{transform_indices = @transform_0, window_bounds = array<i64: 240, 128>}, {transform_indices = @transform_1, window_bounds = array<i64: 128, 128>}, {transform_indices = @transform_2, window_bounds = array<i64: 1, 128>}, {transform_indices = @transform_3, window_bounds = array<i64: 240, 128>}]} {
    %c0_i32 = arith.constant 0 : i32
    %0 = arith.cmpi eq, %arg2, %c0_i32 : i32
    %1 = arith.extui %0 : i1 to i32
    %c0_i32_0 = arith.constant 0 : i32
    %2 = arith.cmpi ne, %1, %c0_i32_0 : i32
    scf.if %2 {
      %cst_10 = arith.constant 0.000000e+00 : f32
      %12 = vector.broadcast %cst_10 : f32 to vector<240x128xf32>
      %c0_11 = arith.constant 0 : index
      %c0_12 = arith.constant 0 : index
      %13 = vector.load %arg7[%c0_11, %c0_12] : memref<240x128xf32, #tpu.memory_space<vmem>>, vector<240x128xf32>
      tpu.vector_store %arg7[%c0_11, %c0_12], %12 {strides = array<i32>} : memref<240x128xf32, #tpu.memory_space<vmem>>, vector<240x128xf32>,
    } else {
    }
    %c0 = arith.constant 0 : index
    %c0_1 = arith.constant 0 : index
    %3 = vector.load %arg7[%c0, %c0_1] : memref<240x128xf32, #tpu.memory_space<vmem>>, vector<240x128xf32>
    %c0_2 = arith.constant 0 : index
    %c0_3 = arith.constant 0 : index
    %4 = vector.load %arg3[%c0_2, %c0_3] : memref<240x128xbf16, #tpu.memory_space<vmem>>, vector<240x128xbf16>
    %c0_4 = arith.constant 0 : index
    %c0_5 = arith.constant 0 : index
    %5 = vector.load %arg4[%c0_4, %c0_5] : memref<128x128xbf16, #tpu.memory_space<vmem>>, vector<128x128xbf16>
    %cst = arith.constant dense<0.000000e+00> : vector<240x128xf32>
    %6 = tpu.matmul %4, %5, %cst {dimension_numbers = #tpu.dot_dimension_numbers<[1], [0], [0], [1], [0, 0, 1, 1], [], []>} : vector<240x128xbf16>, vector<128x128xbf16>, vector<240x128xf32> -> vector<240x128xf32>
    %7 = arith.addf %3, %6 : vector<240x128xf32>
    %c0_6 = arith.constant 0 : index
    %c0_7 = arith.constant 0 : index
    %8 = vector.load %arg7[%c0_6, %c0_7] : memref<240x128xf32, #tpu.memory_space<vmem>>, vector<240x128xf32>
    tpu.vector_store %arg7[%c0_6, %c0_7], %7 {strides = array<i32>} : memref<240x128xf32, #tpu.memory_space<vmem>>, vector<240x128xf32>,
    %c0_i32_8 = arith.constant 0 : i32
    %9 = arith.cmpi eq, %arg2, %c0_i32_8 : i32
    %10 = arith.extui %9 : i1 to i32
    %c0_i32_9 = arith.constant 0 : i32
    %11 = arith.cmpi ne, %10, %c0_i32_9 : i32
    scf.if %11 {
      %c0_10 = arith.constant 0 : index
      %c0_11 = arith.constant 0 : index
      %12 = vector.load %arg7[%c0_10, %c0_11] : memref<240x128xf32, #tpu.memory_space<vmem>>, vector<240x128xf32>
      %c0_12 = arith.constant 0 : index
      %c0_13 = arith.constant 0 : index
      %13 = vector.load %arg5[%c0_12, %c0_13] : memref<1x128xf32, #tpu.memory_space<vmem>>, vector<1x128xf32>
      %14 = vector.broadcast %13 : vector<1x128xf32> to vector<240x128xf32>
      %15 = arith.addf %12, %14 : vector<240x128xf32>
      %cst_14 = arith.constant 0.000000e+00 : f32
      %16 = vector.broadcast %cst_14 : f32 to vector<240x128xf32>
      %17 = arith.cmpf oge, %15, %16 : vector<240x128xf32>
      %cst_15 = arith.constant 2.000000e-01 : f32
      %18 = vector.broadcast %cst_15 : f32 to vector<240x128xf32>
      %19 = arith.mulf %18, %15 : vector<240x128xf32>
      %20 = arith.select %17, %15, %19 : vector<240x128xi1>, vector<240x128xf32>
      %c0_16 = arith.constant 0 : index
      %c0_17 = arith.constant 0 : index
      %21 = vector.load %arg6[%c0_16, %c0_17] : memref<240x128xf32, #tpu.memory_space<vmem>>, vector<240x128xf32>
      tpu.vector_store %arg6[%c0_16, %c0_17], %20 {strides = array<i32>} : memref<240x128xf32, #tpu.memory_space<vmem>>, vector<240x128xf32>,
    } else {
    }
    return
  }
  func.func @transform_0(%arg0: i32, %arg1: i32, %arg2: i32) -> (i32, i32) {
    %c0_i32 = arith.constant 0 : i32
    return %arg0, %arg2 : i32, i32
  }
  func.func @transform_1(%arg0: i32, %arg1: i32, %arg2: i32) -> (i32, i32) {
    %c0_i32 = arith.constant 0 : i32
    return %arg2, %arg1 : i32, i32
  }
  func.func @transform_2(%arg0: i32, %arg1: i32, %arg2: i32) -> (i32, i32) {
    %c0_i32 = arith.constant 0 : i32
    %c0_i32_0 = arith.constant 0 : i32
    return %c0_i32, %arg1 : i32, i32
  }
  func.func @transform_3(%arg0: i32, %arg1: i32, %arg2: i32) -> (i32, i32) {
    %c0_i32 = arith.constant 0 : i32
    return %arg0, %arg1 : i32, i32
  }
}

module attributes {stable_mosaic.version = 11 : i64} {
  func.func @_linear_kernel(%arg0: i32, %arg1: i32, %arg2: i32, %arg3: memref<240x256xbf16, #tpu.memory_space<vmem>>, %arg4: memref<256x128xbf16, #tpu.memory_space<vmem>>, %arg5: memref<1x128xf32, #tpu.memory_space<vmem>>, %arg6: memref<240x128xf32, #tpu.memory_space<vmem>>, %arg7: memref<240x128xf32, #tpu.memory_space<vmem>>) attributes {dimension_semantics = [#tpu.dimension_semantics<parallel>, #tpu.dimension_semantics<parallel>, #tpu.dimension_semantics<arbitrary>], iteration_bounds = array<i64: 1, 1, 1>, scalar_prefetch = 0 : i64, scratch_operands = 1 : i64, tpu.core_type = #tpu.core_type<tc>, window_params = [{transform_indices = @transform_0, window_bounds = array<i64: 240, 256>}, {transform_indices = @transform_1, window_bounds = array<i64: 256, 128>}, {transform_indices = @transform_2, window_bounds = array<i64: 1, 128>}, {transform_indices = @transform_3, window_bounds = array<i64: 240, 128>}]} {
    %c0_i32 = arith.constant 0 : i32
    %0 = arith.cmpi eq, %arg2, %c0_i32 : i32
    %1 = arith.extui %0 : i1 to i32
    %c0_i32_0 = arith.constant 0 : i32
    %2 = arith.cmpi ne, %1, %c0_i32_0 : i32
    scf.if %2 {
      %cst_10 = arith.constant 0.000000e+00 : f32
      %12 = vector.broadcast %cst_10 : f32 to vector<240x128xf32>
      %c0_11 = arith.constant 0 : index
      %c0_12 = arith.constant 0 : index
      %13 = vector.load %arg7[%c0_11, %c0_12] : memref<240x128xf32, #tpu.memory_space<vmem>>, vector<240x128xf32>
      tpu.vector_store %arg7[%c0_11, %c0_12], %12 {strides = array<i32>} : memref<240x128xf32, #tpu.memory_space<vmem>>, vector<240x128xf32>,
    } else {
    }
    %c0 = arith.constant 0 : index
    %c0_1 = arith.constant 0 : index
    %3 = vector.load %arg7[%c0, %c0_1] : memref<240x128xf32, #tpu.memory_space<vmem>>, vector<240x128xf32>
    %c0_2 = arith.constant 0 : index
    %c0_3 = arith.constant 0 : index
    %4 = vector.load %arg3[%c0_2, %c0_3] : memref<240x256xbf16, #tpu.memory_space<vmem>>, vector<240x256xbf16>
    %c0_4 = arith.constant 0 : index
    %c0_5 = arith.constant 0 : index
    %5 = vector.load %arg4[%c0_4, %c0_5] : memref<256x128xbf16, #tpu.memory_space<vmem>>, vector<256x128xbf16>
    %cst = arith.constant dense<0.000000e+00> : vector<240x128xf32>
    %6 = tpu.matmul %4, %5, %cst {dimension_numbers = #tpu.dot_dimension_numbers<[1], [0], [0], [1], [0, 0, 1, 1], [], []>} : vector<240x256xbf16>, vector<256x128xbf16>, vector<240x128xf32> -> vector<240x128xf32>
    %7 = arith.addf %3, %6 : vector<240x128xf32>
    %c0_6 = arith.constant 0 : index
    %c0_7 = arith.constant 0 : index
    %8 = vector.load %arg7[%c0_6, %c0_7] : memref<240x128xf32, #tpu.memory_space<vmem>>, vector<240x128xf32>
    tpu.vector_store %arg7[%c0_6, %c0_7], %7 {strides = array<i32>} : memref<240x128xf32, #tpu.memory_space<vmem>>, vector<240x128xf32>,
    %c0_i32_8 = arith.constant 0 : i32
    %9 = arith.cmpi eq, %arg2, %c0_i32_8 : i32
    %10 = arith.extui %9 : i1 to i32
    %c0_i32_9 = arith.constant 0 : i32
    %11 = arith.cmpi ne, %10, %c0_i32_9 : i32
    scf.if %11 {
      %c0_10 = arith.constant 0 : index
      %c0_11 = arith.constant 0 : index
      %12 = vector.load %arg7[%c0_10, %c0_11] : memref<240x128xf32, #tpu.memory_space<vmem>>, vector<240x128xf32>
      %c0_12 = arith.constant 0 : index
      %c0_13 = arith.constant 0 : index
      %13 = vector.load %arg5[%c0_12, %c0_13] : memref<1x128xf32, #tpu.memory_space<vmem>>, vector<1x128xf32>
      %14 = vector.broadcast %13 : vector<1x128xf32> to vector<240x128xf32>
      %15 = arith.addf %12, %14 : vector<240x128xf32>
      %cst_14 = arith.constant 0.000000e+00 : f32
      %16 = vector.broadcast %cst_14 : f32 to vector<240x128xf32>
      %17 = arith.cmpf oge, %15, %16 : vector<240x128xf32>
      %cst_15 = arith.constant 2.000000e-01 : f32
      %18 = vector.broadcast %cst_15 : f32 to vector<240x128xf32>
      %19 = arith.mulf %18, %15 : vector<240x128xf32>
      %20 = arith.select %17, %15, %19 : vector<240x128xi1>, vector<240x128xf32>
      %c0_16 = arith.constant 0 : index
      %c0_17 = arith.constant 0 : index
      %21 = vector.load %arg6[%c0_16, %c0_17] : memref<240x128xf32, #tpu.memory_space<vmem>>, vector<240x128xf32>
      tpu.vector_store %arg6[%c0_16, %c0_17], %20 {strides = array<i32>} : memref<240x128xf32, #tpu.memory_space<vmem>>, vector<240x128xf32>,
    } else {
    }
    return
  }
  func.func @transform_0(%arg0: i32, %arg1: i32, %arg2: i32) -> (i32, i32) {
    %c0_i32 = arith.constant 0 : i32
    return %arg0, %arg2 : i32, i32
  }
  func.func @transform_1(%arg0: i32, %arg1: i32, %arg2: i32) -> (i32, i32) {
    %c0_i32 = arith.constant 0 : i32
    return %arg2, %arg1 : i32, i32
  }
  func.func @transform_2(%arg0: i32, %arg1: i32, %arg2: i32) -> (i32, i32) {
    %c0_i32 = arith.constant 0 : i32
    %c0_i32_0 = arith.constant 0 : i32
    return %c0_i32, %arg1 : i32, i32
  }
  func.func @transform_3(%arg0: i32, %arg1: i32, %arg2: i32) -> (i32, i32) {
    %c0_i32 = arith.constant 0 : i32
    return %arg0, %arg1 : i32, i32
  }
}

module attributes {stable_mosaic.version = 11 : i64} {
  func.func @_linear_kernel(%arg0: i32, %arg1: i32, %arg2: i32, %arg3: memref<24x128xbf16, #tpu.memory_space<vmem>>, %arg4: memref<128x128xbf16, #tpu.memory_space<vmem>>, %arg5: memref<1x128xf32, #tpu.memory_space<vmem>>, %arg6: memref<24x128xf32, #tpu.memory_space<vmem>>, %arg7: memref<24x128xf32, #tpu.memory_space<vmem>>) attributes {dimension_semantics = [#tpu.dimension_semantics<parallel>, #tpu.dimension_semantics<parallel>, #tpu.dimension_semantics<arbitrary>], iteration_bounds = array<i64: 1, 1, 1>, scalar_prefetch = 0 : i64, scratch_operands = 1 : i64, tpu.core_type = #tpu.core_type<tc>, window_params = [{transform_indices = @transform_0, window_bounds = array<i64: 24, 128>}, {transform_indices = @transform_1, window_bounds = array<i64: 128, 128>}, {transform_indices = @transform_2, window_bounds = array<i64: 1, 128>}, {transform_indices = @transform_3, window_bounds = array<i64: 24, 128>}]} {
    %c0_i32 = arith.constant 0 : i32
    %0 = arith.cmpi eq, %arg2, %c0_i32 : i32
    %1 = arith.extui %0 : i1 to i32
    %c0_i32_0 = arith.constant 0 : i32
    %2 = arith.cmpi ne, %1, %c0_i32_0 : i32
    scf.if %2 {
      %cst_10 = arith.constant 0.000000e+00 : f32
      %12 = vector.broadcast %cst_10 : f32 to vector<24x128xf32>
      %c0_11 = arith.constant 0 : index
      %c0_12 = arith.constant 0 : index
      %13 = vector.load %arg7[%c0_11, %c0_12] : memref<24x128xf32, #tpu.memory_space<vmem>>, vector<24x128xf32>
      tpu.vector_store %arg7[%c0_11, %c0_12], %12 {strides = array<i32>} : memref<24x128xf32, #tpu.memory_space<vmem>>, vector<24x128xf32>,
    } else {
    }
    %c0 = arith.constant 0 : index
    %c0_1 = arith.constant 0 : index
    %3 = vector.load %arg7[%c0, %c0_1] : memref<24x128xf32, #tpu.memory_space<vmem>>, vector<24x128xf32>
    %c0_2 = arith.constant 0 : index
    %c0_3 = arith.constant 0 : index
    %4 = vector.load %arg3[%c0_2, %c0_3] : memref<24x128xbf16, #tpu.memory_space<vmem>>, vector<24x128xbf16>
    %c0_4 = arith.constant 0 : index
    %c0_5 = arith.constant 0 : index
    %5 = vector.load %arg4[%c0_4, %c0_5] : memref<128x128xbf16, #tpu.memory_space<vmem>>, vector<128x128xbf16>
    %cst = arith.constant dense<0.000000e+00> : vector<24x128xf32>
    %6 = tpu.matmul %4, %5, %cst {dimension_numbers = #tpu.dot_dimension_numbers<[1], [0], [0], [1], [0, 0, 1, 1], [], []>} : vector<24x128xbf16>, vector<128x128xbf16>, vector<24x128xf32> -> vector<24x128xf32>
    %7 = arith.addf %3, %6 : vector<24x128xf32>
    %c0_6 = arith.constant 0 : index
    %c0_7 = arith.constant 0 : index
    %8 = vector.load %arg7[%c0_6, %c0_7] : memref<24x128xf32, #tpu.memory_space<vmem>>, vector<24x128xf32>
    tpu.vector_store %arg7[%c0_6, %c0_7], %7 {strides = array<i32>} : memref<24x128xf32, #tpu.memory_space<vmem>>, vector<24x128xf32>,
    %c0_i32_8 = arith.constant 0 : i32
    %9 = arith.cmpi eq, %arg2, %c0_i32_8 : i32
    %10 = arith.extui %9 : i1 to i32
    %c0_i32_9 = arith.constant 0 : i32
    %11 = arith.cmpi ne, %10, %c0_i32_9 : i32
    scf.if %11 {
      %c0_10 = arith.constant 0 : index
      %c0_11 = arith.constant 0 : index
      %12 = vector.load %arg7[%c0_10, %c0_11] : memref<24x128xf32, #tpu.memory_space<vmem>>, vector<24x128xf32>
      %c0_12 = arith.constant 0 : index
      %c0_13 = arith.constant 0 : index
      %13 = vector.load %arg5[%c0_12, %c0_13] : memref<1x128xf32, #tpu.memory_space<vmem>>, vector<1x128xf32>
      %14 = vector.broadcast %13 : vector<1x128xf32> to vector<24x128xf32>
      %15 = arith.addf %12, %14 : vector<24x128xf32>
      %c0_14 = arith.constant 0 : index
      %c0_15 = arith.constant 0 : index
      %16 = vector.load %arg6[%c0_14, %c0_15] : memref<24x128xf32, #tpu.memory_space<vmem>>, vector<24x128xf32>
      tpu.vector_store %arg6[%c0_14, %c0_15], %15 {strides = array<i32>} : memref<24x128xf32, #tpu.memory_space<vmem>>, vector<24x128xf32>,
    } else {
    }
    return
  }
  func.func @transform_0(%arg0: i32, %arg1: i32, %arg2: i32) -> (i32, i32) {
    %c0_i32 = arith.constant 0 : i32
    return %arg0, %arg2 : i32, i32
  }
  func.func @transform_1(%arg0: i32, %arg1: i32, %arg2: i32) -> (i32, i32) {
    %c0_i32 = arith.constant 0 : i32
    return %arg2, %arg1 : i32, i32
  }
  func.func @transform_2(%arg0: i32, %arg1: i32, %arg2: i32) -> (i32, i32) {
    %c0_i32 = arith.constant 0 : i32
    %c0_i32_0 = arith.constant 0 : i32
    return %c0_i32, %arg1 : i32, i32
  }
  func.func @transform_3(%arg0: i32, %arg1: i32, %arg2: i32) -> (i32, i32) {
    %c0_i32 = arith.constant 0 : i32
    return %arg0, %arg1 : i32, i32
  }
}

module attributes {stable_mosaic.version = 11 : i64} {
  func.func @_inter_fused_kernel(%arg0: i32, %arg1: i32, %arg2: memref<1x16x16xbf16, #tpu.memory_space<vmem>>, %arg3: memref<1x3x16xbf16, #tpu.memory_space<vmem>>, %arg4: memref<1x3x65xbf16, #tpu.memory_space<vmem>>, %arg5: memref<1x16x64xf32, #tpu.memory_space<vmem>>, %arg6: memref<16x1xf32, #tpu.memory_space<vmem>>, %arg7: memref<16x1xf32, #tpu.memory_space<vmem>>, %arg8: memref<16x64xf32, #tpu.memory_space<vmem>>) attributes {dimension_semantics = [#tpu.dimension_semantics<parallel>, #tpu.dimension_semantics<arbitrary>], iteration_bounds = array<i64: 2, 6>, scalar_prefetch = 0 : i64, scratch_operands = 3 : i64, tpu.core_type = #tpu.core_type<tc>, window_params = [{transform_indices = @transform_0, window_bounds = array<i64: 1, 16, 16>}, {transform_indices = @transform_1, window_bounds = array<i64: 1, 3, 16>}, {transform_indices = @transform_2, window_bounds = array<i64: 1, 3, 65>}, {transform_indices = @transform_3, window_bounds = array<i64: 1, 16, 64>}]} {
    %c0_i32 = arith.constant 0 : i32
    %0 = arith.cmpi eq, %arg1, %c0_i32 : i32
    %1 = arith.extui %0 : i1 to i32
    %c0_i32_0 = arith.constant 0 : i32
    %2 = arith.cmpi ne, %1, %c0_i32_0 : i32
    scf.if %2 {
      %cst_27 = arith.constant 0xFF800000 : f32
      %46 = vector.broadcast %cst_27 : f32 to vector<16x1xf32>
      %c0_28 = arith.constant 0 : index
      %c0_29 = arith.constant 0 : index
      %47 = vector.load %arg6[%c0_28, %c0_29] : memref<16x1xf32, #tpu.memory_space<vmem>>, vector<16x1xf32>
      tpu.vector_store %arg6[%c0_28, %c0_29], %46 {strides = array<i32>} : memref<16x1xf32, #tpu.memory_space<vmem>>, vector<16x1xf32>,
      %cst_30 = arith.constant 0.000000e+00 : f32
      %48 = vector.broadcast %cst_30 : f32 to vector<16x1xf32>
      %c0_31 = arith.constant 0 : index
      %c0_32 = arith.constant 0 : index
      %49 = vector.load %arg7[%c0_31, %c0_32] : memref<16x1xf32, #tpu.memory_space<vmem>>, vector<16x1xf32>
      tpu.vector_store %arg7[%c0_31, %c0_32], %48 {strides = array<i32>} : memref<16x1xf32, #tpu.memory_space<vmem>>, vector<16x1xf32>,
      %cst_33 = arith.constant 0.000000e+00 : f32
      %50 = vector.broadcast %cst_33 : f32 to vector<16x64xf32>
      %c0_34 = arith.constant 0 : index
      %c0_35 = arith.constant 0 : index
      %51 = vector.load %arg8[%c0_34, %c0_35] : memref<16x64xf32, #tpu.memory_space<vmem>>, vector<16x64xf32>
      tpu.vector_store %arg8[%c0_34, %c0_35], %50 {strides = array<i32>} : memref<16x64xf32, #tpu.memory_space<vmem>>, vector<16x64xf32>,
    } else {
    }
    %c0 = arith.constant 0 : index
    %c0_1 = arith.constant 0 : index
    %c0_2 = arith.constant 0 : index
    %3 = vector.load %arg2[%c0, %c0_1, %c0_2] : memref<1x16x16xbf16, #tpu.memory_space<vmem>>, vector<1x16x16xbf16>
    %4 = vector.shape_cast %3 : vector<1x16x16xbf16> to vector<16x16xbf16>
    %c0_3 = arith.constant 0 : index
    %c0_4 = arith.constant 0 : index
    %c0_5 = arith.constant 0 : index
    %5 = vector.load %arg3[%c0_3, %c0_4, %c0_5] : memref<1x3x16xbf16, #tpu.memory_space<vmem>>, vector<1x3x16xbf16>
    %6 = vector.shape_cast %5 : vector<1x3x16xbf16> to vector<3x16xbf16>
    %cst = arith.constant dense<0.000000e+00> : vector<16x3xf32>
    %7 = tpu.matmul %4, %6, %cst {dimension_numbers = #tpu.dot_dimension_numbers<[1], [1], [0], [0], [0, 0, 1, 0], [], []>} : vector<16x16xbf16>, vector<3x16xbf16>, vector<16x3xf32> -> vector<16x3xf32>
    %cst_6 = arith.constant dense<0xFF800000> : vector<16xf32>
    %8 = vector.multi_reduction <maximumf>, %7, %cst_6 [1] : vector<16x3xf32> to vector<16xf32>
    %9 = vector.shape_cast %8 : vector<16xf32> to vector<16x1xf32>
    %10 = vector.broadcast %9 : vector<16x1xf32> to vector<16x3xf32>
    %11 = arith.subf %7, %10 : vector<16x3xf32>
    %12 = math.exp %11 : vector<16x3xf32>
    %cst_7 = arith.constant dense<0.000000e+00> : vector<16xf32>
    %13 = vector.multi_reduction <add>, %12, %cst_7 [1] : vector<16x3xf32> to vector<16xf32>
    %14 = vector.shape_cast %13 : vector<16xf32> to vector<16x1xf32>
    %15 = tpu.reciprocal %14 {approx = true} : vector<16x1xf32> -> vector<16x1xf32>
    %16 = vector.broadcast %15 : vector<16x1xf32> to vector<16x3xf32>
    %17 = arith.mulf %12, %16 : vector<16x3xf32>
    %18 = arith.truncf %17 : vector<16x3xf32> to vector<16x3xbf16>
    %c0_8 = arith.constant 0 : index
    %c0_9 = arith.constant 0 : index
    %c0_10 = arith.constant 0 : index
    %19 = vector.load %arg4[%c0_8, %c0_9, %c0_10] : memref<1x3x65xbf16, #tpu.memory_space<vmem>>, vector<1x3x65xbf16>
    %20 = vector.shape_cast %19 : vector<1x3x65xbf16> to vector<3x65xbf16>
    %cst_11 = arith.constant dense<0.000000e+00> : vector<16x65xf32>
    %21 = tpu.matmul %18, %20, %cst_11 {dimension_numbers = #tpu.dot_dimension_numbers<[1], [0], [0], [1], [0, 0, 1, 1], [], []>} : vector<16x3xbf16>, vector<3x65xbf16>, vector<16x65xf32> -> vector<16x65xf32>
    %22 = vector.extract_strided_slice %21 {offsets = [0, 0], sizes = [16, 64], strides = [1, 1]} : vector<16x65xf32> to vector<16x64xf32>
    %23 = vector.extract_strided_slice %21 {offsets = [0, 64], sizes = [16, 1], strides = [1, 1]} : vector<16x65xf32> to vector<16x1xf32>
    %c0_12 = arith.constant 0 : index
    %c0_13 = arith.constant 0 : index
    %24 = vector.load %arg6[%c0_12, %c0_13] : memref<16x1xf32, #tpu.memory_space<vmem>>, vector<16x1xf32>
    %25 = arith.maximumf %24, %23 : vector<16x1xf32>
    %c0_14 = arith.constant 0 : index
    %c0_15 = arith.constant 0 : index
    %26 = vector.load %arg6[%c0_14, %c0_15] : memref<16x1xf32, #tpu.memory_space<vmem>>, vector<16x1xf32>
    %27 = arith.subf %26, %25 : vector<16x1xf32>
    %28 = math.exp %27 : vector<16x1xf32>
    %29 = arith.subf %23, %25 : vector<16x1xf32>
    %30 = math.exp %29 : vector<16x1xf32>
    %c0_16 = arith.constant 0 : index
    %c0_17 = arith.constant 0 : index
    %31 = vector.load %arg7[%c0_16, %c0_17] : memref<16x1xf32, #tpu.memory_space<vmem>>, vector<16x1xf32>
    %32 = arith.mulf %28, %31 : vector<16x1xf32>
    %33 = arith.addf %32, %30 : vector<16x1xf32>
    %c0_18 = arith.constant 0 : index
    %c0_19 = arith.constant 0 : index
    %34 = vector.load %arg7[%c0_18, %c0_19] : memref<16x1xf32, #tpu.memory_space<vmem>>, vector<16x1xf32>
    tpu.vector_store %arg7[%c0_18, %c0_19], %33 {strides = array<i32>} : memref<16x1xf32, #tpu.memory_space<vmem>>, vector<16x1xf32>,
    %c0_20 = arith.constant 0 : index
    %c0_21 = arith.constant 0 : index
    %35 = vector.load %arg8[%c0_20, %c0_21] : memref<16x64xf32, #tpu.memory_space<vmem>>, vector<16x64xf32>
    %36 = vector.broadcast %28 : vector<16x1xf32> to vector<16x64xf32>
    %37 = arith.mulf %36, %35 : vector<16x64xf32>
    %38 = vector.broadcast %30 : vector<16x1xf32> to vector<16x64xf32>
    %39 = arith.mulf %38, %22 : vector<16x64xf32>
    %40 = arith.addf %37, %39 : vector<16x64xf32>
    %c0_22 = arith.constant 0 : index
    %c0_23 = arith.constant 0 : index
    %41 = vector.load %arg8[%c0_22, %c0_23] : memref<16x64xf32, #tpu.memory_space<vmem>>, vector<16x64xf32>
    tpu.vector_store %arg8[%c0_22, %c0_23], %40 {strides = array<i32>} : memref<16x64xf32, #tpu.memory_space<vmem>>, vector<16x64xf32>,
    %c0_24 = arith.constant 0 : index
    %c0_25 = arith.constant 0 : index
    %42 = vector.load %arg6[%c0_24, %c0_25] : memref<16x1xf32, #tpu.memory_space<vmem>>, vector<16x1xf32>
    tpu.vector_store %arg6[%c0_24, %c0_25], %25 {strides = array<i32>} : memref<16x1xf32, #tpu.memory_space<vmem>>, vector<16x1xf32>,
    %c5_i32 = arith.constant 5 : i32
    %43 = arith.cmpi eq, %arg1, %c5_i32 : i32
    %44 = arith.extui %43 : i1 to i32
    %c0_i32_26 = arith.constant 0 : i32
    %45 = arith.cmpi ne, %44, %c0_i32_26 : i32
    scf.if %45 {
      %c0_27 = arith.constant 0 : index
      %c0_28 = arith.constant 0 : index
      %46 = vector.load %arg8[%c0_27, %c0_28] : memref<16x64xf32, #tpu.memory_space<vmem>>, vector<16x64xf32>
      %c0_29 = arith.constant 0 : index
      %c0_30 = arith.constant 0 : index
      %47 = vector.load %arg7[%c0_29, %c0_30] : memref<16x1xf32, #tpu.memory_space<vmem>>, vector<16x1xf32>
      %48 = tpu.reciprocal %47 {approx = true} : vector<16x1xf32> -> vector<16x1xf32>
      %49 = vector.broadcast %48 : vector<16x1xf32> to vector<16x64xf32>
      %50 = arith.mulf %46, %49 : vector<16x64xf32>
      %c0_31 = arith.constant 0 : index
      %c0_32 = arith.constant 0 : index
      %c0_33 = arith.constant 0 : index
      %51 = vector.load %arg5[%c0_31, %c0_32, %c0_33] : memref<1x16x64xf32, #tpu.memory_space<vmem>>, vector<1x16x64xf32>
      %52 = vector.shape_cast %51 : vector<1x16x64xf32> to vector<16x64xf32>
      %53 = vector.shape_cast %50 : vector<16x64xf32> to vector<1x16x64xf32>
      tpu.vector_store %arg5[%c0_31, %c0_32, %c0_33], %53 {strides = array<i32>} : memref<1x16x64xf32, #tpu.memory_space<vmem>>, vector<1x16x64xf32>,
    } else {
    }
    return
  }
  func.func @transform_0(%arg0: i32, %arg1: i32) -> (i32, i32, i32) {
    %c0_i32 = arith.constant 0 : i32
    %c0_i32_0 = arith.constant 0 : i32
    %c0_i32_1 = arith.constant 0 : i32
    return %arg0, %c0_i32, %c0_i32_0 : i32, i32, i32
  }
  func.func @transform_1(%arg0: i32, %arg1: i32) -> (i32, i32, i32) {
    %c0_i32 = arith.constant 0 : i32
    %c0_i32_0 = arith.constant 0 : i32
    %c0_i32_1 = arith.constant 0 : i32
    return %arg1, %c0_i32, %c0_i32_0 : i32, i32, i32
  }
  func.func @transform_2(%arg0: i32, %arg1: i32) -> (i32, i32, i32) {
    %c0_i32 = arith.constant 0 : i32
    %c0_i32_0 = arith.constant 0 : i32
    %c0_i32_1 = arith.constant 0 : i32
    return %arg1, %c0_i32, %c0_i32_0 : i32, i32, i32
  }
  func.func @transform_3(%arg0: i32, %arg1: i32) -> (i32, i32, i32) {
    %c0_i32 = arith.constant 0 : i32
    %c0_i32_0 = arith.constant 0 : i32
    %c0_i32_1 = arith.constant 0 : i32
    return %arg0, %c0_i32, %c0_i32_0 : i32, i32, i32
  }
}

module attributes {stable_mosaic.version = 11 : i64} {
  func.func @_intra_attn_kernel(%arg0: i32, %arg1: memref<1x16x16xf32, #tpu.memory_space<vmem>>, %arg2: memref<1x16x64xf32, #tpu.memory_space<vmem>>, %arg3: memref<1x16x64xf32, #tpu.memory_space<vmem>>) attributes {dimension_semantics = [#tpu.dimension_semantics<parallel>], iteration_bounds = array<i64: 2>, scalar_prefetch = 0 : i64, scratch_operands = 0 : i64, tpu.core_type = #tpu.core_type<tc>, window_params = [{transform_indices = @transform_0, window_bounds = array<i64: 1, 16, 16>}, {transform_indices = @transform_1, window_bounds = array<i64: 1, 16, 64>}, {transform_indices = @transform_2, window_bounds = array<i64: 1, 16, 64>}]} {
    %c0 = arith.constant 0 : index
    %c0_0 = arith.constant 0 : index
    %c0_1 = arith.constant 0 : index
    %0 = vector.load %arg1[%c0, %c0_0, %c0_1] : memref<1x16x16xf32, #tpu.memory_space<vmem>>, vector<1x16x16xf32>
    %1 = vector.shape_cast %0 : vector<1x16x16xf32> to vector<16x16xf32>
    %2 = arith.mulf %1, %1 : vector<16x16xf32>
    %cst = arith.constant dense<0.000000e+00> : vector<16xf32>
    %3 = vector.multi_reduction <add>, %2, %cst [1] : vector<16x16xf32> to vector<16xf32>
    %4 = vector.shape_cast %3 : vector<16xf32> to vector<16x1xf32>
    %5 = math.sqrt %4 : vector<16x1xf32>
    %cst_2 = arith.constant 9.99999996E-13 : f32
    %6 = vector.broadcast %cst_2 : f32 to vector<16x1xf32>
    %7 = arith.maximumf %5, %6 : vector<16x1xf32>
    %8 = vector.broadcast %7 : vector<16x1xf32> to vector<16x16xf32>
    %9 = arith.divf %1, %8 : vector<16x16xf32>
    %10 = arith.truncf %9 : vector<16x16xf32> to vector<16x16xbf16>
    %cst_3 = arith.constant dense<0.000000e+00> : vector<16x16xf32>
    %11 = tpu.matmul %10, %10, %cst_3 {dimension_numbers = #tpu.dot_dimension_numbers<[1], [1], [0], [0], [0, 0, 1, 0], [], []>} : vector<16x16xbf16>, vector<16x16xbf16>, vector<16x16xf32> -> vector<16x16xf32>
    %cst_4 = arith.constant dense<0xFF800000> : vector<16xf32>
    %12 = vector.multi_reduction <maximumf>, %11, %cst_4 [1] : vector<16x16xf32> to vector<16xf32>
    %13 = vector.shape_cast %12 : vector<16xf32> to vector<16x1xf32>
    %14 = vector.broadcast %13 : vector<16x1xf32> to vector<16x16xf32>
    %15 = arith.subf %11, %14 : vector<16x16xf32>
    %16 = math.exp %15 : vector<16x16xf32>
    %cst_5 = arith.constant dense<0.000000e+00> : vector<16xf32>
    %17 = vector.multi_reduction <add>, %16, %cst_5 [1] : vector<16x16xf32> to vector<16xf32>
    %18 = vector.shape_cast %17 : vector<16xf32> to vector<16x1xf32>
    %19 = tpu.reciprocal %18 {approx = true} : vector<16x1xf32> -> vector<16x1xf32>
    %20 = vector.broadcast %19 : vector<16x1xf32> to vector<16x16xf32>
    %21 = arith.mulf %16, %20 : vector<16x16xf32>
    %c0_6 = arith.constant 0 : index
    %c0_7 = arith.constant 0 : index
    %c0_8 = arith.constant 0 : index
    %22 = vector.load %arg2[%c0_6, %c0_7, %c0_8] : memref<1x16x64xf32, #tpu.memory_space<vmem>>, vector<1x16x64xf32>
    %23 = vector.shape_cast %22 : vector<1x16x64xf32> to vector<16x64xf32>
    %24 = arith.truncf %21 : vector<16x16xf32> to vector<16x16xbf16>
    %25 = arith.truncf %23 : vector<16x64xf32> to vector<16x64xbf16>
    %cst_9 = arith.constant dense<0.000000e+00> : vector<16x64xf32>
    %26 = tpu.matmul %24, %25, %cst_9 {dimension_numbers = #tpu.dot_dimension_numbers<[1], [0], [0], [1], [0, 0, 1, 1], [], []>} : vector<16x16xbf16>, vector<16x64xbf16>, vector<16x64xf32> -> vector<16x64xf32>
    %27 = arith.addf %26, %23 : vector<16x64xf32>
    %cst_10 = arith.constant 0.000000e+00 : f32
    %28 = vector.broadcast %cst_10 : f32 to vector<16x64xf32>
    %29 = arith.maximumf %27, %28 : vector<16x64xf32>
    %c0_11 = arith.constant 0 : index
    %c0_12 = arith.constant 0 : index
    %c0_13 = arith.constant 0 : index
    %30 = vector.load %arg3[%c0_11, %c0_12, %c0_13] : memref<1x16x64xf32, #tpu.memory_space<vmem>>, vector<1x16x64xf32>
    %31 = vector.shape_cast %30 : vector<1x16x64xf32> to vector<16x64xf32>
    %32 = vector.shape_cast %29 : vector<16x64xf32> to vector<1x16x64xf32>
    tpu.vector_store %arg3[%c0_11, %c0_12, %c0_13], %32 {strides = array<i32>} : memref<1x16x64xf32, #tpu.memory_space<vmem>>, vector<1x16x64xf32>,
    return
  }
  func.func @transform_0(%arg0: i32) -> (i32, i32, i32) {
    %c0_i32 = arith.constant 0 : i32
    %c0_i32_0 = arith.constant 0 : i32
    %c0_i32_1 = arith.constant 0 : i32
    return %arg0, %c0_i32, %c0_i32_0 : i32, i32, i32
  }
  func.func @transform_1(%arg0: i32) -> (i32, i32, i32) {
    %c0_i32 = arith.constant 0 : i32
    %c0_i32_0 = arith.constant 0 : i32
    %c0_i32_1 = arith.constant 0 : i32
    return %arg0, %c0_i32, %c0_i32_0 : i32, i32, i32
  }
  func.func @transform_2(%arg0: i32) -> (i32, i32, i32) {
    %c0_i32 = arith.constant 0 : i32
    %c0_i32_0 = arith.constant 0 : i32
    %c0_i32_1 = arith.constant 0 : i32
    return %arg0, %c0_i32, %c0_i32_0 : i32, i32, i32
  }
}

module attributes {stable_mosaic.version = 11 : i64} {
  func.func @_linear_kernel(%arg0: i32, %arg1: i32, %arg2: i32, %arg3: memref<32x256xbf16, #tpu.memory_space<vmem>>, %arg4: memref<256x128xbf16, #tpu.memory_space<vmem>>, %arg5: memref<1x128xf32, #tpu.memory_space<vmem>>, %arg6: memref<32x128xf32, #tpu.memory_space<vmem>>, %arg7: memref<32x128xf32, #tpu.memory_space<vmem>>) attributes {dimension_semantics = [#tpu.dimension_semantics<parallel>, #tpu.dimension_semantics<parallel>, #tpu.dimension_semantics<arbitrary>], iteration_bounds = array<i64: 1, 1, 1>, scalar_prefetch = 0 : i64, scratch_operands = 1 : i64, tpu.core_type = #tpu.core_type<tc>, window_params = [{transform_indices = @transform_0, window_bounds = array<i64: 32, 256>}, {transform_indices = @transform_1, window_bounds = array<i64: 256, 128>}, {transform_indices = @transform_2, window_bounds = array<i64: 1, 128>}, {transform_indices = @transform_3, window_bounds = array<i64: 32, 128>}]} {
    %c0_i32 = arith.constant 0 : i32
    %0 = arith.cmpi eq, %arg2, %c0_i32 : i32
    %1 = arith.extui %0 : i1 to i32
    %c0_i32_0 = arith.constant 0 : i32
    %2 = arith.cmpi ne, %1, %c0_i32_0 : i32
    scf.if %2 {
      %cst_10 = arith.constant 0.000000e+00 : f32
      %12 = vector.broadcast %cst_10 : f32 to vector<32x128xf32>
      %c0_11 = arith.constant 0 : index
      %c0_12 = arith.constant 0 : index
      %13 = vector.load %arg7[%c0_11, %c0_12] : memref<32x128xf32, #tpu.memory_space<vmem>>, vector<32x128xf32>
      tpu.vector_store %arg7[%c0_11, %c0_12], %12 {strides = array<i32>} : memref<32x128xf32, #tpu.memory_space<vmem>>, vector<32x128xf32>,
    } else {
    }
    %c0 = arith.constant 0 : index
    %c0_1 = arith.constant 0 : index
    %3 = vector.load %arg7[%c0, %c0_1] : memref<32x128xf32, #tpu.memory_space<vmem>>, vector<32x128xf32>
    %c0_2 = arith.constant 0 : index
    %c0_3 = arith.constant 0 : index
    %4 = vector.load %arg3[%c0_2, %c0_3] : memref<32x256xbf16, #tpu.memory_space<vmem>>, vector<32x256xbf16>
    %c0_4 = arith.constant 0 : index
    %c0_5 = arith.constant 0 : index
    %5 = vector.load %arg4[%c0_4, %c0_5] : memref<256x128xbf16, #tpu.memory_space<vmem>>, vector<256x128xbf16>
    %cst = arith.constant dense<0.000000e+00> : vector<32x128xf32>
    %6 = tpu.matmul %4, %5, %cst {dimension_numbers = #tpu.dot_dimension_numbers<[1], [0], [0], [1], [0, 0, 1, 1], [], []>} : vector<32x256xbf16>, vector<256x128xbf16>, vector<32x128xf32> -> vector<32x128xf32>
    %7 = arith.addf %3, %6 : vector<32x128xf32>
    %c0_6 = arith.constant 0 : index
    %c0_7 = arith.constant 0 : index
    %8 = vector.load %arg7[%c0_6, %c0_7] : memref<32x128xf32, #tpu.memory_space<vmem>>, vector<32x128xf32>
    tpu.vector_store %arg7[%c0_6, %c0_7], %7 {strides = array<i32>} : memref<32x128xf32, #tpu.memory_space<vmem>>, vector<32x128xf32>,
    %c0_i32_8 = arith.constant 0 : i32
    %9 = arith.cmpi eq, %arg2, %c0_i32_8 : i32
    %10 = arith.extui %9 : i1 to i32
    %c0_i32_9 = arith.constant 0 : i32
    %11 = arith.cmpi ne, %10, %c0_i32_9 : i32
    scf.if %11 {
      %c0_10 = arith.constant 0 : index
      %c0_11 = arith.constant 0 : index
      %12 = vector.load %arg7[%c0_10, %c0_11] : memref<32x128xf32, #tpu.memory_space<vmem>>, vector<32x128xf32>
      %c0_12 = arith.constant 0 : index
      %c0_13 = arith.constant 0 : index
      %13 = vector.load %arg5[%c0_12, %c0_13] : memref<1x128xf32, #tpu.memory_space<vmem>>, vector<1x128xf32>
      %14 = vector.broadcast %13 : vector<1x128xf32> to vector<32x128xf32>
      %15 = arith.addf %12, %14 : vector<32x128xf32>
      %cst_14 = arith.constant 0.000000e+00 : f32
      %16 = vector.broadcast %cst_14 : f32 to vector<32x128xf32>
      %17 = arith.cmpf oge, %15, %16 : vector<32x128xf32>
      %cst_15 = arith.constant 2.000000e-01 : f32
      %18 = vector.broadcast %cst_15 : f32 to vector<32x128xf32>
      %19 = arith.mulf %18, %15 : vector<32x128xf32>
      %20 = arith.select %17, %15, %19 : vector<32x128xi1>, vector<32x128xf32>
      %c0_16 = arith.constant 0 : index
      %c0_17 = arith.constant 0 : index
      %21 = vector.load %arg6[%c0_16, %c0_17] : memref<32x128xf32, #tpu.memory_space<vmem>>, vector<32x128xf32>
      tpu.vector_store %arg6[%c0_16, %c0_17], %20 {strides = array<i32>} : memref<32x128xf32, #tpu.memory_space<vmem>>, vector<32x128xf32>,
    } else {
    }
    return
  }
  func.func @transform_0(%arg0: i32, %arg1: i32, %arg2: i32) -> (i32, i32) {
    %c0_i32 = arith.constant 0 : i32
    return %arg0, %arg2 : i32, i32
  }
  func.func @transform_1(%arg0: i32, %arg1: i32, %arg2: i32) -> (i32, i32) {
    %c0_i32 = arith.constant 0 : i32
    return %arg2, %arg1 : i32, i32
  }
  func.func @transform_2(%arg0: i32, %arg1: i32, %arg2: i32) -> (i32, i32) {
    %c0_i32 = arith.constant 0 : i32
    %c0_i32_0 = arith.constant 0 : i32
    return %c0_i32, %arg1 : i32, i32
  }
  func.func @transform_3(%arg0: i32, %arg1: i32, %arg2: i32) -> (i32, i32) {
    %c0_i32 = arith.constant 0 : i32
    return %arg0, %arg1 : i32, i32
  }
}

module attributes {stable_mosaic.version = 11 : i64} {
  func.func @_linear_kernel(%arg0: i32, %arg1: i32, %arg2: i32, %arg3: memref<32x384xbf16, #tpu.memory_space<vmem>>, %arg4: memref<384x128xbf16, #tpu.memory_space<vmem>>, %arg5: memref<1x128xf32, #tpu.memory_space<vmem>>, %arg6: memref<32x128xf32, #tpu.memory_space<vmem>>, %arg7: memref<32x128xf32, #tpu.memory_space<vmem>>) attributes {dimension_semantics = [#tpu.dimension_semantics<parallel>, #tpu.dimension_semantics<parallel>, #tpu.dimension_semantics<arbitrary>], iteration_bounds = array<i64: 1, 1, 1>, scalar_prefetch = 0 : i64, scratch_operands = 1 : i64, tpu.core_type = #tpu.core_type<tc>, window_params = [{transform_indices = @transform_0, window_bounds = array<i64: 32, 384>}, {transform_indices = @transform_1, window_bounds = array<i64: 384, 128>}, {transform_indices = @transform_2, window_bounds = array<i64: 1, 128>}, {transform_indices = @transform_3, window_bounds = array<i64: 32, 128>}]} {
    %c0_i32 = arith.constant 0 : i32
    %0 = arith.cmpi eq, %arg2, %c0_i32 : i32
    %1 = arith.extui %0 : i1 to i32
    %c0_i32_0 = arith.constant 0 : i32
    %2 = arith.cmpi ne, %1, %c0_i32_0 : i32
    scf.if %2 {
      %cst_10 = arith.constant 0.000000e+00 : f32
      %12 = vector.broadcast %cst_10 : f32 to vector<32x128xf32>
      %c0_11 = arith.constant 0 : index
      %c0_12 = arith.constant 0 : index
      %13 = vector.load %arg7[%c0_11, %c0_12] : memref<32x128xf32, #tpu.memory_space<vmem>>, vector<32x128xf32>
      tpu.vector_store %arg7[%c0_11, %c0_12], %12 {strides = array<i32>} : memref<32x128xf32, #tpu.memory_space<vmem>>, vector<32x128xf32>,
    } else {
    }
    %c0 = arith.constant 0 : index
    %c0_1 = arith.constant 0 : index
    %3 = vector.load %arg7[%c0, %c0_1] : memref<32x128xf32, #tpu.memory_space<vmem>>, vector<32x128xf32>
    %c0_2 = arith.constant 0 : index
    %c0_3 = arith.constant 0 : index
    %4 = vector.load %arg3[%c0_2, %c0_3] : memref<32x384xbf16, #tpu.memory_space<vmem>>, vector<32x384xbf16>
    %c0_4 = arith.constant 0 : index
    %c0_5 = arith.constant 0 : index
    %5 = vector.load %arg4[%c0_4, %c0_5] : memref<384x128xbf16, #tpu.memory_space<vmem>>, vector<384x128xbf16>
    %cst = arith.constant dense<0.000000e+00> : vector<32x128xf32>
    %6 = tpu.matmul %4, %5, %cst {dimension_numbers = #tpu.dot_dimension_numbers<[1], [0], [0], [1], [0, 0, 1, 1], [], []>} : vector<32x384xbf16>, vector<384x128xbf16>, vector<32x128xf32> -> vector<32x128xf32>
    %7 = arith.addf %3, %6 : vector<32x128xf32>
    %c0_6 = arith.constant 0 : index
    %c0_7 = arith.constant 0 : index
    %8 = vector.load %arg7[%c0_6, %c0_7] : memref<32x128xf32, #tpu.memory_space<vmem>>, vector<32x128xf32>
    tpu.vector_store %arg7[%c0_6, %c0_7], %7 {strides = array<i32>} : memref<32x128xf32, #tpu.memory_space<vmem>>, vector<32x128xf32>,
    %c0_i32_8 = arith.constant 0 : i32
    %9 = arith.cmpi eq, %arg2, %c0_i32_8 : i32
    %10 = arith.extui %9 : i1 to i32
    %c0_i32_9 = arith.constant 0 : i32
    %11 = arith.cmpi ne, %10, %c0_i32_9 : i32
    scf.if %11 {
      %c0_10 = arith.constant 0 : index
      %c0_11 = arith.constant 0 : index
      %12 = vector.load %arg7[%c0_10, %c0_11] : memref<32x128xf32, #tpu.memory_space<vmem>>, vector<32x128xf32>
      %c0_12 = arith.constant 0 : index
      %c0_13 = arith.constant 0 : index
      %13 = vector.load %arg5[%c0_12, %c0_13] : memref<1x128xf32, #tpu.memory_space<vmem>>, vector<1x128xf32>
      %14 = vector.broadcast %13 : vector<1x128xf32> to vector<32x128xf32>
      %15 = arith.addf %12, %14 : vector<32x128xf32>
      %cst_14 = arith.constant 0.000000e+00 : f32
      %16 = vector.broadcast %cst_14 : f32 to vector<32x128xf32>
      %17 = arith.cmpf oge, %15, %16 : vector<32x128xf32>
      %cst_15 = arith.constant 2.000000e-01 : f32
      %18 = vector.broadcast %cst_15 : f32 to vector<32x128xf32>
      %19 = arith.mulf %18, %15 : vector<32x128xf32>
      %20 = arith.select %17, %15, %19 : vector<32x128xi1>, vector<32x128xf32>
      %c0_16 = arith.constant 0 : index
      %c0_17 = arith.constant 0 : index
      %21 = vector.load %arg6[%c0_16, %c0_17] : memref<32x128xf32, #tpu.memory_space<vmem>>, vector<32x128xf32>
      tpu.vector_store %arg6[%c0_16, %c0_17], %20 {strides = array<i32>} : memref<32x128xf32, #tpu.memory_space<vmem>>, vector<32x128xf32>,
    } else {
    }
    return
  }
  func.func @transform_0(%arg0: i32, %arg1: i32, %arg2: i32) -> (i32, i32) {
    %c0_i32 = arith.constant 0 : i32
    return %arg0, %arg2 : i32, i32
  }
  func.func @transform_1(%arg0: i32, %arg1: i32, %arg2: i32) -> (i32, i32) {
    %c0_i32 = arith.constant 0 : i32
    return %arg2, %arg1 : i32, i32
  }
  func.func @transform_2(%arg0: i32, %arg1: i32, %arg2: i32) -> (i32, i32) {
    %c0_i32 = arith.constant 0 : i32
    %c0_i32_0 = arith.constant 0 : i32
    return %c0_i32, %arg1 : i32, i32
  }
  func.func @transform_3(%arg0: i32, %arg1: i32, %arg2: i32) -> (i32, i32) {
    %c0_i32 = arith.constant 0 : i32
    return %arg0, %arg1 : i32, i32
  }
}

module attributes {stable_mosaic.version = 11 : i64} {
  func.func @_pool_kernel(%arg0: i32, %arg1: memref<1x20x21xf32, #tpu.memory_space<vmem>>, %arg2: memref<1x16x21xf32, #tpu.memory_space<vmem>>) attributes {dimension_semantics = [#tpu.dimension_semantics<parallel>], iteration_bounds = array<i64: 2>, scalar_prefetch = 0 : i64, scratch_operands = 0 : i64, tpu.core_type = #tpu.core_type<tc>, window_params = [{transform_indices = @transform_0, window_bounds = array<i64: 1, 20, 21>}, {transform_indices = @transform_1, window_bounds = array<i64: 1, 16, 21>}]} {
    %c0 = arith.constant 0 : index
    %c0_0 = arith.constant 0 : index
    %c0_1 = arith.constant 0 : index
    %0 = vector.load %arg1[%c0, %c0_0, %c0_1] : memref<1x20x21xf32, #tpu.memory_space<vmem>>, vector<1x20x21xf32>
    %1 = vector.shape_cast %0 : vector<1x20x21xf32> to vector<20x21xf32>
    %2 = vector.extract_strided_slice %1 {offsets = [0, 0], sizes = [16, 21], strides = [1, 1]} : vector<20x21xf32> to vector<16x21xf32>
    %3 = vector.extract_strided_slice %1 {offsets = [1, 0], sizes = [16, 21], strides = [1, 1]} : vector<20x21xf32> to vector<16x21xf32>
    %4 = arith.addf %2, %3 : vector<16x21xf32>
    %5 = vector.extract_strided_slice %1 {offsets = [2, 0], sizes = [16, 21], strides = [1, 1]} : vector<20x21xf32> to vector<16x21xf32>
    %6 = arith.addf %4, %5 : vector<16x21xf32>
    %7 = vector.extract_strided_slice %1 {offsets = [3, 0], sizes = [16, 21], strides = [1, 1]} : vector<20x21xf32> to vector<16x21xf32>
    %8 = arith.addf %6, %7 : vector<16x21xf32>
    %9 = vector.extract_strided_slice %1 {offsets = [4, 0], sizes = [16, 21], strides = [1, 1]} : vector<20x21xf32> to vector<16x21xf32>
    %10 = arith.addf %8, %9 : vector<16x21xf32>
    %cst = arith.constant 2.000000e-01 : f32
    %11 = vector.broadcast %cst : f32 to vector<16x21xf32>
    %12 = arith.mulf %10, %11 : vector<16x21xf32>
    %c0_2 = arith.constant 0 : index
    %c0_3 = arith.constant 0 : index
    %c0_4 = arith.constant 0 : index
    %13 = vector.load %arg2[%c0_2, %c0_3, %c0_4] : memref<1x16x21xf32, #tpu.memory_space<vmem>>, vector<1x16x21xf32>
    %14 = vector.shape_cast %13 : vector<1x16x21xf32> to vector<16x21xf32>
    %15 = vector.shape_cast %12 : vector<16x21xf32> to vector<1x16x21xf32>
    tpu.vector_store %arg2[%c0_2, %c0_3, %c0_4], %15 {strides = array<i32>} : memref<1x16x21xf32, #tpu.memory_space<vmem>>, vector<1x16x21xf32>,
    return
  }
  func.func @transform_0(%arg0: i32) -> (i32, i32, i32) {
    %c0_i32 = arith.constant 0 : i32
    %c0_i32_0 = arith.constant 0 : i32
    %c0_i32_1 = arith.constant 0 : i32
    return %arg0, %c0_i32, %c0_i32_0 : i32, i32, i32
  }
  func.func @transform_1(%arg0: i32) -> (i32, i32, i32) {
    %c0_i32 = arith.constant 0 : i32
    %c0_i32_0 = arith.constant 0 : i32
    %c0_i32_1 = arith.constant 0 : i32
    return %arg0, %c0_i32, %c0_i32_0 : i32, i32, i32
  }
}

</mosaic_0001>

<llo_original>
// kernel: stcl_act_forward.22
$region0: #{stcl_act_forward.22}
  #allocation0 [shape = 'u32[]', space=smem, size = 0x4, offset = 0x4, fixed_abs, tag = 'smem constant byte address 0x4 - core index']
  #allocation1 [shape = 'u32[72,128]{1,0:T(1,128)}', space=vmem, size = 0x9000, scoped, tag = 'internal scratch']
  #allocation2 [shape = 'f32[32,128]{1,0:T(8,128)}', space=vmem, size = 0x4000, scoped, tag = 'scratch operand']
  %s0 = inlined_call_operand.vmem [shape: bf16[32,128], index: 0, kind: input, shape index: {}]
  %s1 = inlined_call_operand.vmem [shape: bf16[128,128], index: 1, kind: input, shape index: {}]
  %s2 = inlined_call_operand.vmem [shape: f32[1,128], index: 2, kind: input, shape index: {}]
  %s3 = inlined_call_operand.vmem [shape: f32[32,128], index: 3, kind: output, shape index: {}]
  %s4 = sld [smem:[#allocation0]]
  $region30: #{stcl_act_forward.22} parent=0
    _
  %s6 = ssub.s32 1, %s4
  %s7 = scalar_select 0, %s6, %s4
  // Predicated region
  $region2: #{stcl_act_forward.22} parent=0 // pred_check
    _
  $region3: #{stcl_act_forward.22} parent=0 // pred_check_branch
    %9 = sbr.rel (0) target = $region5
  $region4: #{stcl_act_forward.22} parent=0 // pred_region
    _
  $region5: #{stcl_act_forward.22} parent=0 // pred_fallthru
    _
  // Predicated region
  $region6: #{stcl_act_forward.22} parent=0 // pred_check
    _
  $region7: #{stcl_act_forward.22} parent=0 // pred_check_branch
    %11 = sbr.rel (0) target = $region9
  $region8: #{stcl_act_forward.22} parent=0 // pred_region
    _
  $region9: #{stcl_act_forward.22} parent=0 // pred_fallthru
    _
  // Predicated region
  $region10: #{stcl_act_forward.22} parent=0 // pred_check
    _
  $region11: #{stcl_act_forward.22} parent=0 // pred_check_branch
    %13 = sbr.rel (0) target = $region13
  $region12: #{stcl_act_forward.22} parent=0 // pred_region
    _
  $region13: #{stcl_act_forward.22} parent=0 // pred_fallthru
    _
  %p14 = scmp.eq.s32.totalorder 0, 0
  // Predicated region
  $region14: #{stcl_act_forward.22} parent=0 // pred_check
    %p15 = pneg %p14
  $region15: #{stcl_act_forward.22} parent=0 // pred_check_branch
    %17 = sbr.rel (%p15) target = $region17
  $region16: #{stcl_act_forward.22} parent=0 // pred_region
    %18 = vst [vmem:[#allocation2] sm:$0xff] 0.0
    %19 = vst [vmem:[#allocation2 + $0x8] sm:$0xff] 0.0
    %20 = vst [vmem:[#allocation2 + $0x10] sm:$0xff] 0.0
    %21 = vst [vmem:[#allocation2 + $0x18] sm:$0xff] 0.0
  $region17: #{stcl_act_forward.22} parent=0 // pred_fallthru
    _
  %v22 = vld [vmem:[#allocation2] sm:$0xff]
  %v23 = vld [vmem:[#allocation2 + $0x8] sm:$0xff]
  %v24 = vld [vmem:[#allocation2 + $0x10] sm:$0xff]
  %v25 = vld [vmem:[#allocation2 + $0x18] sm:$0xff]
  %v26 = vld [vmem:[%s0] sm:$0xf]
  %v27 = vld [vmem:[%s0 + $0x4] sm:$0xf]
  %v28 = vld [vmem:[%s0 + $0x8] sm:$0xf]
  %v29 = vld [vmem:[%s0 + $0xc] sm:$0xf]
  %v30 = vld [vmem:[%s1] sm:$0xf]
  %v31 = vld [vmem:[%s1 + $0x4] sm:$0xf]
  %v32 = vld [vmem:[%s1 + $0x8] sm:$0xf]
  %v33 = vld [vmem:[%s1 + $0xc] sm:$0xf]
  %v34 = vld [vmem:[%s1 + $0x10] sm:$0xf]
  %v35 = vld [vmem:[%s1 + $0x14] sm:$0xf]
  %v36 = vld [vmem:[%s1 + $0x18] sm:$0xf]
  %v37 = vld [vmem:[%s1 + $0x1c] sm:$0xf]
  %v38 = vld [vmem:[%s1 + $0x20] sm:$0xf]
  %v39 = vld [vmem:[%s1 + $0x24] sm:$0xf]
  %v40 = vld [vmem:[%s1 + $0x28] sm:$0xf]
  %v41 = vld [vmem:[%s1 + $0x2c] sm:$0xf]
  %v42 = vld [vmem:[%s1 + $0x30] sm:$0xf]
  %v43 = vld [vmem:[%s1 + $0x34] sm:$0xf]
  %v44 = vld [vmem:[%s1 + $0x38] sm:$0xf]
  %v45 = vld [vmem:[%s1 + $0x3c] sm:$0xf]
  %v50 = vunpack.c.l.b16 %v26
  %v51 = vunpack.c.l.b16 %v27
  %v52 = vunpack.c.l.b16 %v28
  %v53 = vunpack.c.l.b16 %v29
  %v54 = vpack.c.b16 %v51, %v50
  %v55 = vpack.c.b16 %v53, %v52
  %v74 = vunpack.c.l.b16 %v30
  %v75 = vunpack.c.l.b16 %v31
  %v76 = vunpack.c.l.b16 %v32
  %v77 = vunpack.c.l.b16 %v33
  %v78 = vunpack.c.l.b16 %v34
  %v79 = vunpack.c.l.b16 %v35
  %v80 = vunpack.c.l.b16 %v36
  %v81 = vunpack.c.l.b16 %v37
  %v82 = vunpack.c.l.b16 %v38
  %v83 = vunpack.c.l.b16 %v39
  %v84 = vunpack.c.l.b16 %v40
  %v85 = vunpack.c.l.b16 %v41
  %v86 = vunpack.c.l.b16 %v42
  %v87 = vunpack.c.l.b16 %v43
  %v88 = vunpack.c.l.b16 %v44
  %v89 = vunpack.c.l.b16 %v45
  %v90 = vpack.c.b16 %v75, %v74
  %v91 = vpack.c.b16 %v77, %v76
  %v92 = vpack.c.b16 %v79, %v78
  %v93 = vpack.c.b16 %v81, %v80
  %v94 = vpack.c.b16 %v83, %v82
  %v95 = vpack.c.b16 %v85, %v84
  %v96 = vpack.c.b16 %v87, %v86
  %v97 = vpack.c.b16 %v89, %v88
  %106 = vmatpush.bf16.msra.mxu0 %v97
  %107 = vmatpush.bf16.msra.mxu0 %v96
  %108 = vmatpush.bf16.msra.mxu0 %v95
  %109 = vmatpush.bf16.msra.mxu0 %v94
  %110 = vmatpush.bf16.msra.mxu0 %v93
  %111 = vmatpush.bf16.msra.mxu0 %v92
  %112 = vmatpush.bf16.msra.mxu0 %v91
  %113 = vmatpush.bf16.msra.mxu0 %v90
  %114 = vmatmul.bf16.gmra.mxu0 %v54
  %v115 = vpop.f32.mrf.mxu0
  %v116 = vadd.f32 0.0, %v115
  %v117 = vpop.f32.mrf.mxu0
  %v118 = vadd.f32 0.0, %v117
  %119 = vmatmul.bf16.gmra.mxu0 %v55
  %v120 = vpop.f32.mrf.mxu0
  %v121 = vadd.f32 0.0, %v120
  %v122 = vpop.f32.mrf.mxu0
  %v123 = vadd.f32 0.0, %v122
  %124 = vdwg.mxu0
  %v125 = vadd.f32 %v22, %v116
  %v126 = vadd.f32 %v23, %v118
  %v127 = vadd.f32 %v24, %v121
  %v128 = vadd.f32 %v25, %v123
  %129 = vst [vmem:[#allocation2] sm:$0xff] %v125
  %130 = vst [vmem:[#allocation2 + $0x8] sm:$0xff] %v126
  %131 = vst [vmem:[#allocation2 + $0x10] sm:$0xff] %v127
  %132 = vst [vmem:[#allocation2 + $0x18] sm:$0xff] %v128
  // Predicated region
  $region18: #{stcl_act_forward.22} parent=0 // pred_check
    %p133 = pneg %p14
  $region19: #{stcl_act_forward.22} parent=0 // pred_check_branch
    %135 = sbr.rel (%p133) target = $region21
  $region20: #{stcl_act_forward.22} parent=0 // pred_region
    %v136 = vld [vmem:[#allocation2] sm:$0xff]
    %v137 = vld [vmem:[#allocation2 + $0x8] sm:$0xff]
    %v138 = vld [vmem:[#allocation2 + $0x10] sm:$0xff]
    %v139 = vld [vmem:[#allocation2 + $0x18] sm:$0xff]
    %v140 = vld [vmem:[%s2] sm:$0x1]
    %v142 = vperm.slane %v140, 0
    %v144 = vadd.f32 %v136, %v142
    %v145 = vadd.f32 %v137, %v142
    %v146 = vadd.f32 %v138, %v142
    %v147 = vadd.f32 %v139, %v142
    %vm148 = vcmp.ge.f32.partialorder %v144, 0.0
    %vm149 = vcmp.ge.f32.partialorder %v145, 0.0
    %vm150 = vcmp.ge.f32.partialorder %v146, 0.0
    %vm151 = vcmp.ge.f32.partialorder %v147, 0.0
    %v152 = vmul.f32 %v144, 0.2
    %v153 = vmul.f32 %v145, 0.2
    %v154 = vmul.f32 %v146, 0.2
    %v155 = vmul.f32 %v147, 0.2
    %v156 = vsel %vm148, %v144, %v152
    %v157 = vsel %vm149, %v145, %v153
    %v158 = vsel %vm150, %v146, %v154
    %v159 = vsel %vm151, %v147, %v155
    %160 = vst [vmem:[%s3] sm:$0xff] %v156
    %161 = vst [vmem:[%s3 + $0x8] sm:$0xff] %v157
    %162 = vst [vmem:[%s3 + $0x10] sm:$0xff] %v158
    %163 = vst [vmem:[%s3 + $0x18] sm:$0xff] %v159
  $region21: #{stcl_act_forward.22} parent=0 // pred_fallthru
    _
  // Predicated region
  $region22: #{stcl_act_forward.22} parent=0 // pred_check
    _
  $region23: #{stcl_act_forward.22} parent=0 // pred_check_branch
    %165 = sbr.rel (0) target = $region25
  $region24: #{stcl_act_forward.22} parent=0 // pred_region
    _
  $region25: #{stcl_act_forward.22} parent=0 // pred_fallthru
    _
  // Predicated region
  $region26: #{stcl_act_forward.22} parent=0 // pred_check
    _
  $region27: #{stcl_act_forward.22} parent=0 // pred_check_branch
    %167 = sbr.rel (0) target = $region29
  $region28: #{stcl_act_forward.22} parent=0 // pred_region
    _
  $region29: #{stcl_act_forward.22} parent=0 // pred_fallthru
    _

// kernel: stcl_act_forward.21
$region0: #{stcl_act_forward.21}
  #allocation0 [shape = 'u32[]', space=smem, size = 0x4, offset = 0x4, fixed_abs, tag = 'smem constant byte address 0x4 - core index']
  #allocation1 [shape = 'u32[72,128]{1,0:T(1,128)}', space=vmem, size = 0x9000, scoped, tag = 'internal scratch']
  #allocation2 [shape = 'f32[32,128]{1,0:T(8,128)}', space=vmem, size = 0x4000, scoped, tag = 'scratch operand']
  %s0 = inlined_call_operand.vmem [shape: bf16[32,128], index: 0, kind: input, shape index: {}]
  %s1 = inlined_call_operand.vmem [shape: bf16[128,128], index: 1, kind: input, shape index: {}]
  %s2 = inlined_call_operand.vmem [shape: f32[1,128], index: 2, kind: input, shape index: {}]
  %s3 = inlined_call_operand.vmem [shape: f32[32,128], index: 3, kind: output, shape index: {}]
  %s4 = sld [smem:[#allocation0]]
  $region30: #{stcl_act_forward.21} parent=0
    _
  %s6 = ssub.s32 1, %s4
  %s7 = scalar_select 0, %s6, %s4
  // Predicated region
  $region2: #{stcl_act_forward.21} parent=0 // pred_check
    _
  $region3: #{stcl_act_forward.21} parent=0 // pred_check_branch
    %9 = sbr.rel (0) target = $region5
  $region4: #{stcl_act_forward.21} parent=0 // pred_region
    _
  $region5: #{stcl_act_forward.21} parent=0 // pred_fallthru
    _
  // Predicated region
  $region6: #{stcl_act_forward.21} parent=0 // pred_check
    _
  $region7: #{stcl_act_forward.21} parent=0 // pred_check_branch
    %11 = sbr.rel (0) target = $region9
  $region8: #{stcl_act_forward.21} parent=0 // pred_region
    _
  $region9: #{stcl_act_forward.21} parent=0 // pred_fallthru
    _
  // Predicated region
  $region10: #{stcl_act_forward.21} parent=0 // pred_check
    _
  $region11: #{stcl_act_forward.21} parent=0 // pred_check_branch
    %13 = sbr.rel (0) target = $region13
  $region12: #{stcl_act_forward.21} parent=0 // pred_region
    _
  $region13: #{stcl_act_forward.21} parent=0 // pred_fallthru
    _
  %p14 = scmp.eq.s32.totalorder 0, 0
  // Predicated region
  $region14: #{stcl_act_forward.21} parent=0 // pred_check
    %p15 = pneg %p14
  $region15: #{stcl_act_forward.21} parent=0 // pred_check_branch
    %17 = sbr.rel (%p15) target = $region17
  $region16: #{stcl_act_forward.21} parent=0 // pred_region
    %18 = vst [vmem:[#allocation2] sm:$0xff] 0.0
    %19 = vst [vmem:[#allocation2 + $0x8] sm:$0xff] 0.0
    %20 = vst [vmem:[#allocation2 + $0x10] sm:$0xff] 0.0
    %21 = vst [vmem:[#allocation2 + $0x18] sm:$0xff] 0.0
  $region17: #{stcl_act_forward.21} parent=0 // pred_fallthru
    _
  %v22 = vld [vmem:[#allocation2] sm:$0xff]
  %v23 = vld [vmem:[#allocation2 + $0x8] sm:$0xff]
  %v24 = vld [vmem:[#allocation2 + $0x10] sm:$0xff]
  %v25 = vld [vmem:[#allocation2 + $0x18] sm:$0xff]
  %v26 = vld [vmem:[%s0] sm:$0xf]
  %v27 = vld [vmem:[%s0 + $0x4] sm:$0xf]
  %v28 = vld [vmem:[%s0 + $0x8] sm:$0xf]
  %v29 = vld [vmem:[%s0 + $0xc] sm:$0xf]
  %v30 = vld [vmem:[%s1] sm:$0xf]
  %v31 = vld [vmem:[%s1 + $0x4] sm:$0xf]
  %v32 = vld [vmem:[%s1 + $0x8] sm:$0xf]
  %v33 = vld [vmem:[%s1 + $0xc] sm:$0xf]
  %v34 = vld [vmem:[%s1 + $0x10] sm:$0xf]
  %v35 = vld [vmem:[%s1 + $0x14] sm:$0xf]
  %v36 = vld [vmem:[%s1 + $0x18] sm:$0xf]
  %v37 = vld [vmem:[%s1 + $0x1c] sm:$0xf]
  %v38 = vld [vmem:[%s1 + $0x20] sm:$0xf]
  %v39 = vld [vmem:[%s1 + $0x24] sm:$0xf]
  %v40 = vld [vmem:[%s1 + $0x28] sm:$0xf]
  %v41 = vld [vmem:[%s1 + $0x2c] sm:$0xf]
  %v42 = vld [vmem:[%s1 + $0x30] sm:$0xf]
  %v43 = vld [vmem:[%s1 + $0x34] sm:$0xf]
  %v44 = vld [vmem:[%s1 + $0x38] sm:$0xf]
  %v45 = vld [vmem:[%s1 + $0x3c] sm:$0xf]
  %v50 = vunpack.c.l.b16 %v26
  %v51 = vunpack.c.l.b16 %v27
  %v52 = vunpack.c.l.b16 %v28
  %v53 = vunpack.c.l.b16 %v29
  %v54 = vpack.c.b16 %v51, %v50
  %v55 = vpack.c.b16 %v53, %v52
  %v74 = vunpack.c.l.b16 %v30
  %v75 = vunpack.c.l.b16 %v31
  %v76 = vunpack.c.l.b16 %v32
  %v77 = vunpack.c.l.b16 %v33
  %v78 = vunpack.c.l.b16 %v34
  %v79 = vunpack.c.l.b16 %v35
  %v80 = vunpack.c.l.b16 %v36
  %v81 = vunpack.c.l.b16 %v37
  %v82 = vunpack.c.l.b16 %v38
  %v83 = vunpack.c.l.b16 %v39
  %v84 = vunpack.c.l.b16 %v40
  %v85 = vunpack.c.l.b16 %v41
  %v86 = vunpack.c.l.b16 %v42
  %v87 = vunpack.c.l.b16 %v43
  %v88 = vunpack.c.l.b16 %v44
  %v89 = vunpack.c.l.b16 %v45
  %v90 = vpack.c.b16 %v75, %v74
  %v91 = vpack.c.b16 %v77, %v76
  %v92 = vpack.c.b16 %v79, %v78
  %v93 = vpack.c.b16 %v81, %v80
  %v94 = vpack.c.b16 %v83, %v82
  %v95 = vpack.c.b16 %v85, %v84
  %v96 = vpack.c.b16 %v87, %v86
  %v97 = vpack.c.b16 %v89, %v88
  %106 = vmatpush.bf16.msra.mxu0 %v97
  %107 = vmatpush.bf16.msra.mxu0 %v96
  %108 = vmatpush.bf16.msra.mxu0 %v95
  %109 = vmatpush.bf16.msra.mxu0 %v94
  %110 = vmatpush.bf16.msra.mxu0 %v93
  %111 = vmatpush.bf16.msra.mxu0 %v92
  %112 = vmatpush.bf16.msra.mxu0 %v91
  %113 = vmatpush.bf16.msra.mxu0 %v90
  %114 = vmatmul.bf16.gmra.mxu0 %v54
  %v115 = vpop.f32.mrf.mxu0
  %v116 = vadd.f32 0.0, %v115
  %v117 = vpop.f32.mrf.mxu0
  %v118 = vadd.f32 0.0, %v117
  %119 = vmatmul.bf16.gmra.mxu0 %v55
  %v120 = vpop.f32.mrf.mxu0
  %v121 = vadd.f32 0.0, %v120
  %v122 = vpop.f32.mrf.mxu0
  %v123 = vadd.f32 0.0, %v122
  %124 = vdwg.mxu0
  %v125 = vadd.f32 %v22, %v116
  %v126 = vadd.f32 %v23, %v118
  %v127 = vadd.f32 %v24, %v121
  %v128 = vadd.f32 %v25, %v123
  %129 = vst [vmem:[#allocation2] sm:$0xff] %v125
  %130 = vst [vmem:[#allocation2 + $0x8] sm:$0xff] %v126
  %131 = vst [vmem:[#allocation2 + $0x10] sm:$0xff] %v127
  %132 = vst [vmem:[#allocation2 + $0x18] sm:$0xff] %v128
  // Predicated region
  $region18: #{stcl_act_forward.21} parent=0 // pred_check
    %p133 = pneg %p14
  $region19: #{stcl_act_forward.21} parent=0 // pred_check_branch
    %135 = sbr.rel (%p133) target = $region21
  $region20: #{stcl_act_forward.21} parent=0 // pred_region
    %v136 = vld [vmem:[#allocation2] sm:$0xff]
    %v137 = vld [vmem:[#allocation2 + $0x8] sm:$0xff]
    %v138 = vld [vmem:[#allocation2 + $0x10] sm:$0xff]
    %v139 = vld [vmem:[#allocation2 + $0x18] sm:$0xff]
    %v140 = vld [vmem:[%s2] sm:$0x1]
    %v142 = vperm.slane %v140, 0
    %v144 = vadd.f32 %v136, %v142
    %v145 = vadd.f32 %v137, %v142
    %v146 = vadd.f32 %v138, %v142
    %v147 = vadd.f32 %v139, %v142
    %148 = vst [vmem:[%s3] sm:$0xff] %v144
    %149 = vst [vmem:[%s3 + $0x8] sm:$0xff] %v145
    %150 = vst [vmem:[%s3 + $0x10] sm:$0xff] %v146
    %151 = vst [vmem:[%s3 + $0x18] sm:$0xff] %v147
  $region21: #{stcl_act_forward.21} parent=0 // pred_fallthru
    _
  // Predicated region
  $region22: #{stcl_act_forward.21} parent=0 // pred_check
    _
  $region23: #{stcl_act_forward.21} parent=0 // pred_check_branch
    %153 = sbr.rel (0) target = $region25
  $region24: #{stcl_act_forward.21} parent=0 // pred_region
    _
  $region25: #{stcl_act_forward.21} parent=0 // pred_fallthru
    _
  // Predicated region
  $region26: #{stcl_act_forward.21} parent=0 // pred_check
    _
  $region27: #{stcl_act_forward.21} parent=0 // pred_check_branch
    %155 = sbr.rel (0) target = $region29
  $region28: #{stcl_act_forward.21} parent=0 // pred_region
    _
  $region29: #{stcl_act_forward.21} parent=0 // pred_fallthru
    _

// kernel: stcl_act_forward.30
$region0: #{stcl_act_forward.30}
  #allocation0 [shape = 'u32[]', space=smem, size = 0x4, offset = 0x4, fixed_abs, tag = 'smem constant byte address 0x4 - core index']
  #allocation1 [shape = 'u32[72,128]{1,0:T(1,128)}', space=vmem, size = 0x9000, scoped, tag = 'internal scratch']
  #allocation2 [shape = 'f32[240,128]{1,0:T(8,128)}', space=vmem, size = 0x1e000, scoped, tag = 'scratch operand']
  %s0 = inlined_call_operand.vmem [shape: bf16[240,128], index: 0, kind: input, shape index: {}]
  %s1 = inlined_call_operand.vmem [shape: bf16[128,128], index: 1, kind: input, shape index: {}]
  %s2 = inlined_call_operand.vmem [shape: f32[1,128], index: 2, kind: input, shape index: {}]
  %s3 = inlined_call_operand.vmem [shape: f32[240,128], index: 3, kind: output, shape index: {}]
  %s4 = sld [smem:[#allocation0]]
  $region30: #{stcl_act_forward.30} parent=0
    _
  %s6 = ssub.s32 1, %s4
  %s7 = scalar_select 0, %s6, %s4
  // Predicated region
  $region2: #{stcl_act_forward.30} parent=0 // pred_check
    _
  $region3: #{stcl_act_forward.30} parent=0 // pred_check_branch
    %9 = sbr.rel (0) target = $region5
  $region4: #{stcl_act_forward.30} parent=0 // pred_region
    _
  $region5: #{stcl_act_forward.30} parent=0 // pred_fallthru
    _
  // Predicated region
  $region6: #{stcl_act_forward.30} parent=0 // pred_check
    _
  $region7: #{stcl_act_forward.30} parent=0 // pred_check_branch
    %11 = sbr.rel (0) target = $region9
  $region8: #{stcl_act_forward.30} parent=0 // pred_region
    _
  $region9: #{stcl_act_forward.30} parent=0 // pred_fallthru
    _
  // Predicated region
  $region10: #{stcl_act_forward.30} parent=0 // pred_check
    _
  $region11: #{stcl_act_forward.30} parent=0 // pred_check_branch
    %13 = sbr.rel (0) target = $region13
  $region12: #{stcl_act_forward.30} parent=0 // pred_region
    _
  $region13: #{stcl_act_forward.30} parent=0 // pred_fallthru
    _
  %p14 = scmp.eq.s32.totalorder 0, 0
  // Predicated region
  $region14: #{stcl_act_forward.30} parent=0 // pred_check
    %p15 = pneg %p14
  $region15: #{stcl_act_forward.30} parent=0 // pred_check_branch
    %17 = sbr.rel (%p15) target = $region17
  $region16: #{stcl_act_forward.30} parent=0 // pred_region
    %18 = vst [vmem:[#allocation2] sm:$0xff] 0.0
    %19 = vst [vmem:[#allocation2 + $0x8] sm:$0xff] 0.0
    %20 = vst [vmem:[#allocation2 + $0x10] sm:$0xff] 0.0
    %21 = vst [vmem:[#allocation2 + $0x18] sm:$0xff] 0.0
    %22 = vst [vmem:[#allocation2 + $0x20] sm:$0xff] 0.0
    %23 = vst [vmem:[#allocation2 + $0x28] sm:$0xff] 0.0
    %24 = vst [vmem:[#allocation2 + $0x30] sm:$0xff] 0.0
    %25 = vst [vmem:[#allocation2 + $0x38] sm:$0xff] 0.0
    %26 = vst [vmem:[#allocation2 + $0x40] sm:$0xff] 0.0
    %27 = vst [vmem:[#allocation2 + $0x48] sm:$0xff] 0.0
    %28 = vst [vmem:[#allocation2 + $0x50] sm:$0xff] 0.0
    %29 = vst [vmem:[#allocation2 + $0x58] sm:$0xff] 0.0
    %30 = vst [vmem:[#allocation2 + $0x60] sm:$0xff] 0.0
    %31 = vst [vmem:[#allocation2 + $0x68] sm:$0xff] 0.0
    %32 = vst [vmem:[#allocation2 + $0x70] sm:$0xff] 0.0
    %33 = vst [vmem:[#allocation2 + $0x78] sm:$0xff] 0.0
    %34 = vst [vmem:[#allocation2 + $0x80] sm:$0xff] 0.0
    %35 = vst [vmem:[#allocation2 + $0x88] sm:$0xff] 0.0
    %36 = vst [vmem:[#allocation2 + $0x90] sm:$0xff] 0.0
    %37 = vst [vmem:[#allocation2 + $0x98] sm:$0xff] 0.0
    %38 = vst [vmem:[#allocation2 + $0xa0] sm:$0xff] 0.0
    %39 = vst [vmem:[#allocation2 + $0xa8] sm:$0xff] 0.0
    %40 = vst [vmem:[#allocation2 + $0xb0] sm:$0xff] 0.0
    %41 = vst [vmem:[#allocation2 + $0xb8] sm:$0xff] 0.0
    %42 = vst [vmem:[#allocation2 + $0xc0] sm:$0xff] 0.0
    %43 = vst [vmem:[#allocation2 + $0xc8] sm:$0xff] 0.0
    %44 = vst [vmem:[#allocation2 + $0xd0] sm:$0xff] 0.0
    %45 = vst [vmem:[#allocation2 + $0xd8] sm:$0xff] 0.0
    %46 = vst [vmem:[#allocation2 + $0xe0] sm:$0xff] 0.0
    %47 = vst [vmem:[#allocation2 + $0xe8] sm:$0xff] 0.0
  $region17: #{stcl_act_forward.30} parent=0 // pred_fallthru
    _
  %v48 = vld [vmem:[#allocation2] sm:$0xff]
  %v49 = vld [vmem:[#allocation2 + $0x8] sm:$0xff]
  %v50 = vld [vmem:[#allocation2 + $0x10] sm:$0xff]
  %v51 = vld [vmem:[#allocation2 + $0x18] sm:$0xff]
  %v52 = vld [vmem:[#allocation2 + $0x20] sm:$0xff]
  %v53 = vld [vmem:[#allocation2 + $0x28] sm:$0xff]
  %v54 = vld [vmem:[#allocation2 + $0x30] sm:$0xff]
  %v55 = vld [vmem:[#allocation2 + $0x38] sm:$0xff]
  %v56 = vld [vmem:[#allocation2 + $0x40] sm:$0xff]
  %v57 = vld [vmem:[#allocation2 + $0x48] sm:$0xff]
  %v58 = vld [vmem:[#allocation2 + $0x50] sm:$0xff]
  %v59 = vld [vmem:[#allocation2 + $0x58] sm:$0xff]
  %v60 = vld [vmem:[#allocation2 + $0x60] sm:$0xff]
  %v61 = vld [vmem:[#allocation2 + $0x68] sm:$0xff]
  %v62 = vld [vmem:[#allocation2 + $0x70] sm:$0xff]
  %v63 = vld [vmem:[#allocation2 + $0x78] sm:$0xff]
  %v64 = vld [vmem:[#allocation2 + $0x80] sm:$0xff]
  %v65 = vld [vmem:[#allocation2 + $0x88] sm:$0xff]
  %v66 = vld [vmem:[#allocation2 + $0x90] sm:$0xff]
  %v67 = vld [vmem:[#allocation2 + $0x98] sm:$0xff]
  %v68 = vld [vmem:[#allocation2 + $0xa0] sm:$0xff]
  %v69 = vld [vmem:[#allocation2 + $0xa8] sm:$0xff]
  %v70 = vld [vmem:[#allocation2 + $0xb0] sm:$0xff]
  %v71 = vld [vmem:[#allocation2 + $0xb8] sm:$0xff]
  %v72 = vld [vmem:[#allocation2 + $0xc0] sm:$0xff]
  %v73 = vld [vmem:[#allocation2 + $0xc8] sm:$0xff]
  %v74 = vld [vmem:[#allocation2 + $0xd0] sm:$0xff]
  %v75 = vld [vmem:[#allocation2 + $0xd8] sm:$0xff]
  %v76 = vld [vmem:[#allocation2 + $0xe0] sm:$0xff]
  %v77 = vld [vmem:[#allocation2 + $0xe8] sm:$0xff]
  %v78 = vld [vmem:[%s0] sm:$0xf]
  %v79 = vld [vmem:[%s0 + $0x4] sm:$0xf]
  %v80 = vld [vmem:[%s0 + $0x8] sm:$0xf]
  %v81 = vld [vmem:[%s0 + $0xc] sm:$0xf]
  %v82 = vld [vmem:[%s0 + $0x10] sm:$0xf]
  %v83 = vld [vmem:[%s0 + $0x14] sm:$0xf]
  %v84 = vld [vmem:[%s0 + $0x18] sm:$0xf]
  %v85 = vld [vmem:[%s0 + $0x1c] sm:$0xf]
  %v86 = vld [vmem:[%s0 + $0x20] sm:$0xf]
  %v87 = vld [vmem:[%s0 + $0x24] sm:$0xf]
  %v88 = vld [vmem:[%s0 + $0x28] sm:$0xf]
  %v89 = vld [vmem:[%s0 + $0x2c] sm:$0xf]
  %v90 = vld [vmem:[%s0 + $0x30] sm:$0xf]
  %v91 = vld [vmem:[%s0 + $0x34] sm:$0xf]
  %v92 = vld [vmem:[%s0 + $0x38] sm:$0xf]
  %v93 = vld [vmem:[%s0 + $0x3c] sm:$0xf]
  %v94 = vld [vmem:[%s0 + $0x40] sm:$0xf]
  %v95 = vld [vmem:[%s0 + $0x44] sm:$0xf]
  %v96 = vld [vmem:[%s0 + $0x48] sm:$0xf]
  %v97 = vld [vmem:[%s0 + $0x4c] sm:$0xf]
  %v98 = vld [vmem:[%s0 + $0x50] sm:$0xf]
  %v99 = vld [vmem:[%s0 + $0x54] sm:$0xf]
  %v100 = vld [vmem:[%s0 + $0x58] sm:$0xf]
  %v101 = vld [vmem:[%s0 + $0x5c] sm:$0xf]
  %v102 = vld [vmem:[%s0 + $0x60] sm:$0xf]
  %v103 = vld [vmem:[%s0 + $0x64] sm:$0xf]
  %v104 = vld [vmem:[%s0 + $0x68] sm:$0xf]
  %v105 = vld [vmem:[%s0 + $0x6c] sm:$0xf]
  %v106 = vld [vmem:[%s0 + $0x70] sm:$0xf]
  %v107 = vld [vmem:[%s0 + $0x74] sm:$0xf]
  %v108 = vld [vmem:[%s1] sm:$0xf]
  %v109 = vld [vmem:[%s1 + $0x4] sm:$0xf]
  %v110 = vld [vmem:[%s1 + $0x8] sm:$0xf]
  %v111 = vld [vmem:[%s1 + $0xc] sm:$0xf]
  %v112 = vld [vmem:[%s1 + $0x10] sm:$0xf]
  %v113 = vld [vmem:[%s1 + $0x14] sm:$0xf]
  %v114 = vld [vmem:[%s1 + $0x18] sm:$0xf]
  %v115 = vld [vmem:[%s1 + $0x1c] sm:$0xf]
  %v116 = vld [vmem:[%s1 + $0x20] sm:$0xf]
  %v117 = vld [vmem:[%s1 + $0x24] sm:$0xf]
  %v118 = vld [vmem:[%s1 + $0x28] sm:$0xf]
  %v119 = vld [vmem:[%s1 + $0x2c] sm:$0xf]
  %v120 = vld [vmem:[%s1 + $0x30] sm:$0xf]
  %v121 = vld [vmem:[%s1 + $0x34] sm:$0xf]
  %v122 = vld [vmem:[%s1 + $0x38] sm:$0xf]
  %v123 = vld [vmem:[%s1 + $0x3c] sm:$0xf]
  %v154 = vunpack.c.l.b16 %v78
  %v155 = vunpack.c.l.b16 %v79
  %v156 = vunpack.c.l.b16 %v80
  %v157 = vunpack.c.l.b16 %v81
  %v158 = vunpack.c.l.b16 %v82
  %v159 = vunpack.c.l.b16 %v83
  %v160 = vunpack.c.l.b16 %v84
  %v161 = vunpack.c.l.b16 %v85
  %v162 = vunpack.c.l.b16 %v86
  %v163 = vunpack.c.l.b16 %v87
  %v164 = vunpack.c.l.b16 %v88
  %v165 = vunpack.c.l.b16 %v89
  %v166 = vunpack.c.l.b16 %v90
  %v167 = vunpack.c.l.b16 %v91
  %v168 = vunpack.c.l.b16 %v92
  %v169 = vunpack.c.l.b16 %v93
  %v170 = vunpack.c.l.b16 %v94
  %v171 = vunpack.c.l.b16 %v95
  %v172 = vunpack.c.l.b16 %v96
  %v173 = vunpack.c.l.b16 %v97
  %v174 = vunpack.c.l.b16 %v98
  %v175 = vunpack.c.l.b16 %v99
  %v176 = vunpack.c.l.b16 %v100
  %v177 = vunpack.c.l.b16 %v101
  %v178 = vunpack.c.l.b16 %v102
  %v179 = vunpack.c.l.b16 %v103
  %v180 = vunpack.c.l.b16 %v104
  %v181 = vunpack.c.l.b16 %v105
  %v182 = vunpack.c.l.b16 %v106
  %v183 = vunpack.c.l.b16 %v107
  %v184 = vpack.c.b16 %v155, %v154
  %v185 = vpack.c.b16 %v157, %v156
  %v186 = vpack.c.b16 %v159, %v158
  %v187 = vpack.c.b16 %v161, %v160
  %v188 = vpack.c.b16 %v163, %v162
  %v189 = vpack.c.b16 %v165, %v164
  %v190 = vpack.c.b16 %v167, %v166
  %v191 = vpack.c.b16 %v169, %v168
  %v192 = vpack.c.b16 %v171, %v170
  %v193 = vpack.c.b16 %v173, %v172
  %v194 = vpack.c.b16 %v175, %v174
  %v195 = vpack.c.b16 %v177, %v176
  %v196 = vpack.c.b16 %v179, %v178
  %v197 = vpack.c.b16 %v181, %v180
  %v198 = vpack.c.b16 %v183, %v182
  %v230 = vunpack.c.l.b16 %v108
  %v231 = vunpack.c.l.b16 %v109
  %v232 = vunpack.c.l.b16 %v110
  %v233 = vunpack.c.l.b16 %v111
  %v234 = vunpack.c.l.b16 %v112
  %v235 = vunpack.c.l.b16 %v113
  %v236 = vunpack.c.l.b16 %v114
  %v237 = vunpack.c.l.b16 %v115
  %v238 = vunpack.c.l.b16 %v116
  %v239 = vunpack.c.l.b16 %v117
  %v240 = vunpack.c.l.b16 %v118
  %v241 = vunpack.c.l.b16 %v119
  %v242 = vunpack.c.l.b16 %v120
  %v243 = vunpack.c.l.b16 %v121
  %v244 = vunpack.c.l.b16 %v122
  %v245 = vunpack.c.l.b16 %v123
  %v246 = vpack.c.b16 %v231, %v230
  %v247 = vpack.c.b16 %v233, %v232
  %v248 = vpack.c.b16 %v235, %v234
  %v249 = vpack.c.b16 %v237, %v236
  %v250 = vpack.c.b16 %v239, %v238
  %v251 = vpack.c.b16 %v241, %v240
  %v252 = vpack.c.b16 %v243, %v242
  %v253 = vpack.c.b16 %v245, %v244
  %262 = vmatpush.bf16.msra.mxu0 %v253
  %263 = vmatpush.bf16.msra.mxu0 %v252
  %264 = vmatpush.bf16.msra.mxu0 %v251
  %265 = vmatpush.bf16.msra.mxu0 %v250
  %266 = vmatpush.bf16.msra.mxu0 %v249
  %267 = vmatpush.bf16.msra.mxu0 %v248
  %268 = vmatpush.bf16.msra.mxu0 %v247
  %269 = vmatpush.bf16.msra.mxu0 %v246
  %270 = vmatmul.bf16.gmra.mxu0 %v184
  %v271 = vpop.f32.mrf.mxu0
  %v272 = vadd.f32 0.0, %v271
  %v273 = vpop.f32.mrf.mxu0
  %v274 = vadd.f32 0.0, %v273
  %275 = vmatmul.bf16.gmra.mxu0 %v185
  %v276 = vpop.f32.mrf.mxu0
  %v277 = vadd.f32 0.0, %v276
  %v278 = vpop.f32.mrf.mxu0
  %v279 = vadd.f32 0.0, %v278
  %280 = vmatmul.bf16.gmra.mxu0 %v186
  %v281 = vpop.f32.mrf.mxu0
  %v282 = vadd.f32 0.0, %v281
  %v283 = vpop.f32.mrf.mxu0
  %v284 = vadd.f32 0.0, %v283
  %285 = vmatmul.bf16.gmra.mxu0 %v187
  %v286 = vpop.f32.mrf.mxu0
  %v287 = vadd.f32 0.0, %v286
  %v288 = vpop.f32.mrf.mxu0
  %v289 = vadd.f32 0.0, %v288
  %290 = vmatmul.bf16.gmra.mxu0 %v188
  %v291 = vpop.f32.mrf.mxu0
  %v292 = vadd.f32 0.0, %v291
  %v293 = vpop.f32.mrf.mxu0
  %v294 = vadd.f32 0.0, %v293
  %295 = vmatmul.bf16.gmra.mxu0 %v189
  %v296 = vpop.f32.mrf.mxu0
  %v297 = vadd.f32 0.0, %v296
  %v298 = vpop.f32.mrf.mxu0
  %v299 = vadd.f32 0.0, %v298
  %300 = vmatmul.bf16.gmra.mxu0 %v190
  %v301 = vpop.f32.mrf.mxu0
  %v302 = vadd.f32 0.0, %v301
  %v303 = vpop.f32.mrf.mxu0
  %v304 = vadd.f32 0.0, %v303
  %305 = vmatmul.bf16.gmra.mxu0 %v191
  %v306 = vpop.f32.mrf.mxu0
  %v307 = vadd.f32 0.0, %v306
  %v308 = vpop.f32.mrf.mxu0
  %v309 = vadd.f32 0.0, %v308
  %310 = vmatmul.bf16.gmra.mxu0 %v192
  %v311 = vpop.f32.mrf.mxu0
  %v312 = vadd.f32 0.0, %v311
  %v313 = vpop.f32.mrf.mxu0
  %v314 = vadd.f32 0.0, %v313
  %315 = vmatmul.bf16.gmra.mxu0 %v193
  %v316 = vpop.f32.mrf.mxu0
  %v317 = vadd.f32 0.0, %v316
  %v318 = vpop.f32.mrf.mxu0
  %v319 = vadd.f32 0.0, %v318
  %320 = vmatmul.bf16.gmra.mxu0 %v194
  %v321 = vpop.f32.mrf.mxu0
  %v322 = vadd.f32 0.0, %v321
  %v323 = vpop.f32.mrf.mxu0
  %v324 = vadd.f32 0.0, %v323
  %325 = vmatmul.bf16.gmra.mxu0 %v195
  %v326 = vpop.f32.mrf.mxu0
  %v327 = vadd.f32 0.0, %v326
  %v328 = vpop.f32.mrf.mxu0
  %v329 = vadd.f32 0.0, %v328
  %330 = vmatmul.bf16.gmra.mxu0 %v196
  %v331 = vpop.f32.mrf.mxu0
  %v332 = vadd.f32 0.0, %v331
  %v333 = vpop.f32.mrf.mxu0
  %v334 = vadd.f32 0.0, %v333
  %335 = vmatmul.bf16.gmra.mxu0 %v197
  %v336 = vpop.f32.mrf.mxu0
  %v337 = vadd.f32 0.0, %v336
  %v338 = vpop.f32.mrf.mxu0
  %v339 = vadd.f32 0.0, %v338
  %340 = vmatmul.bf16.gmra.mxu0 %v198
  %v341 = vpop.f32.mrf.mxu0
  %v342 = vadd.f32 0.0, %v341
  %v343 = vpop.f32.mrf.mxu0
  %v344 = vadd.f32 0.0, %v343
  %345 = vdwg.mxu0
  %v346 = vadd.f32 %v48, %v272
  %v347 = vadd.f32 %v49, %v274
  %v348 = vadd.f32 %v50, %v277
  %v349 = vadd.f32 %v51, %v279
  %v350 = vadd.f32 %v52, %v282
  %v351 = vadd.f32 %v53, %v284
  %v352 = vadd.f32 %v54, %v287
  %v353 = vadd.f32 %v55, %v289
  %v354 = vadd.f32 %v56, %v292
  %v355 = vadd.f32 %v57, %v294
  %v356 = vadd.f32 %v58, %v297
  %v357 = vadd.f32 %v59, %v299
  %v358 = vadd.f32 %v60, %v302
  %v359 = vadd.f32 %v61, %v304
  %v360 = vadd.f32 %v62, %v307
  %v361 = vadd.f32 %v63, %v309
  %v362 = vadd.f32 %v64, %v312
  %v363 = vadd.f32 %v65, %v314
  %v364 = vadd.f32 %v66, %v317
  %v365 = vadd.f32 %v67, %v319
  %v366 = vadd.f32 %v68, %v322
  %v367 = vadd.f32 %v69, %v324
  %v368 = vadd.f32 %v70, %v327
  %v369 = vadd.f32 %v71, %v329
  %v370 = vadd.f32 %v72, %v332
  %v371 = vadd.f32 %v73, %v334
  %v372 = vadd.f32 %v74, %v337
  %v373 = vadd.f32 %v75, %v339
  %v374 = vadd.f32 %v76, %v342
  %v375 = vadd.f32 %v77, %v344
  %376 = vst [vmem:[#allocation2] sm:$0xff] %v346
  %377 = vst [vmem:[#allocation2 + $0x8] sm:$0xff] %v347
  %378 = vst [vmem:[#allocation2 + $0x10] sm:$0xff] %v348
  %379 = vst [vmem:[#allocation2 + $0x18] sm:$0xff] %v349
  %380 = vst [vmem:[#allocation2 + $0x20] sm:$0xff] %v350
  %381 = vst [vmem:[#allocation2 + $0x28] sm:$0xff] %v351
  %382 = vst [vmem:[#allocation2 + $0x30] sm:$0xff] %v352
  %383 = vst [vmem:[#allocation2 + $0x38] sm:$0xff] %v353
  %384 = vst [vmem:[#allocation2 + $0x40] sm:$0xff] %v354
  %385 = vst [vmem:[#allocation2 + $0x48] sm:$0xff] %v355
  %386 = vst [vmem:[#allocation2 + $0x50] sm:$0xff] %v356
  %387 = vst [vmem:[#allocation2 + $0x58] sm:$0xff] %v357
  %388 = vst [vmem:[#allocation2 + $0x60] sm:$0xff] %v358
  %389 = vst [vmem:[#allocation2 + $0x68] sm:$0xff] %v359
  %390 = vst [vmem:[#allocation2 + $0x70] sm:$0xff] %v360
  %391 = vst [vmem:[#allocation2 + $0x78] sm:$0xff] %v361
  %392 = vst [vmem:[#allocation2 + $0x80] sm:$0xff] %v362
  %393 = vst [vmem:[#allocation2 + $0x88] sm:$0xff] %v363
  %394 = vst [vmem:[#allocation2 + $0x90] sm:$0xff] %v364
  %395 = vst [vmem:[#allocation2 + $0x98] sm:$0xff] %v365
  %396 = vst [vmem:[#allocation2 + $0xa0] sm:$0xff] %v366
  %397 = vst [vmem:[#allocation2 + $0xa8] sm:$0xff] %v367
  %398 = vst [vmem:[#allocation2 + $0xb0] sm:$0xff] %v368
  %399 = vst [vmem:[#allocation2 + $0xb8] sm:$0xff] %v369
  %400 = vst [vmem:[#allocation2 + $0xc0] sm:$0xff] %v370
  %401 = vst [vmem:[#allocation2 + $0xc8] sm:$0xff] %v371
  %402 = vst [vmem:[#allocation2 + $0xd0] sm:$0xff] %v372
  %403 = vst [vmem:[#allocation2 + $0xd8] sm:$0xff] %v373
  %404 = vst [vmem:[#allocation2 + $0xe0] sm:$0xff] %v374
  %405 = vst [vmem:[#allocation2 + $0xe8] sm:$0xff] %v375
  // Predicated region
  $region18: #{stcl_act_forward.30} parent=0 // pred_check
    %p406 = pneg %p14
  $region19: #{stcl_act_forward.30} parent=0 // pred_check_branch
    %408 = sbr.rel (%p406) target = $region21
  $region20: #{stcl_act_forward.30} parent=0 // pred_region
    %v409 = vld [vmem:[#allocation2] sm:$0xff]
    %v410 = vld [vmem:[#allocation2 + $0x8] sm:$0xff]
    %v411 = vld [vmem:[#allocation2 + $0x10] sm:$0xff]
    %v412 = vld [vmem:[#allocation2 + $0x18] sm:$0xff]
    %v413 = vld [vmem:[#allocation2 + $0x20] sm:$0xff]
    %v414 = vld [vmem:[#allocation2 + $0x28] sm:$0xff]
    %v415 = vld [vmem:[#allocation2 + $0x30] sm:$0xff]
    %v416 = vld [vmem:[#allocation2 + $0x38] sm:$0xff]
    %v417 = vld [vmem:[#allocation2 + $0x40] sm:$0xff]
    %v418 = vld [vmem:[#allocation2 + $0x48] sm:$0xff]
    %v419 = vld [vmem:[#allocation2 + $0x50] sm:$0xff]
    %v420 = vld [vmem:[#allocation2 + $0x58] sm:$0xff]
    %v421 = vld [vmem:[#allocation2 + $0x60] sm:$0xff]
    %v422 = vld [vmem:[#allocation2 + $0x68] sm:$0xff]
    %v423 = vld [vmem:[#allocation2 + $0x70] sm:$0xff]
    %v424 = vld [vmem:[#allocation2 + $0x78] sm:$0xff]
    %v425 = vld [vmem:[#allocation2 + $0x80] sm:$0xff]
    %v426 = vld [vmem:[#allocation2 + $0x88] sm:$0xff]
    %v427 = vld [vmem:[#allocation2 + $0x90] sm:$0xff]
    %v428 = vld [vmem:[#allocation2 + $0x98] sm:$0xff]
    %v429 = vld [vmem:[#allocation2 + $0xa0] sm:$0xff]
    %v430 = vld [vmem:[#allocation2 + $0xa8] sm:$0xff]
    %v431 = vld [vmem:[#allocation2 + $0xb0] sm:$0xff]
    %v432 = vld [vmem:[#allocation2 + $0xb8] sm:$0xff]
    %v433 = vld [vmem:[#allocation2 + $0xc0] sm:$0xff]
    %v434 = vld [vmem:[#allocation2 + $0xc8] sm:$0xff]
    %v435 = vld [vmem:[#allocation2 + $0xd0] sm:$0xff]
    %v436 = vld [vmem:[#allocation2 + $0xd8] sm:$0xff]
    %v437 = vld [vmem:[#allocation2 + $0xe0] sm:$0xff]
    %v438 = vld [vmem:[#allocation2 + $0xe8] sm:$0xff]
    %v439 = vld [vmem:[%s2] sm:$0x1]
    %v441 = vperm.slane %v439, 0
    %v443 = vadd.f32 %v409, %v441
    %v444 = vadd.f32 %v410, %v441
    %v445 = vadd.f32 %v411, %v441
    %v446 = vadd.f32 %v412, %v441
    %v447 = vadd.f32 %v413, %v441
    %v448 = vadd.f32 %v414, %v441
    %v449 = vadd.f32 %v415, %v441
    %v450 = vadd.f32 %v416, %v441
    %v451 = vadd.f32 %v417, %v441
    %v452 = vadd.f32 %v418, %v441
    %v453 = vadd.f32 %v419, %v441
    %v454 = vadd.f32 %v420, %v441
    %v455 = vadd.f32 %v421, %v441
    %v456 = vadd.f32 %v422, %v441
    %v457 = vadd.f32 %v423, %v441
    %v458 = vadd.f32 %v424, %v441
    %v459 = vadd.f32 %v425, %v441
    %v460 = vadd.f32 %v426, %v441
    %v461 = vadd.f32 %v427, %v441
    %v462 = vadd.f32 %v428, %v441
    %v463 = vadd.f32 %v429, %v441
    %v464 = vadd.f32 %v430, %v441
    %v465 = vadd.f32 %v431, %v441
    %v466 = vadd.f32 %v432, %v441
    %v467 = vadd.f32 %v433, %v441
    %v468 = vadd.f32 %v434, %v441
    %v469 = vadd.f32 %v435, %v441
    %v470 = vadd.f32 %v436, %v441
    %v471 = vadd.f32 %v437, %v441
    %v472 = vadd.f32 %v438, %v441
    %473 = vst [vmem:[%s3] sm:$0xff] %v443
    %474 = vst [vmem:[%s3 + $0x8] sm:$0xff] %v444
    %475 = vst [vmem:[%s3 + $0x10] sm:$0xff] %v445
    %476 = vst [vmem:[%s3 + $0x18] sm:$0xff] %v446
    %477 = vst [vmem:[%s3 + $0x20] sm:$0xff] %v447
    %478 = vst [vmem:[%s3 + $0x28] sm:$0xff] %v448
    %479 = vst [vmem:[%s3 + $0x30] sm:$0xff] %v449
    %480 = vst [vmem:[%s3 + $0x38] sm:$0xff] %v450
    %481 = vst [vmem:[%s3 + $0x40] sm:$0xff] %v451
    %482 = vst [vmem:[%s3 + $0x48] sm:$0xff] %v452
    %483 = vst [vmem:[%s3 + $0x50] sm:$0xff] %v453
    %484 = vst [vmem:[%s3 + $0x58] sm:$0xff] %v454
    %485 = vst [vmem:[%s3 + $0x60] sm:$0xff] %v455
    %486 = vst [vmem:[%s3 + $0x68] sm:$0xff] %v456
    %487 = vst [vmem:[%s3 + $0x70] sm:$0xff] %v457
    %488 = vst [vmem:[%s3 + $0x78] sm:$0xff] %v458
    %489 = vst [vmem:[%s3 + $0x80] sm:$0xff] %v459
    %490 = vst [vmem:[%s3 + $0x88] sm:$0xff] %v460
    %491 = vst [vmem:[%s3 + $0x90] sm:$0xff] %v461
    %492 = vst [vmem:[%s3 + $0x98] sm:$0xff] %v462
    %493 = vst [vmem:[%s3 + $0xa0] sm:$0xff] %v463
    %494 = vst [vmem:[%s3 + $0xa8] sm:$0xff] %v464
    %495 = vst [vmem:[%s3 + $0xb0] sm:$0xff] %v465
    %496 = vst [vmem:[%s3 + $0xb8] sm:$0xff] %v466
    %497 = vst [vmem:[%s3 + $0xc0] sm:$0xff] %v467
    %498 = vst [vmem:[%s3 + $0xc8] sm:$0xff] %v468
    %499 = vst [vmem:[%s3 + $0xd0] sm:$0xff] %v469
    %500 = vst [vmem:[%s3 + $0xd8] sm:$0xff] %v470
    %501 = vst [vmem:[%s3 + $0xe0] sm:$0xff] %v471
    %502 = vst [vmem:[%s3 + $0xe8] sm:$0xff] %v472
  $region21: #{stcl_act_forward.30} parent=0 // pred_fallthru
    _
  // Predicated region
  $region22: #{stcl_act_forward.30} parent=0 // pred_check
    _
  $region23: #{stcl_act_forward.30} parent=0 // pred_check_branch
    %504 = sbr.rel (0) target = $region25
  $region24: #{stcl_act_forward.30} parent=0 // pred_region
    _
  $region25: #{stcl_act_forward.30} parent=0 // pred_fallthru
    _
  // Predicated region
  $region26: #{stcl_act_forward.30} parent=0 // pred_check
    _
  $region27: #{stcl_act_forward.30} parent=0 // pred_check_branch
    %506 = sbr.rel (0) target = $region29
  $region28: #{stcl_act_forward.30} parent=0 // pred_region
    _
  $region29: #{stcl_act_forward.30} parent=0 // pred_fallthru
    _

// kernel: stcl_act_forward.31
$region0: #{stcl_act_forward.31}
  #allocation0 [shape = 'u32[]', space=smem, size = 0x4, offset = 0x4, fixed_abs, tag = 'smem constant byte address 0x4 - core index']
  #allocation1 [shape = 'u32[72,128]{1,0:T(1,128)}', space=vmem, size = 0x9000, scoped, tag = 'internal scratch']
  #allocation2 [shape = 'f32[240,128]{1,0:T(8,128)}', space=vmem, size = 0x1e000, scoped, tag = 'scratch operand']
  %s0 = inlined_call_operand.vmem [shape: bf16[240,128], index: 0, kind: input, shape index: {}]
  %s1 = inlined_call_operand.vmem [shape: bf16[128,128], index: 1, kind: input, shape index: {}]
  %s2 = inlined_call_operand.vmem [shape: f32[1,128], index: 2, kind: input, shape index: {}]
  %s3 = inlined_call_operand.vmem [shape: f32[240,128], index: 3, kind: output, shape index: {}]
  %s4 = sld [smem:[#allocation0]]
  $region30: #{stcl_act_forward.31} parent=0
    _
  %s6 = ssub.s32 1, %s4
  %s7 = scalar_select 0, %s6, %s4
  // Predicated region
  $region2: #{stcl_act_forward.31} parent=0 // pred_check
    _
  $region3: #{stcl_act_forward.31} parent=0 // pred_check_branch
    %9 = sbr.rel (0) target = $region5
  $region4: #{stcl_act_forward.31} parent=0 // pred_region
    _
  $region5: #{stcl_act_forward.31} parent=0 // pred_fallthru
    _
  // Predicated region
  $region6: #{stcl_act_forward.31} parent=0 // pred_check
    _
  $region7: #{stcl_act_forward.31} parent=0 // pred_check_branch
    %11 = sbr.rel (0) target = $region9
  $region8: #{stcl_act_forward.31} parent=0 // pred_region
    _
  $region9: #{stcl_act_forward.31} parent=0 // pred_fallthru
    _
  // Predicated region
  $region10: #{stcl_act_forward.31} parent=0 // pred_check
    _
  $region11: #{stcl_act_forward.31} parent=0 // pred_check_branch
    %13 = sbr.rel (0) target = $region13
  $region12: #{stcl_act_forward.31} parent=0 // pred_region
    _
  $region13: #{stcl_act_forward.31} parent=0 // pred_fallthru
    _
  %p14 = scmp.eq.s32.totalorder 0, 0
  // Predicated region
  $region14: #{stcl_act_forward.31} parent=0 // pred_check
    %p15 = pneg %p14
  $region15: #{stcl_act_forward.31} parent=0 // pred_check_branch
    %17 = sbr.rel (%p15) target = $region17
  $region16: #{stcl_act_forward.31} parent=0 // pred_region
    %18 = vst [vmem:[#allocation2] sm:$0xff] 0.0
    %19 = vst [vmem:[#allocation2 + $0x8] sm:$0xff] 0.0
    %20 = vst [vmem:[#allocation2 + $0x10] sm:$0xff] 0.0
    %21 = vst [vmem:[#allocation2 + $0x18] sm:$0xff] 0.0
    %22 = vst [vmem:[#allocation2 + $0x20] sm:$0xff] 0.0
    %23 = vst [vmem:[#allocation2 + $0x28] sm:$0xff] 0.0
    %24 = vst [vmem:[#allocation2 + $0x30] sm:$0xff] 0.0
    %25 = vst [vmem:[#allocation2 + $0x38] sm:$0xff] 0.0
    %26 = vst [vmem:[#allocation2 + $0x40] sm:$0xff] 0.0
    %27 = vst [vmem:[#allocation2 + $0x48] sm:$0xff] 0.0
    %28 = vst [vmem:[#allocation2 + $0x50] sm:$0xff] 0.0
    %29 = vst [vmem:[#allocation2 + $0x58] sm:$0xff] 0.0
    %30 = vst [vmem:[#allocation2 + $0x60] sm:$0xff] 0.0
    %31 = vst [vmem:[#allocation2 + $0x68] sm:$0xff] 0.0
    %32 = vst [vmem:[#allocation2 + $0x70] sm:$0xff] 0.0
    %33 = vst [vmem:[#allocation2 + $0x78] sm:$0xff] 0.0
    %34 = vst [vmem:[#allocation2 + $0x80] sm:$0xff] 0.0
    %35 = vst [vmem:[#allocation2 + $0x88] sm:$0xff] 0.0
    %36 = vst [vmem:[#allocation2 + $0x90] sm:$0xff] 0.0
    %37 = vst [vmem:[#allocation2 + $0x98] sm:$0xff] 0.0
    %38 = vst [vmem:[#allocation2 + $0xa0] sm:$0xff] 0.0
    %39 = vst [vmem:[#allocation2 + $0xa8] sm:$0xff] 0.0
    %40 = vst [vmem:[#allocation2 + $0xb0] sm:$0xff] 0.0
    %41 = vst [vmem:[#allocation2 + $0xb8] sm:$0xff] 0.0
    %42 = vst [vmem:[#allocation2 + $0xc0] sm:$0xff] 0.0
    %43 = vst [vmem:[#allocation2 + $0xc8] sm:$0xff] 0.0
    %44 = vst [vmem:[#allocation2 + $0xd0] sm:$0xff] 0.0
    %45 = vst [vmem:[#allocation2 + $0xd8] sm:$0xff] 0.0
    %46 = vst [vmem:[#allocation2 + $0xe0] sm:$0xff] 0.0
    %47 = vst [vmem:[#allocation2 + $0xe8] sm:$0xff] 0.0
  $region17: #{stcl_act_forward.31} parent=0 // pred_fallthru
    _
  %v48 = vld [vmem:[#allocation2] sm:$0xff]
  %v49 = vld [vmem:[#allocation2 + $0x8] sm:$0xff]
  %v50 = vld [vmem:[#allocation2 + $0x10] sm:$0xff]
  %v51 = vld [vmem:[#allocation2 + $0x18] sm:$0xff]
  %v52 = vld [vmem:[#allocation2 + $0x20] sm:$0xff]
  %v53 = vld [vmem:[#allocation2 + $0x28] sm:$0xff]
  %v54 = vld [vmem:[#allocation2 + $0x30] sm:$0xff]
  %v55 = vld [vmem:[#allocation2 + $0x38] sm:$0xff]
  %v56 = vld [vmem:[#allocation2 + $0x40] sm:$0xff]
  %v57 = vld [vmem:[#allocation2 + $0x48] sm:$0xff]
  %v58 = vld [vmem:[#allocation2 + $0x50] sm:$0xff]
  %v59 = vld [vmem:[#allocation2 + $0x58] sm:$0xff]
  %v60 = vld [vmem:[#allocation2 + $0x60] sm:$0xff]
  %v61 = vld [vmem:[#allocation2 + $0x68] sm:$0xff]
  %v62 = vld [vmem:[#allocation2 + $0x70] sm:$0xff]
  %v63 = vld [vmem:[#allocation2 + $0x78] sm:$0xff]
  %v64 = vld [vmem:[#allocation2 + $0x80] sm:$0xff]
  %v65 = vld [vmem:[#allocation2 + $0x88] sm:$0xff]
  %v66 = vld [vmem:[#allocation2 + $0x90] sm:$0xff]
  %v67 = vld [vmem:[#allocation2 + $0x98] sm:$0xff]
  %v68 = vld [vmem:[#allocation2 + $0xa0] sm:$0xff]
  %v69 = vld [vmem:[#allocation2 + $0xa8] sm:$0xff]
  %v70 = vld [vmem:[#allocation2 + $0xb0] sm:$0xff]
  %v71 = vld [vmem:[#allocation2 + $0xb8] sm:$0xff]
  %v72 = vld [vmem:[#allocation2 + $0xc0] sm:$0xff]
  %v73 = vld [vmem:[#allocation2 + $0xc8] sm:$0xff]
  %v74 = vld [vmem:[#allocation2 + $0xd0] sm:$0xff]
  %v75 = vld [vmem:[#allocation2 + $0xd8] sm:$0xff]
  %v76 = vld [vmem:[#allocation2 + $0xe0] sm:$0xff]
  %v77 = vld [vmem:[#allocation2 + $0xe8] sm:$0xff]
  %v78 = vld [vmem:[%s0] sm:$0xf]
  %v79 = vld [vmem:[%s0 + $0x4] sm:$0xf]
  %v80 = vld [vmem:[%s0 + $0x8] sm:$0xf]
  %v81 = vld [vmem:[%s0 + $0xc] sm:$0xf]
  %v82 = vld [vmem:[%s0 + $0x10] sm:$0xf]
  %v83 = vld [vmem:[%s0 + $0x14] sm:$0xf]
  %v84 = vld [vmem:[%s0 + $0x18] sm:$0xf]
  %v85 = vld [vmem:[%s0 + $0x1c] sm:$0xf]
  %v86 = vld [vmem:[%s0 + $0x20] sm:$0xf]
  %v87 = vld [vmem:[%s0 + $0x24] sm:$0xf]
  %v88 = vld [vmem:[%s0 + $0x28] sm:$0xf]
  %v89 = vld [vmem:[%s0 + $0x2c] sm:$0xf]
  %v90 = vld [vmem:[%s0 + $0x30] sm:$0xf]
  %v91 = vld [vmem:[%s0 + $0x34] sm:$0xf]
  %v92 = vld [vmem:[%s0 + $0x38] sm:$0xf]
  %v93 = vld [vmem:[%s0 + $0x3c] sm:$0xf]
  %v94 = vld [vmem:[%s0 + $0x40] sm:$0xf]
  %v95 = vld [vmem:[%s0 + $0x44] sm:$0xf]
  %v96 = vld [vmem:[%s0 + $0x48] sm:$0xf]
  %v97 = vld [vmem:[%s0 + $0x4c] sm:$0xf]
  %v98 = vld [vmem:[%s0 + $0x50] sm:$0xf]
  %v99 = vld [vmem:[%s0 + $0x54] sm:$0xf]
  %v100 = vld [vmem:[%s0 + $0x58] sm:$0xf]
  %v101 = vld [vmem:[%s0 + $0x5c] sm:$0xf]
  %v102 = vld [vmem:[%s0 + $0x60] sm:$0xf]
  %v103 = vld [vmem:[%s0 + $0x64] sm:$0xf]
  %v104 = vld [vmem:[%s0 + $0x68] sm:$0xf]
  %v105 = vld [vmem:[%s0 + $0x6c] sm:$0xf]
  %v106 = vld [vmem:[%s0 + $0x70] sm:$0xf]
  %v107 = vld [vmem:[%s0 + $0x74] sm:$0xf]
  %v108 = vld [vmem:[%s1] sm:$0xf]
  %v109 = vld [vmem:[%s1 + $0x4] sm:$0xf]
  %v110 = vld [vmem:[%s1 + $0x8] sm:$0xf]
  %v111 = vld [vmem:[%s1 + $0xc] sm:$0xf]
  %v112 = vld [vmem:[%s1 + $0x10] sm:$0xf]
  %v113 = vld [vmem:[%s1 + $0x14] sm:$0xf]
  %v114 = vld [vmem:[%s1 + $0x18] sm:$0xf]
  %v115 = vld [vmem:[%s1 + $0x1c] sm:$0xf]
  %v116 = vld [vmem:[%s1 + $0x20] sm:$0xf]
  %v117 = vld [vmem:[%s1 + $0x24] sm:$0xf]
  %v118 = vld [vmem:[%s1 + $0x28] sm:$0xf]
  %v119 = vld [vmem:[%s1 + $0x2c] sm:$0xf]
  %v120 = vld [vmem:[%s1 + $0x30] sm:$0xf]
  %v121 = vld [vmem:[%s1 + $0x34] sm:$0xf]
  %v122 = vld [vmem:[%s1 + $0x38] sm:$0xf]
  %v123 = vld [vmem:[%s1 + $0x3c] sm:$0xf]
  %v154 = vunpack.c.l.b16 %v78
  %v155 = vunpack.c.l.b16 %v79
  %v156 = vunpack.c.l.b16 %v80
  %v157 = vunpack.c.l.b16 %v81
  %v158 = vunpack.c.l.b16 %v82
  %v159 = vunpack.c.l.b16 %v83
  %v160 = vunpack.c.l.b16 %v84
  %v161 = vunpack.c.l.b16 %v85
  %v162 = vunpack.c.l.b16 %v86
  %v163 = vunpack.c.l.b16 %v87
  %v164 = vunpack.c.l.b16 %v88
  %v165 = vunpack.c.l.b16 %v89
  %v166 = vunpack.c.l.b16 %v90
  %v167 = vunpack.c.l.b16 %v91
  %v168 = vunpack.c.l.b16 %v92
  %v169 = vunpack.c.l.b16 %v93
  %v170 = vunpack.c.l.b16 %v94
  %v171 = vunpack.c.l.b16 %v95
  %v172 = vunpack.c.l.b16 %v96
  %v173 = vunpack.c.l.b16 %v97
  %v174 = vunpack.c.l.b16 %v98
  %v175 = vunpack.c.l.b16 %v99
  %v176 = vunpack.c.l.b16 %v100
  %v177 = vunpack.c.l.b16 %v101
  %v178 = vunpack.c.l.b16 %v102
  %v179 = vunpack.c.l.b16 %v103
  %v180 = vunpack.c.l.b16 %v104
  %v181 = vunpack.c.l.b16 %v105
  %v182 = vunpack.c.l.b16 %v106
  %v183 = vunpack.c.l.b16 %v107
  %v184 = vpack.c.b16 %v155, %v154
  %v185 = vpack.c.b16 %v157, %v156
  %v186 = vpack.c.b16 %v159, %v158
  %v187 = vpack.c.b16 %v161, %v160
  %v188 = vpack.c.b16 %v163, %v162
  %v189 = vpack.c.b16 %v165, %v164
  %v190 = vpack.c.b16 %v167, %v166
  %v191 = vpack.c.b16 %v169, %v168
  %v192 = vpack.c.b16 %v171, %v170
  %v193 = vpack.c.b16 %v173, %v172
  %v194 = vpack.c.b16 %v175, %v174
  %v195 = vpack.c.b16 %v177, %v176
  %v196 = vpack.c.b16 %v179, %v178
  %v197 = vpack.c.b16 %v181, %v180
  %v198 = vpack.c.b16 %v183, %v182
  %v230 = vunpack.c.l.b16 %v108
  %v231 = vunpack.c.l.b16 %v109
  %v232 = vunpack.c.l.b16 %v110
  %v233 = vunpack.c.l.b16 %v111
  %v234 = vunpack.c.l.b16 %v112
  %v235 = vunpack.c.l.b16 %v113
  %v236 = vunpack.c.l.b16 %v114
  %v237 = vunpack.c.l.b16 %v115
  %v238 = vunpack.c.l.b16 %v116
  %v239 = vunpack.c.l.b16 %v117
  %v240 = vunpack.c.l.b16 %v118
  %v241 = vunpack.c.l.b16 %v119
  %v242 = vunpack.c.l.b16 %v120
  %v243 = vunpack.c.l.b16 %v121
  %v244 = vunpack.c.l.b16 %v122
  %v245 = vunpack.c.l.b16 %v123
  %v246 = vpack.c.b16 %v231, %v230
  %v247 = vpack.c.b16 %v233, %v232
  %v248 = vpack.c.b16 %v235, %v234
  %v249 = vpack.c.b16 %v237, %v236
  %v250 = vpack.c.b16 %v239, %v238
  %v251 = vpack.c.b16 %v241, %v240
  %v252 = vpack.c.b16 %v243, %v242
  %v253 = vpack.c.b16 %v245, %v244
  %262 = vmatpush.bf16.msra.mxu0 %v253
  %263 = vmatpush.bf16.msra.mxu0 %v252
  %264 = vmatpush.bf16.msra.mxu0 %v251
  %265 = vmatpush.bf16.msra.mxu0 %v250
  %266 = vmatpush.bf16.msra.mxu0 %v249
  %267 = vmatpush.bf16.msra.mxu0 %v248
  %268 = vmatpush.bf16.msra.mxu0 %v247
  %269 = vmatpush.bf16.msra.mxu0 %v246
  %270 = vmatmul.bf16.gmra.mxu0 %v184
  %v271 = vpop.f32.mrf.mxu0
  %v272 = vadd.f32 0.0, %v271
  %v273 = vpop.f32.mrf.mxu0
  %v274 = vadd.f32 0.0, %v273
  %275 = vmatmul.bf16.gmra.mxu0 %v185
  %v276 = vpop.f32.mrf.mxu0
  %v277 = vadd.f32 0.0, %v276
  %v278 = vpop.f32.mrf.mxu0
  %v279 = vadd.f32 0.0, %v278
  %280 = vmatmul.bf16.gmra.mxu0 %v186
  %v281 = vpop.f32.mrf.mxu0
  %v282 = vadd.f32 0.0, %v281
  %v283 = vpop.f32.mrf.mxu0
  %v284 = vadd.f32 0.0, %v283
  %285 = vmatmul.bf16.gmra.mxu0 %v187
  %v286 = vpop.f32.mrf.mxu0
  %v287 = vadd.f32 0.0, %v286
  %v288 = vpop.f32.mrf.mxu0
  %v289 = vadd.f32 0.0, %v288
  %290 = vmatmul.bf16.gmra.mxu0 %v188
  %v291 = vpop.f32.mrf.mxu0
  %v292 = vadd.f32 0.0, %v291
  %v293 = vpop.f32.mrf.mxu0
  %v294 = vadd.f32 0.0, %v293
  %295 = vmatmul.bf16.gmra.mxu0 %v189
  %v296 = vpop.f32.mrf.mxu0
  %v297 = vadd.f32 0.0, %v296
  %v298 = vpop.f32.mrf.mxu0
  %v299 = vadd.f32 0.0, %v298
  %300 = vmatmul.bf16.gmra.mxu0 %v190
  %v301 = vpop.f32.mrf.mxu0
  %v302 = vadd.f32 0.0, %v301
  %v303 = vpop.f32.mrf.mxu0
  %v304 = vadd.f32 0.0, %v303
  %305 = vmatmul.bf16.gmra.mxu0 %v191
  %v306 = vpop.f32.mrf.mxu0
  %v307 = vadd.f32 0.0, %v306
  %v308 = vpop.f32.mrf.mxu0
  %v309 = vadd.f32 0.0, %v308
  %310 = vmatmul.bf16.gmra.mxu0 %v192
  %v311 = vpop.f32.mrf.mxu0
  %v312 = vadd.f32 0.0, %v311
  %v313 = vpop.f32.mrf.mxu0
  %v314 = vadd.f32 0.0, %v313
  %315 = vmatmul.bf16.gmra.mxu0 %v193
  %v316 = vpop.f32.mrf.mxu0
  %v317 = vadd.f32 0.0, %v316
  %v318 = vpop.f32.mrf.mxu0
  %v319 = vadd.f32 0.0, %v318
  %320 = vmatmul.bf16.gmra.mxu0 %v194
  %v321 = vpop.f32.mrf.mxu0
  %v322 = vadd.f32 0.0, %v321
  %v323 = vpop.f32.mrf.mxu0
  %v324 = vadd.f32 0.0, %v323
  %325 = vmatmul.bf16.gmra.mxu0 %v195
  %v326 = vpop.f32.mrf.mxu0
  %v327 = vadd.f32 0.0, %v326
  %v328 = vpop.f32.mrf.mxu0
  %v329 = vadd.f32 0.0, %v328
  %330 = vmatmul.bf16.gmra.mxu0 %v196
  %v331 = vpop.f32.mrf.mxu0
  %v332 = vadd.f32 0.0, %v331
  %v333 = vpop.f32.mrf.mxu0
  %v334 = vadd.f32 0.0, %v333
  %335 = vmatmul.bf16.gmra.mxu0 %v197
  %v336 = vpop.f32.mrf.mxu0
  %v337 = vadd.f32 0.0, %v336
  %v338 = vpop.f32.mrf.mxu0
  %v339 = vadd.f32 0.0, %v338
  %340 = vmatmul.bf16.gmra.mxu0 %v198
  %v341 = vpop.f32.mrf.mxu0
  %v342 = vadd.f32 0.0, %v341
  %v343 = vpop.f32.mrf.mxu0
  %v344 = vadd.f32 0.0, %v343
  %345 = vdwg.mxu0
  %v346 = vadd.f32 %v48, %v272
  %v347 = vadd.f32 %v49, %v274
  %v348 = vadd.f32 %v50, %v277
  %v349 = vadd.f32 %v51, %v279
  %v350 = vadd.f32 %v52, %v282
  %v351 = vadd.f32 %v53, %v284
  %v352 = vadd.f32 %v54, %v287
  %v353 = vadd.f32 %v55, %v289
  %v354 = vadd.f32 %v56, %v292
  %v355 = vadd.f32 %v57, %v294
  %v356 = vadd.f32 %v58, %v297
  %v357 = vadd.f32 %v59, %v299
  %v358 = vadd.f32 %v60, %v302
  %v359 = vadd.f32 %v61, %v304
  %v360 = vadd.f32 %v62, %v307
  %v361 = vadd.f32 %v63, %v309
  %v362 = vadd.f32 %v64, %v312
  %v363 = vadd.f32 %v65, %v314
  %v364 = vadd.f32 %v66, %v317
  %v365 = vadd.f32 %v67, %v319
  %v366 = vadd.f32 %v68, %v322
  %v367 = vadd.f32 %v69, %v324
  %v368 = vadd.f32 %v70, %v327
  %v369 = vadd.f32 %v71, %v329
  %v370 = vadd.f32 %v72, %v332
  %v371 = vadd.f32 %v73, %v334
  %v372 = vadd.f32 %v74, %v337
  %v373 = vadd.f32 %v75, %v339
  %v374 = vadd.f32 %v76, %v342
  %v375 = vadd.f32 %v77, %v344
  %376 = vst [vmem:[#allocation2] sm:$0xff] %v346
  %377 = vst [vmem:[#allocation2 + $0x8] sm:$0xff] %v347
  %378 = vst [vmem:[#allocation2 + $0x10] sm:$0xff] %v348
  %379 = vst [vmem:[#allocation2 + $0x18] sm:$0xff] %v349
  %380 = vst [vmem:[#allocation2 + $0x20] sm:$0xff] %v350
  %381 = vst [vmem:[#allocation2 + $0x28] sm:$0xff] %v351
  %382 = vst [vmem:[#allocation2 + $0x30] sm:$0xff] %v352
  %383 = vst [vmem:[#allocation2 + $0x38] sm:$0xff] %v353
  %384 = vst [vmem:[#allocation2 + $0x40] sm:$0xff] %v354
  %385 = vst [vmem:[#allocation2 + $0x48] sm:$0xff] %v355
  %386 = vst [vmem:[#allocation2 + $0x50] sm:$0xff] %v356
  %387 = vst [vmem:[#allocation2 + $0x58] sm:$0xff] %v357
  %388 = vst [vmem:[#allocation2 + $0x60] sm:$0xff] %v358
  %389 = vst [vmem:[#allocation2 + $0x68] sm:$0xff] %v359
  %390 = vst [vmem:[#allocation2 + $0x70] sm:$0xff] %v360
  %391 = vst [vmem:[#allocation2 + $0x78] sm:$0xff] %v361
  %392 = vst [vmem:[#allocation2 + $0x80] sm:$0xff] %v362
  %393 = vst [vmem:[#allocation2 + $0x88] sm:$0xff] %v363
  %394 = vst [vmem:[#allocation2 + $0x90] sm:$0xff] %v364
  %395 = vst [vmem:[#allocation2 + $0x98] sm:$0xff] %v365
  %396 = vst [vmem:[#allocation2 + $0xa0] sm:$0xff] %v366
  %397 = vst [vmem:[#allocation2 + $0xa8] sm:$0xff] %v367
  %398 = vst [vmem:[#allocation2 + $0xb0] sm:$0xff] %v368
  %399 = vst [vmem:[#allocation2 + $0xb8] sm:$0xff] %v369
  %400 = vst [vmem:[#allocation2 + $0xc0] sm:$0xff] %v370
  %401 = vst [vmem:[#allocation2 + $0xc8] sm:$0xff] %v371
  %402 = vst [vmem:[#allocation2 + $0xd0] sm:$0xff] %v372
  %403 = vst [vmem:[#allocation2 + $0xd8] sm:$0xff] %v373
  %404 = vst [vmem:[#allocation2 + $0xe0] sm:$0xff] %v374
  %405 = vst [vmem:[#allocation2 + $0xe8] sm:$0xff] %v375
  // Predicated region
  $region18: #{stcl_act_forward.31} parent=0 // pred_check
    %p406 = pneg %p14
  $region19: #{stcl_act_forward.31} parent=0 // pred_check_branch
    %408 = sbr.rel (%p406) target = $region21
  $region20: #{stcl_act_forward.31} parent=0 // pred_region
    %v409 = vld [vmem:[#allocation2] sm:$0xff]
    %v410 = vld [vmem:[#allocation2 + $0x8] sm:$0xff]
    %v411 = vld [vmem:[#allocation2 + $0x10] sm:$0xff]
    %v412 = vld [vmem:[#allocation2 + $0x18] sm:$0xff]
    %v413 = vld [vmem:[#allocation2 + $0x20] sm:$0xff]
    %v414 = vld [vmem:[#allocation2 + $0x28] sm:$0xff]
    %v415 = vld [vmem:[#allocation2 + $0x30] sm:$0xff]
    %v416 = vld [vmem:[#allocation2 + $0x38] sm:$0xff]
    %v417 = vld [vmem:[#allocation2 + $0x40] sm:$0xff]
    %v418 = vld [vmem:[#allocation2 + $0x48] sm:$0xff]
    %v419 = vld [vmem:[#allocation2 + $0x50] sm:$0xff]
    %v420 = vld [vmem:[#allocation2 + $0x58] sm:$0xff]
    %v421 = vld [vmem:[#allocation2 + $0x60] sm:$0xff]
    %v422 = vld [vmem:[#allocation2 + $0x68] sm:$0xff]
    %v423 = vld [vmem:[#allocation2 + $0x70] sm:$0xff]
    %v424 = vld [vmem:[#allocation2 + $0x78] sm:$0xff]
    %v425 = vld [vmem:[#allocation2 + $0x80] sm:$0xff]
    %v426 = vld [vmem:[#allocation2 + $0x88] sm:$0xff]
    %v427 = vld [vmem:[#allocation2 + $0x90] sm:$0xff]
    %v428 = vld [vmem:[#allocation2 + $0x98] sm:$0xff]
    %v429 = vld [vmem:[#allocation2 + $0xa0] sm:$0xff]
    %v430 = vld [vmem:[#allocation2 + $0xa8] sm:$0xff]
    %v431 = vld [vmem:[#allocation2 + $0xb0] sm:$0xff]
    %v432 = vld [vmem:[#allocation2 + $0xb8] sm:$0xff]
    %v433 = vld [vmem:[#allocation2 + $0xc0] sm:$0xff]
    %v434 = vld [vmem:[#allocation2 + $0xc8] sm:$0xff]
    %v435 = vld [vmem:[#allocation2 + $0xd0] sm:$0xff]
    %v436 = vld [vmem:[#allocation2 + $0xd8] sm:$0xff]
    %v437 = vld [vmem:[#allocation2 + $0xe0] sm:$0xff]
    %v438 = vld [vmem:[#allocation2 + $0xe8] sm:$0xff]
    %v439 = vld [vmem:[%s2] sm:$0x1]
    %v441 = vperm.slane %v439, 0
    %v443 = vadd.f32 %v409, %v441
    %v444 = vadd.f32 %v410, %v441
    %v445 = vadd.f32 %v411, %v441
    %v446 = vadd.f32 %v412, %v441
    %v447 = vadd.f32 %v413, %v441
    %v448 = vadd.f32 %v414, %v441
    %v449 = vadd.f32 %v415, %v441
    %v450 = vadd.f32 %v416, %v441
    %v451 = vadd.f32 %v417, %v441
    %v452 = vadd.f32 %v418, %v441
    %v453 = vadd.f32 %v419, %v441
    %v454 = vadd.f32 %v420, %v441
    %v455 = vadd.f32 %v421, %v441
    %v456 = vadd.f32 %v422, %v441
    %v457 = vadd.f32 %v423, %v441
    %v458 = vadd.f32 %v424, %v441
    %v459 = vadd.f32 %v425, %v441
    %v460 = vadd.f32 %v426, %v441
    %v461 = vadd.f32 %v427, %v441
    %v462 = vadd.f32 %v428, %v441
    %v463 = vadd.f32 %v429, %v441
    %v464 = vadd.f32 %v430, %v441
    %v465 = vadd.f32 %v431, %v441
    %v466 = vadd.f32 %v432, %v441
    %v467 = vadd.f32 %v433, %v441
    %v468 = vadd.f32 %v434, %v441
    %v469 = vadd.f32 %v435, %v441
    %v470 = vadd.f32 %v436, %v441
    %v471 = vadd.f32 %v437, %v441
    %v472 = vadd.f32 %v438, %v441
    %vm473 = vcmp.ge.f32.partialorder %v443, 0.0
    %vm474 = vcmp.ge.f32.partialorder %v444, 0.0
    %vm475 = vcmp.ge.f32.partialorder %v445, 0.0
    %vm476 = vcmp.ge.f32.partialorder %v446, 0.0
    %vm477 = vcmp.ge.f32.partialorder %v447, 0.0
    %vm478 = vcmp.ge.f32.partialorder %v448, 0.0
    %vm479 = vcmp.ge.f32.partialorder %v449, 0.0
    %vm480 = vcmp.ge.f32.partialorder %v450, 0.0
    %vm481 = vcmp.ge.f32.partialorder %v451, 0.0
    %vm482 = vcmp.ge.f32.partialorder %v452, 0.0
    %vm483 = vcmp.ge.f32.partialorder %v453, 0.0
    %vm484 = vcmp.ge.f32.partialorder %v454, 0.0
    %vm485 = vcmp.ge.f32.partialorder %v455, 0.0
    %vm486 = vcmp.ge.f32.partialorder %v456, 0.0
    %vm487 = vcmp.ge.f32.partialorder %v457, 0.0
    %vm488 = vcmp.ge.f32.partialorder %v458, 0.0
    %vm489 = vcmp.ge.f32.partialorder %v459, 0.0
    %vm490 = vcmp.ge.f32.partialorder %v460, 0.0
    %vm491 = vcmp.ge.f32.partialorder %v461, 0.0
    %vm492 = vcmp.ge.f32.partialorder %v462, 0.0
    %vm493 = vcmp.ge.f32.partialorder %v463, 0.0
    %vm494 = vcmp.ge.f32.partialorder %v464, 0.0
    %vm495 = vcmp.ge.f32.partialorder %v465, 0.0
    %vm496 = vcmp.ge.f32.partialorder %v466, 0.0
    %vm497 = vcmp.ge.f32.partialorder %v467, 0.0
    %vm498 = vcmp.ge.f32.partialorder %v468, 0.0
    %vm499 = vcmp.ge.f32.partialorder %v469, 0.0
    %vm500 = vcmp.ge.f32.partialorder %v470, 0.0
    %vm501 = vcmp.ge.f32.partialorder %v471, 0.0
    %vm502 = vcmp.ge.f32.partialorder %v472, 0.0
    %v503 = vmul.f32 %v443, 0.2
    %v504 = vmul.f32 %v444, 0.2
    %v505 = vmul.f32 %v445, 0.2
    %v506 = vmul.f32 %v446, 0.2
    %v507 = vmul.f32 %v447, 0.2
    %v508 = vmul.f32 %v448, 0.2
    %v509 = vmul.f32 %v449, 0.2
    %v510 = vmul.f32 %v450, 0.2
    %v511 = vmul.f32 %v451, 0.2
    %v512 = vmul.f32 %v452, 0.2
    %v513 = vmul.f32 %v453, 0.2
    %v514 = vmul.f32 %v454, 0.2
    %v515 = vmul.f32 %v455, 0.2
    %v516 = vmul.f32 %v456, 0.2
    %v517 = vmul.f32 %v457, 0.2
    %v518 = vmul.f32 %v458, 0.2
    %v519 = vmul.f32 %v459, 0.2
    %v520 = vmul.f32 %v460, 0.2
    %v521 = vmul.f32 %v461, 0.2
    %v522 = vmul.f32 %v462, 0.2
    %v523 = vmul.f32 %v463, 0.2
    %v524 = vmul.f32 %v464, 0.2
    %v525 = vmul.f32 %v465, 0.2
    %v526 = vmul.f32 %v466, 0.2
    %v527 = vmul.f32 %v467, 0.2
    %v528 = vmul.f32 %v468, 0.2
    %v529 = vmul.f32 %v469, 0.2
    %v530 = vmul.f32 %v470, 0.2
    %v531 = vmul.f32 %v471, 0.2
    %v532 = vmul.f32 %v472, 0.2
    %v533 = vsel %vm473, %v443, %v503
    %v534 = vsel %vm474, %v444, %v504
    %v535 = vsel %vm475, %v445, %v505
    %v536 = vsel %vm476, %v446, %v506
    %v537 = vsel %vm477, %v447, %v507
    %v538 = vsel %vm478, %v448, %v508
    %v539 = vsel %vm479, %v449, %v509
    %v540 = vsel %vm480, %v450, %v510
    %v541 = vsel %vm481, %v451, %v511
    %v542 = vsel %vm482, %v452, %v512
    %v543 = vsel %vm483, %v453, %v513
    %v544 = vsel %vm484, %v454, %v514
    %v545 = vsel %vm485, %v455, %v515
    %v546 = vsel %vm486, %v456, %v516
    %v547 = vsel %vm487, %v457, %v517
    %v548 = vsel %vm488, %v458, %v518
    %v549 = vsel %vm489, %v459, %v519
    %v550 = vsel %vm490, %v460, %v520
    %v551 = vsel %vm491, %v461, %v521
    %v552 = vsel %vm492, %v462, %v522
    %v553 = vsel %vm493, %v463, %v523
    %v554 = vsel %vm494, %v464, %v524
    %v555 = vsel %vm495, %v465, %v525
    %v556 = vsel %vm496, %v466, %v526
    %v557 = vsel %vm497, %v467, %v527
    %v558 = vsel %vm498, %v468, %v528
    %v559 = vsel %vm499, %v469, %v529
    %v560 = vsel %vm500, %v470, %v530
    %v561 = vsel %vm501, %v471, %v531
    %v562 = vsel %vm502, %v472, %v532
    %563 = vst [vmem:[%s3] sm:$0xff] %v533
    %564 = vst [vmem:[%s3 + $0x8] sm:$0xff] %v534
    %565 = vst [vmem:[%s3 + $0x10] sm:$0xff] %v535
    %566 = vst [vmem:[%s3 + $0x18] sm:$0xff] %v536
    %567 = vst [vmem:[%s3 + $0x20] sm:$0xff] %v537
    %568 = vst [vmem:[%s3 + $0x28] sm:$0xff] %v538
    %569 = vst [vmem:[%s3 + $0x30] sm:$0xff] %v539
    %570 = vst [vmem:[%s3 + $0x38] sm:$0xff] %v540
    %571 = vst [vmem:[%s3 + $0x40] sm:$0xff] %v541
    %572 = vst [vmem:[%s3 + $0x48] sm:$0xff] %v542
    %573 = vst [vmem:[%s3 + $0x50] sm:$0xff] %v543
    %574 = vst [vmem:[%s3 + $0x58] sm:$0xff] %v544
    %575 = vst [vmem:[%s3 + $0x60] sm:$0xff] %v545
    %576 = vst [vmem:[%s3 + $0x68] sm:$0xff] %v546
    %577 = vst [vmem:[%s3 + $0x70] sm:$0xff] %v547
    %578 = vst [vmem:[%s3 + $0x78] sm:$0xff] %v548
    %579 = vst [vmem:[%s3 + $0x80] sm:$0xff] %v549
    %580 = vst [vmem:[%s3 + $0x88] sm:$0xff] %v550
    %581 = vst [vmem:[%s3 + $0x90] sm:$0xff] %v551
    %582 = vst [vmem:[%s3 + $0x98] sm:$0xff] %v552
    %583 = vst [vmem:[%s3 + $0xa0] sm:$0xff] %v553
    %584 = vst [vmem:[%s3 + $0xa8] sm:$0xff] %v554
    %585 = vst [vmem:[%s3 + $0xb0] sm:$0xff] %v555
    %586 = vst [vmem:[%s3 + $0xb8] sm:$0xff] %v556
    %587 = vst [vmem:[%s3 + $0xc0] sm:$0xff] %v557
    %588 = vst [vmem:[%s3 + $0xc8] sm:$0xff] %v558
    %589 = vst [vmem:[%s3 + $0xd0] sm:$0xff] %v559
    %590 = vst [vmem:[%s3 + $0xd8] sm:$0xff] %v560
    %591 = vst [vmem:[%s3 + $0xe0] sm:$0xff] %v561
    %592 = vst [vmem:[%s3 + $0xe8] sm:$0xff] %v562
  $region21: #{stcl_act_forward.31} parent=0 // pred_fallthru
    _
  // Predicated region
  $region22: #{stcl_act_forward.31} parent=0 // pred_check
    _
  $region23: #{stcl_act_forward.31} parent=0 // pred_check_branch
    %594 = sbr.rel (0) target = $region25
  $region24: #{stcl_act_forward.31} parent=0 // pred_region
    _
  $region25: #{stcl_act_forward.31} parent=0 // pred_fallthru
    _
  // Predicated region
  $region26: #{stcl_act_forward.31} parent=0 // pred_check
    _
  $region27: #{stcl_act_forward.31} parent=0 // pred_check_branch
    %596 = sbr.rel (0) target = $region29
  $region28: #{stcl_act_forward.31} parent=0 // pred_region
    _
  $region29: #{stcl_act_forward.31} parent=0 // pred_fallthru
    _

// kernel: sub.5
$region0: #{sub.5}
  %s0 = inlined_call_operand.vmem [shape: f32[240], index: 0, kind: input, shape index: {}]
  %s1 = inlined_call_operand.vmem [shape: f32[15,16], index: 1, kind: output, shape index: {}]
  $region1: #{sub.5} parent=0
    #allocation0 [shape = 'u8[4096]{0}', space=vmem, size = 0x1000, scoped, tag = 'scoped mem for input reshape']
    %s3 = ssub.s32 4, 1
    %v4 = vld [vmem:[%s0] sm:%s3]
    %5 = vst [vmem:[#allocation0] sm:%s3] %v4
    %v6 = vld [vmem:[#allocation0] sm:$0x3]
    %vm7 = vcmask 130048
    %8 = vst.msk [vmem:[%s1] ss:$8 sm:$0x3] %vm7, %v6
    %v9 = vld [vmem:[#allocation0] sm:$0x3]
    %10 = vrot.lane.b32.xlu0 %v9, 112
    %v11 = vpop.permute.xlu0 %10
    %vm12 = vcmask 130048
    %s13 = scalar_lea.vmem %s1, 1
    %14 = vst.msk [vmem:[%s13] ss:$8 sm:$0x3] %vm12, %v11
    %v15 = vld [vmem:[#allocation0] sm:$0x3]
    %16 = vrot.lane.b32.xlu0 %v15, 96
    %v17 = vpop.permute.xlu0 %16
    %vm18 = vcmask 130048
    %s19 = scalar_lea.vmem %s1, 2
    %20 = vst.msk [vmem:[%s19] ss:$8 sm:$0x3] %vm18, %v17
    %v21 = vld [vmem:[#allocation0] sm:$0x3]
    %22 = vrot.lane.b32.xlu0 %v21, 80
    %v23 = vpop.permute.xlu0 %22
    %vm24 = vcmask 130048
    %s25 = scalar_lea.vmem %s1, 3
    %26 = vst.msk [vmem:[%s25] ss:$8 sm:$0x3] %vm24, %v23
    %v27 = vld [vmem:[#allocation0] sm:$0x3]
    %28 = vrot.lane.b32.xlu0 %v27, 64
    %v29 = vpop.permute.xlu0 %28
    %vm30 = vcmask 130048
    %s31 = scalar_lea.vmem %s1, 4
    %32 = vst.msk [vmem:[%s31] ss:$8 sm:$0x3] %vm30, %v29
    %v33 = vld [vmem:[#allocation0] sm:$0x3]
    %34 = vrot.lane.b32.xlu0 %v33, 48
    %v35 = vpop.permute.xlu0 %34
    %vm36 = vcmask 130048
    %s37 = scalar_lea.vmem %s1, 5
    %38 = vst.msk [vmem:[%s37] ss:$8 sm:$0x3] %vm36, %v35
    %v39 = vld [vmem:[#allocation0] sm:$0x3]
    %40 = vrot.lane.b32.xlu0 %v39, 32
    %v41 = vpop.permute.xlu0 %40
    %vm42 = vcmask 130048
    %s43 = scalar_lea.vmem %s1, 6
    %44 = vst.msk [vmem:[%s43] ss:$8 sm:$0x3] %vm42, %v41
    %v45 = vld [vmem:[#allocation0] sm:$0x1]
    %46 = vrot.lane.b32.xlu0 %v45, 16
    %v47 = vpop.permute.xlu0 %46
    %vm48 = vcmask 130048
    %s49 = scalar_lea.vmem %s1, 7
    %50 = vst.msk [vmem:[%s49] sm:$0x1] %vm48, %v47

// kernel: stcl_act_forward.32
$region0: #{stcl_act_forward.32}
  #allocation0 [shape = 'u32[]', space=smem, size = 0x4, offset = 0x4, fixed_abs, tag = 'smem constant byte address 0x4 - core index']
  #allocation1 [shape = 'u32[72,128]{1,0:T(1,128)}', space=vmem, size = 0x9000, scoped, tag = 'internal scratch']
  #allocation2 [shape = 'f32[240,128]{1,0:T(8,128)}', space=vmem, size = 0x1e000, scoped, tag = 'scratch operand']
  %s0 = inlined_call_operand.vmem [shape: bf16[240,256], index: 0, kind: input, shape index: {}]
  %s1 = inlined_call_operand.vmem [shape: bf16[256,128], index: 1, kind: input, shape index: {}]
  %s2 = inlined_call_operand.vmem [shape: f32[1,128], index: 2, kind: input, shape index: {}]
  %s3 = inlined_call_operand.vmem [shape: f32[240,128], index: 3, kind: output, shape index: {}]
  %s4 = sld [smem:[#allocation0]]
  $region30: #{stcl_act_forward.32} parent=0
    _
  %s6 = ssub.s32 1, %s4
  %s7 = scalar_select 0, %s6, %s4
  // Predicated region
  $region2: #{stcl_act_forward.32} parent=0 // pred_check
    _
  $region3: #{stcl_act_forward.32} parent=0 // pred_check_branch
    %9 = sbr.rel (0) target = $region5
  $region4: #{stcl_act_forward.32} parent=0 // pred_region
    _
  $region5: #{stcl_act_forward.32} parent=0 // pred_fallthru
    _
  // Predicated region
  $region6: #{stcl_act_forward.32} parent=0 // pred_check
    _
  $region7: #{stcl_act_forward.32} parent=0 // pred_check_branch
    %11 = sbr.rel (0) target = $region9
  $region8: #{stcl_act_forward.32} parent=0 // pred_region
    _
  $region9: #{stcl_act_forward.32} parent=0 // pred_fallthru
    _
  // Predicated region
  $region10: #{stcl_act_forward.32} parent=0 // pred_check
    _
  $region11: #{stcl_act_forward.32} parent=0 // pred_check_branch
    %13 = sbr.rel (0) target = $region13
  $region12: #{stcl_act_forward.32} parent=0 // pred_region
    _
  $region13: #{stcl_act_forward.32} parent=0 // pred_fallthru
    _
  %p14 = scmp.eq.s32.totalorder 0, 0
  // Predicated region
  $region14: #{stcl_act_forward.32} parent=0 // pred_check
    %p15 = pneg %p14
  $region15: #{stcl_act_forward.32} parent=0 // pred_check_branch
    %17 = sbr.rel (%p15) target = $region17
  $region16: #{stcl_act_forward.32} parent=0 // pred_region
    %18 = vst [vmem:[#allocation2] sm:$0xff] 0.0
    %19 = vst [vmem:[#allocation2 + $0x8] sm:$0xff] 0.0
    %20 = vst [vmem:[#allocation2 + $0x10] sm:$0xff] 0.0
    %21 = vst [vmem:[#allocation2 + $0x18] sm:$0xff] 0.0
    %22 = vst [vmem:[#allocation2 + $0x20] sm:$0xff] 0.0
    %23 = vst [vmem:[#allocation2 + $0x28] sm:$0xff] 0.0
    %24 = vst [vmem:[#allocation2 + $0x30] sm:$0xff] 0.0
    %25 = vst [vmem:[#allocation2 + $0x38] sm:$0xff] 0.0
    %26 = vst [vmem:[#allocation2 + $0x40] sm:$0xff] 0.0
    %27 = vst [vmem:[#allocation2 + $0x48] sm:$0xff] 0.0
    %28 = vst [vmem:[#allocation2 + $0x50] sm:$0xff] 0.0
    %29 = vst [vmem:[#allocation2 + $0x58] sm:$0xff] 0.0
    %30 = vst [vmem:[#allocation2 + $0x60] sm:$0xff] 0.0
    %31 = vst [vmem:[#allocation2 + $0x68] sm:$0xff] 0.0
    %32 = vst [vmem:[#allocation2 + $0x70] sm:$0xff] 0.0
    %33 = vst [vmem:[#allocation2 + $0x78] sm:$0xff] 0.0
    %34 = vst [vmem:[#allocation2 + $0x80] sm:$0xff] 0.0
    %35 = vst [vmem:[#allocation2 + $0x88] sm:$0xff] 0.0
    %36 = vst [vmem:[#allocation2 + $0x90] sm:$0xff] 0.0
    %37 = vst [vmem:[#allocation2 + $0x98] sm:$0xff] 0.0
    %38 = vst [vmem:[#allocation2 + $0xa0] sm:$0xff] 0.0
    %39 = vst [vmem:[#allocation2 + $0xa8] sm:$0xff] 0.0
    %40 = vst [vmem:[#allocation2 + $0xb0] sm:$0xff] 0.0
    %41 = vst [vmem:[#allocation2 + $0xb8] sm:$0xff] 0.0
    %42 = vst [vmem:[#allocation2 + $0xc0] sm:$0xff] 0.0
    %43 = vst [vmem:[#allocation2 + $0xc8] sm:$0xff] 0.0
    %44 = vst [vmem:[#allocation2 + $0xd0] sm:$0xff] 0.0
    %45 = vst [vmem:[#allocation2 + $0xd8] sm:$0xff] 0.0
    %46 = vst [vmem:[#allocation2 + $0xe0] sm:$0xff] 0.0
    %47 = vst [vmem:[#allocation2 + $0xe8] sm:$0xff] 0.0
  $region17: #{stcl_act_forward.32} parent=0 // pred_fallthru
    _
  %v48 = vld [vmem:[#allocation2] sm:$0xff]
  %v49 = vld [vmem:[#allocation2 + $0x8] sm:$0xff]
  %v50 = vld [vmem:[#allocation2 + $0x10] sm:$0xff]
  %v51 = vld [vmem:[#allocation2 + $0x18] sm:$0xff]
  %v52 = vld [vmem:[#allocation2 + $0x20] sm:$0xff]
  %v53 = vld [vmem:[#allocation2 + $0x28] sm:$0xff]
  %v54 = vld [vmem:[#allocation2 + $0x30] sm:$0xff]
  %v55 = vld [vmem:[#allocation2 + $0x38] sm:$0xff]
  %v56 = vld [vmem:[#allocation2 + $0x40] sm:$0xff]
  %v57 = vld [vmem:[#allocation2 + $0x48] sm:$0xff]
  %v58 = vld [vmem:[#allocation2 + $0x50] sm:$0xff]
  %v59 = vld [vmem:[#allocation2 + $0x58] sm:$0xff]
  %v60 = vld [vmem:[#allocation2 + $0x60] sm:$0xff]
  %v61 = vld [vmem:[#allocation2 + $0x68] sm:$0xff]
  %v62 = vld [vmem:[#allocation2 + $0x70] sm:$0xff]
  %v63 = vld [vmem:[#allocation2 + $0x78] sm:$0xff]
  %v64 = vld [vmem:[#allocation2 + $0x80] sm:$0xff]
  %v65 = vld [vmem:[#allocation2 + $0x88] sm:$0xff]
  %v66 = vld [vmem:[#allocation2 + $0x90] sm:$0xff]
  %v67 = vld [vmem:[#allocation2 + $0x98] sm:$0xff]
  %v68 = vld [vmem:[#allocation2 + $0xa0] sm:$0xff]
  %v69 = vld [vmem:[#allocation2 + $0xa8] sm:$0xff]
  %v70 = vld [vmem:[#allocation2 + $0xb0] sm:$0xff]
  %v71 = vld [vmem:[#allocation2 + $0xb8] sm:$0xff]
  %v72 = vld [vmem:[#allocation2 + $0xc0] sm:$0xff]
  %v73 = vld [vmem:[#allocation2 + $0xc8] sm:$0xff]
  %v74 = vld [vmem:[#allocation2 + $0xd0] sm:$0xff]
  %v75 = vld [vmem:[#allocation2 + $0xd8] sm:$0xff]
  %v76 = vld [vmem:[#allocation2 + $0xe0] sm:$0xff]
  %v77 = vld [vmem:[#allocation2 + $0xe8] sm:$0xff]
  %v78 = vld [vmem:[%s0] sm:$0xff]
  %v79 = vld [vmem:[%s0 + $0x8] sm:$0xff]
  %v80 = vld [vmem:[%s0 + $0x10] sm:$0xff]
  %v81 = vld [vmem:[%s0 + $0x18] sm:$0xff]
  %v82 = vld [vmem:[%s0 + $0x20] sm:$0xff]
  %v83 = vld [vmem:[%s0 + $0x28] sm:$0xff]
  %v84 = vld [vmem:[%s0 + $0x30] sm:$0xff]
  %v85 = vld [vmem:[%s0 + $0x38] sm:$0xff]
  %v86 = vld [vmem:[%s0 + $0x40] sm:$0xff]
  %v87 = vld [vmem:[%s0 + $0x48] sm:$0xff]
  %v88 = vld [vmem:[%s0 + $0x50] sm:$0xff]
  %v89 = vld [vmem:[%s0 + $0x58] sm:$0xff]
  %v90 = vld [vmem:[%s0 + $0x60] sm:$0xff]
  %v91 = vld [vmem:[%s0 + $0x68] sm:$0xff]
  %v92 = vld [vmem:[%s0 + $0x70] sm:$0xff]
  %v93 = vld [vmem:[%s0 + $0x78] sm:$0xff]
  %v94 = vld [vmem:[%s0 + $0x80] sm:$0xff]
  %v95 = vld [vmem:[%s0 + $0x88] sm:$0xff]
  %v96 = vld [vmem:[%s0 + $0x90] sm:$0xff]
  %v97 = vld [vmem:[%s0 + $0x98] sm:$0xff]
  %v98 = vld [vmem:[%s0 + $0xa0] sm:$0xff]
  %v99 = vld [vmem:[%s0 + $0xa8] sm:$0xff]
  %v100 = vld [vmem:[%s0 + $0xb0] sm:$0xff]
  %v101 = vld [vmem:[%s0 + $0xb8] sm:$0xff]
  %v102 = vld [vmem:[%s0 + $0xc0] sm:$0xff]
  %v103 = vld [vmem:[%s0 + $0xc8] sm:$0xff]
  %v104 = vld [vmem:[%s0 + $0xd0] sm:$0xff]
  %v105 = vld [vmem:[%s0 + $0xd8] sm:$0xff]
  %v106 = vld [vmem:[%s0 + $0xe0] sm:$0xff]
  %v107 = vld [vmem:[%s0 + $0xe8] sm:$0xff]
  %v108 = vld [vmem:[%s1] sm:$0xf]
  %v109 = vld [vmem:[%s1 + $0x4] sm:$0xf]
  %v110 = vld [vmem:[%s1 + $0x8] sm:$0xf]
  %v111 = vld [vmem:[%s1 + $0xc] sm:$0xf]
  %v112 = vld [vmem:[%s1 + $0x10] sm:$0xf]
  %v113 = vld [vmem:[%s1 + $0x14] sm:$0xf]
  %v114 = vld [vmem:[%s1 + $0x18] sm:$0xf]
  %v115 = vld [vmem:[%s1 + $0x1c] sm:$0xf]
  %v116 = vld [vmem:[%s1 + $0x20] sm:$0xf]
  %v117 = vld [vmem:[%s1 + $0x24] sm:$0xf]
  %v118 = vld [vmem:[%s1 + $0x28] sm:$0xf]
  %v119 = vld [vmem:[%s1 + $0x2c] sm:$0xf]
  %v120 = vld [vmem:[%s1 + $0x30] sm:$0xf]
  %v121 = vld [vmem:[%s1 + $0x34] sm:$0xf]
  %v122 = vld [vmem:[%s1 + $0x38] sm:$0xf]
  %v123 = vld [vmem:[%s1 + $0x3c] sm:$0xf]
  %v124 = vld [vmem:[%s1 + $0x40] sm:$0xf]
  %v125 = vld [vmem:[%s1 + $0x44] sm:$0xf]
  %v126 = vld [vmem:[%s1 + $0x48] sm:$0xf]
  %v127 = vld [vmem:[%s1 + $0x4c] sm:$0xf]
  %v128 = vld [vmem:[%s1 + $0x50] sm:$0xf]
  %v129 = vld [vmem:[%s1 + $0x54] sm:$0xf]
  %v130 = vld [vmem:[%s1 + $0x58] sm:$0xf]
  %v131 = vld [vmem:[%s1 + $0x5c] sm:$0xf]
  %v132 = vld [vmem:[%s1 + $0x60] sm:$0xf]
  %v133 = vld [vmem:[%s1 + $0x64] sm:$0xf]
  %v134 = vld [vmem:[%s1 + $0x68] sm:$0xf]
  %v135 = vld [vmem:[%s1 + $0x6c] sm:$0xf]
  %v136 = vld [vmem:[%s1 + $0x70] sm:$0xf]
  %v137 = vld [vmem:[%s1 + $0x74] sm:$0xf]
  %v138 = vld [vmem:[%s1 + $0x78] sm:$0xf]
  %v139 = vld [vmem:[%s1 + $0x7c] sm:$0xf]
  %v170 = vunpack.c.l.b16 %v78
  %v171 = vunpack.c.h.b16 %v78
  %v172 = vunpack.c.l.b16 %v79
  %v173 = vunpack.c.h.b16 %v79
  %v174 = vunpack.c.l.b16 %v80
  %v175 = vunpack.c.h.b16 %v80
  %v176 = vunpack.c.l.b16 %v81
  %v177 = vunpack.c.h.b16 %v81
  %v178 = vunpack.c.l.b16 %v82
  %v179 = vunpack.c.h.b16 %v82
  %v180 = vunpack.c.l.b16 %v83
  %v181 = vunpack.c.h.b16 %v83
  %v182 = vunpack.c.l.b16 %v84
  %v183 = vunpack.c.h.b16 %v84
  %v184 = vunpack.c.l.b16 %v85
  %v185 = vunpack.c.h.b16 %v85
  %v186 = vunpack.c.l.b16 %v86
  %v187 = vunpack.c.h.b16 %v86
  %v188 = vunpack.c.l.b16 %v87
  %v189 = vunpack.c.h.b16 %v87
  %v190 = vunpack.c.l.b16 %v88
  %v191 = vunpack.c.h.b16 %v88
  %v192 = vunpack.c.l.b16 %v89
  %v193 = vunpack.c.h.b16 %v89
  %v194 = vunpack.c.l.b16 %v90
  %v195 = vunpack.c.h.b16 %v90
  %v196 = vunpack.c.l.b16 %v91
  %v197 = vunpack.c.h.b16 %v91
  %v198 = vunpack.c.l.b16 %v92
  %v199 = vunpack.c.h.b16 %v92
  %v200 = vunpack.c.l.b16 %v93
  %v201 = vunpack.c.h.b16 %v93
  %v202 = vunpack.c.l.b16 %v94
  %v203 = vunpack.c.h.b16 %v94
  %v204 = vunpack.c.l.b16 %v95
  %v205 = vunpack.c.h.b16 %v95
  %v206 = vunpack.c.l.b16 %v96
  %v207 = vunpack.c.h.b16 %v96
  %v208 = vunpack.c.l.b16 %v97
  %v209 = vunpack.c.h.b16 %v97
  %v210 = vunpack.c.l.b16 %v98
  %v211 = vunpack.c.h.b16 %v98
  %v212 = vunpack.c.l.b16 %v99
  %v213 = vunpack.c.h.b16 %v99
  %v214 = vunpack.c.l.b16 %v100
  %v215 = vunpack.c.h.b16 %v100
  %v216 = vunpack.c.l.b16 %v101
  %v217 = vunpack.c.h.b16 %v101
  %v218 = vunpack.c.l.b16 %v102
  %v219 = vunpack.c.h.b16 %v102
  %v220 = vunpack.c.l.b16 %v103
  %v221 = vunpack.c.h.b16 %v103
  %v222 = vunpack.c.l.b16 %v104
  %v223 = vunpack.c.h.b16 %v104
  %v224 = vunpack.c.l.b16 %v105
  %v225 = vunpack.c.h.b16 %v105
  %v226 = vunpack.c.l.b16 %v106
  %v227 = vunpack.c.h.b16 %v106
  %v228 = vunpack.c.l.b16 %v107
  %v229 = vunpack.c.h.b16 %v107
  %v230 = vpack.c.b16 %v172, %v170
  %v231 = vpack.c.b16 %v173, %v171
  %v232 = vpack.c.b16 %v176, %v174
  %v233 = vpack.c.b16 %v177, %v175
  %v234 = vpack.c.b16 %v180, %v178
  %v235 = vpack.c.b16 %v181, %v179
  %v236 = vpack.c.b16 %v184, %v182
  %v237 = vpack.c.b16 %v185, %v183
  %v238 = vpack.c.b16 %v188, %v186
  %v239 = vpack.c.b16 %v189, %v187
  %v240 = vpack.c.b16 %v192, %v190
  %v241 = vpack.c.b16 %v193, %v191
  %v242 = vpack.c.b16 %v196, %v194
  %v243 = vpack.c.b16 %v197, %v195
  %v244 = vpack.c.b16 %v200, %v198
  %v245 = vpack.c.b16 %v201, %v199
  %v246 = vpack.c.b16 %v204, %v202
  %v247 = vpack.c.b16 %v205, %v203
  %v248 = vpack.c.b16 %v208, %v206
  %v249 = vpack.c.b16 %v209, %v207
  %v250 = vpack.c.b16 %v212, %v210
  %v251 = vpack.c.b16 %v213, %v211
  %v252 = vpack.c.b16 %v216, %v214
  %v253 = vpack.c.b16 %v217, %v215
  %v254 = vpack.c.b16 %v220, %v218
  %v255 = vpack.c.b16 %v221, %v219
  %v256 = vpack.c.b16 %v224, %v222
  %v257 = vpack.c.b16 %v225, %v223
  %v258 = vpack.c.b16 %v228, %v226
  %v259 = vpack.c.b16 %v229, %v227
  %v322 = vunpack.c.l.b16 %v108
  %v323 = vunpack.c.l.b16 %v109
  %v324 = vunpack.c.l.b16 %v110
  %v325 = vunpack.c.l.b16 %v111
  %v326 = vunpack.c.l.b16 %v112
  %v327 = vunpack.c.l.b16 %v113
  %v328 = vunpack.c.l.b16 %v114
  %v329 = vunpack.c.l.b16 %v115
  %v330 = vunpack.c.l.b16 %v116
  %v331 = vunpack.c.l.b16 %v117
  %v332 = vunpack.c.l.b16 %v118
  %v333 = vunpack.c.l.b16 %v119
  %v334 = vunpack.c.l.b16 %v120
  %v335 = vunpack.c.l.b16 %v121
  %v336 = vunpack.c.l.b16 %v122
  %v337 = vunpack.c.l.b16 %v123
  %v338 = vunpack.c.l.b16 %v124
  %v339 = vunpack.c.l.b16 %v125
  %v340 = vunpack.c.l.b16 %v126
  %v341 = vunpack.c.l.b16 %v127
  %v342 = vunpack.c.l.b16 %v128
  %v343 = vunpack.c.l.b16 %v129
  %v344 = vunpack.c.l.b16 %v130
  %v345 = vunpack.c.l.b16 %v131
  %v346 = vunpack.c.l.b16 %v132
  %v347 = vunpack.c.l.b16 %v133
  %v348 = vunpack.c.l.b16 %v134
  %v349 = vunpack.c.l.b16 %v135
  %v350 = vunpack.c.l.b16 %v136
  %v351 = vunpack.c.l.b16 %v137
  %v352 = vunpack.c.l.b16 %v138
  %v353 = vunpack.c.l.b16 %v139
  %v354 = vpack.c.b16 %v323, %v322
  %v355 = vpack.c.b16 %v325, %v324
  %v356 = vpack.c.b16 %v327, %v326
  %v357 = vpack.c.b16 %v329, %v328
  %v358 = vpack.c.b16 %v331, %v330
  %v359 = vpack.c.b16 %v333, %v332
  %v360 = vpack.c.b16 %v335, %v334
  %v361 = vpack.c.b16 %v337, %v336
  %v362 = vpack.c.b16 %v339, %v338
  %v363 = vpack.c.b16 %v341, %v340
  %v364 = vpack.c.b16 %v343, %v342
  %v365 = vpack.c.b16 %v345, %v344
  %v366 = vpack.c.b16 %v347, %v346
  %v367 = vpack.c.b16 %v349, %v348
  %v368 = vpack.c.b16 %v351, %v350
  %v369 = vpack.c.b16 %v353, %v352
  %386 = vmatpush.bf16.msra.mxu0 %v361
  %387 = vmatpush.bf16.msra.mxu0 %v360
  %388 = vmatpush.bf16.msra.mxu0 %v359
  %389 = vmatpush.bf16.msra.mxu0 %v358
  %390 = vmatpush.bf16.msra.mxu0 %v357
  %391 = vmatpush.bf16.msra.mxu0 %v356
  %392 = vmatpush.bf16.msra.mxu0 %v355
  %393 = vmatpush.bf16.msra.mxu0 %v354
  %394 = vmatmul.bf16.gmra.mxu0 %v230
  %v395 = vpop.f32.mrf.mxu0
  %v396 = vadd.f32 0.0, %v395
  %v397 = vpop.f32.mrf.mxu0
  %v398 = vadd.f32 0.0, %v397
  %399 = vmatmul.bf16.gmra.mxu0 %v232
  %v400 = vpop.f32.mrf.mxu0
  %v401 = vadd.f32 0.0, %v400
  %v402 = vpop.f32.mrf.mxu0
  %v403 = vadd.f32 0.0, %v402
  %404 = vmatmul.bf16.gmra.mxu0 %v234
  %v405 = vpop.f32.mrf.mxu0
  %v406 = vadd.f32 0.0, %v405
  %v407 = vpop.f32.mrf.mxu0
  %v408 = vadd.f32 0.0, %v407
  %409 = vmatmul.bf16.gmra.mxu0 %v236
  %v410 = vpop.f32.mrf.mxu0
  %v411 = vadd.f32 0.0, %v410
  %v412 = vpop.f32.mrf.mxu0
  %v413 = vadd.f32 0.0, %v412
  %414 = vmatmul.bf16.gmra.mxu0 %v238
  %v415 = vpop.f32.mrf.mxu0
  %v416 = vadd.f32 0.0, %v415
  %v417 = vpop.f32.mrf.mxu0
  %v418 = vadd.f32 0.0, %v417
  %419 = vmatmul.bf16.gmra.mxu0 %v240
  %v420 = vpop.f32.mrf.mxu0
  %v421 = vadd.f32 0.0, %v420
  %v422 = vpop.f32.mrf.mxu0
  %v423 = vadd.f32 0.0, %v422
  %424 = vmatmul.bf16.gmra.mxu0 %v242
  %v425 = vpop.f32.mrf.mxu0
  %v426 = vadd.f32 0.0, %v425
  %v427 = vpop.f32.mrf.mxu0
  %v428 = vadd.f32 0.0, %v427
  %429 = vmatmul.bf16.gmra.mxu0 %v244
  %v430 = vpop.f32.mrf.mxu0
  %v431 = vadd.f32 0.0, %v430
  %v432 = vpop.f32.mrf.mxu0
  %v433 = vadd.f32 0.0, %v432
  %434 = vmatmul.bf16.gmra.mxu0 %v246
  %v435 = vpop.f32.mrf.mxu0
  %v436 = vadd.f32 0.0, %v435
  %v437 = vpop.f32.mrf.mxu0
  %v438 = vadd.f32 0.0, %v437
  %439 = vmatmul.bf16.gmra.mxu0 %v248
  %v440 = vpop.f32.mrf.mxu0
  %v441 = vadd.f32 0.0, %v440
  %v442 = vpop.f32.mrf.mxu0
  %v443 = vadd.f32 0.0, %v442
  %444 = vmatmul.bf16.gmra.mxu0 %v250
  %v445 = vpop.f32.mrf.mxu0
  %v446 = vadd.f32 0.0, %v445
  %v447 = vpop.f32.mrf.mxu0
  %v448 = vadd.f32 0.0, %v447
  %449 = vmatmul.bf16.gmra.mxu0 %v252
  %v450 = vpop.f32.mrf.mxu0
  %v451 = vadd.f32 0.0, %v450
  %v452 = vpop.f32.mrf.mxu0
  %v453 = vadd.f32 0.0, %v452
  %454 = vmatmul.bf16.gmra.mxu0 %v254
  %v455 = vpop.f32.mrf.mxu0
  %v456 = vadd.f32 0.0, %v455
  %v457 = vpop.f32.mrf.mxu0
  %v458 = vadd.f32 0.0, %v457
  %459 = vmatmul.bf16.gmra.mxu0 %v256
  %v460 = vpop.f32.mrf.mxu0
  %v461 = vadd.f32 0.0, %v460
  %v462 = vpop.f32.mrf.mxu0
  %v463 = vadd.f32 0.0, %v462
  %464 = vmatmul.bf16.gmra.mxu0 %v258
  %v465 = vpop.f32.mrf.mxu0
  %v466 = vadd.f32 0.0, %v465
  %v467 = vpop.f32.mrf.mxu0
  %v468 = vadd.f32 0.0, %v467
  %469 = vdwg.mxu0
  %470 = vmatpush.bf16.msra.mxu0 %v369
  %471 = vmatpush.bf16.msra.mxu0 %v368
  %472 = vmatpush.bf16.msra.mxu0 %v367
  %473 = vmatpush.bf16.msra.mxu0 %v366
  %474 = vmatpush.bf16.msra.mxu0 %v365
  %475 = vmatpush.bf16.msra.mxu0 %v364
  %476 = vmatpush.bf16.msra.mxu0 %v363
  %477 = vmatpush.bf16.msra.mxu0 %v362
  %478 = vmatmul.bf16.gmra.mxu0 %v231
  %v479 = vpop.f32.mrf.mxu0
  %v480 = vadd.f32 %v396, %v479
  %v481 = vpop.f32.mrf.mxu0
  %v482 = vadd.f32 %v398, %v481
  %483 = vmatmul.bf16.gmra.mxu0 %v233
  %v484 = vpop.f32.mrf.mxu0
  %v485 = vadd.f32 %v401, %v484
  %v486 = vpop.f32.mrf.mxu0
  %v487 = vadd.f32 %v403, %v486
  %488 = vmatmul.bf16.gmra.mxu0 %v235
  %v489 = vpop.f32.mrf.mxu0
  %v490 = vadd.f32 %v406, %v489
  %v491 = vpop.f32.mrf.mxu0
  %v492 = vadd.f32 %v408, %v491
  %493 = vmatmul.bf16.gmra.mxu0 %v237
  %v494 = vpop.f32.mrf.mxu0
  %v495 = vadd.f32 %v411, %v494
  %v496 = vpop.f32.mrf.mxu0
  %v497 = vadd.f32 %v413, %v496
  %498 = vmatmul.bf16.gmra.mxu0 %v239
  %v499 = vpop.f32.mrf.mxu0
  %v500 = vadd.f32 %v416, %v499
  %v501 = vpop.f32.mrf.mxu0
  %v502 = vadd.f32 %v418, %v501
  %503 = vmatmul.bf16.gmra.mxu0 %v241
  %v504 = vpop.f32.mrf.mxu0
  %v505 = vadd.f32 %v421, %v504
  %v506 = vpop.f32.mrf.mxu0
  %v507 = vadd.f32 %v423, %v506
  %508 = vmatmul.bf16.gmra.mxu0 %v243
  %v509 = vpop.f32.mrf.mxu0
  %v510 = vadd.f32 %v426, %v509
  %v511 = vpop.f32.mrf.mxu0
  %v512 = vadd.f32 %v428, %v511
  %513 = vmatmul.bf16.gmra.mxu0 %v245
  %v514 = vpop.f32.mrf.mxu0
  %v515 = vadd.f32 %v431, %v514
  %v516 = vpop.f32.mrf.mxu0
  %v517 = vadd.f32 %v433, %v516
  %518 = vmatmul.bf16.gmra.mxu0 %v247
  %v519 = vpop.f32.mrf.mxu0
  %v520 = vadd.f32 %v436, %v519
  %v521 = vpop.f32.mrf.mxu0
  %v522 = vadd.f32 %v438, %v521
  %523 = vmatmul.bf16.gmra.mxu0 %v249
  %v524 = vpop.f32.mrf.mxu0
  %v525 = vadd.f32 %v441, %v524
  %v526 = vpop.f32.mrf.mxu0
  %v527 = vadd.f32 %v443, %v526
  %528 = vmatmul.bf16.gmra.mxu0 %v251
  %v529 = vpop.f32.mrf.mxu0
  %v530 = vadd.f32 %v446, %v529
  %v531 = vpop.f32.mrf.mxu0
  %v532 = vadd.f32 %v448, %v531
  %533 = vmatmul.bf16.gmra.mxu0 %v253
  %v534 = vpop.f32.mrf.mxu0
  %v535 = vadd.f32 %v451, %v534
  %v536 = vpop.f32.mrf.mxu0
  %v537 = vadd.f32 %v453, %v536
  %538 = vmatmul.bf16.gmra.mxu0 %v255
  %v539 = vpop.f32.mrf.mxu0
  %v540 = vadd.f32 %v456, %v539
  %v541 = vpop.f32.mrf.mxu0
  %v542 = vadd.f32 %v458, %v541
  %543 = vmatmul.bf16.gmra.mxu0 %v257
  %v544 = vpop.f32.mrf.mxu0
  %v545 = vadd.f32 %v461, %v544
  %v546 = vpop.f32.mrf.mxu0
  %v547 = vadd.f32 %v463, %v546
  %548 = vmatmul.bf16.gmra.mxu0 %v259
  %v549 = vpop.f32.mrf.mxu0
  %v550 = vadd.f32 %v466, %v549
  %v551 = vpop.f32.mrf.mxu0
  %v552 = vadd.f32 %v468, %v551
  %553 = vdwg.mxu0
  %v554 = vadd.f32 %v48, %v480
  %v555 = vadd.f32 %v49, %v482
  %v556 = vadd.f32 %v50, %v485
  %v557 = vadd.f32 %v51, %v487
  %v558 = vadd.f32 %v52, %v490
  %v559 = vadd.f32 %v53, %v492
  %v560 = vadd.f32 %v54, %v495
  %v561 = vadd.f32 %v55, %v497
  %v562 = vadd.f32 %v56, %v500
  %v563 = vadd.f32 %v57, %v502
  %v564 = vadd.f32 %v58, %v505
  %v565 = vadd.f32 %v59, %v507
  %v566 = vadd.f32 %v60, %v510
  %v567 = vadd.f32 %v61, %v512
  %v568 = vadd.f32 %v62, %v515
  %v569 = vadd.f32 %v63, %v517
  %v570 = vadd.f32 %v64, %v520
  %v571 = vadd.f32 %v65, %v522
  %v572 = vadd.f32 %v66, %v525
  %v573 = vadd.f32 %v67, %v527
  %v574 = vadd.f32 %v68, %v530
  %v575 = vadd.f32 %v69, %v532
  %v576 = vadd.f32 %v70, %v535
  %v577 = vadd.f32 %v71, %v537
  %v578 = vadd.f32 %v72, %v540
  %v579 = vadd.f32 %v73, %v542
  %v580 = vadd.f32 %v74, %v545
  %v581 = vadd.f32 %v75, %v547
  %v582 = vadd.f32 %v76, %v550
  %v583 = vadd.f32 %v77, %v552
  %584 = vst [vmem:[#allocation2] sm:$0xff] %v554
  %585 = vst [vmem:[#allocation2 + $0x8] sm:$0xff] %v555
  %586 = vst [vmem:[#allocation2 + $0x10] sm:$0xff] %v556
  %587 = vst [vmem:[#allocation2 + $0x18] sm:$0xff] %v557
  %588 = vst [vmem:[#allocation2 + $0x20] sm:$0xff] %v558
  %589 = vst [vmem:[#allocation2 + $0x28] sm:$0xff] %v559
  %590 = vst [vmem:[#allocation2 + $0x30] sm:$0xff] %v560
  %591 = vst [vmem:[#allocation2 + $0x38] sm:$0xff] %v561
  %592 = vst [vmem:[#allocation2 + $0x40] sm:$0xff] %v562
  %593 = vst [vmem:[#allocation2 + $0x48] sm:$0xff] %v563
  %594 = vst [vmem:[#allocation2 + $0x50] sm:$0xff] %v564
  %595 = vst [vmem:[#allocation2 + $0x58] sm:$0xff] %v565
  %596 = vst [vmem:[#allocation2 + $0x60] sm:$0xff] %v566
  %597 = vst [vmem:[#allocation2 + $0x68] sm:$0xff] %v567
  %598 = vst [vmem:[#allocation2 + $0x70] sm:$0xff] %v568
  %599 = vst [vmem:[#allocation2 + $0x78] sm:$0xff] %v569
  %600 = vst [vmem:[#allocation2 + $0x80] sm:$0xff] %v570
  %601 = vst [vmem:[#allocation2 + $0x88] sm:$0xff] %v571
  %602 = vst [vmem:[#allocation2 + $0x90] sm:$0xff] %v572
  %603 = vst [vmem:[#allocation2 + $0x98] sm:$0xff] %v573
  %604 = vst [vmem:[#allocation2 + $0xa0] sm:$0xff] %v574
  %605 = vst [vmem:[#allocation2 + $0xa8] sm:$0xff] %v575
  %606 = vst [vmem:[#allocation2 + $0xb0] sm:$0xff] %v576
  %607 = vst [vmem:[#allocation2 + $0xb8] sm:$0xff] %v577
  %608 = vst [vmem:[#allocation2 + $0xc0] sm:$0xff] %v578
  %609 = vst [vmem:[#allocation2 + $0xc8] sm:$0xff] %v579
  %610 = vst [vmem:[#allocation2 + $0xd0] sm:$0xff] %v580
  %611 = vst [vmem:[#allocation2 + $0xd8] sm:$0xff] %v581
  %612 = vst [vmem:[#allocation2 + $0xe0] sm:$0xff] %v582
  %613 = vst [vmem:[#allocation2 + $0xe8] sm:$0xff] %v583
  // Predicated region
  $region18: #{stcl_act_forward.32} parent=0 // pred_check
    %p614 = pneg %p14
  $region19: #{stcl_act_forward.32} parent=0 // pred_check_branch
    %616 = sbr.rel (%p614) target = $region21
  $region20: #{stcl_act_forward.32} parent=0 // pred_region
    %v617 = vld [vmem:[#allocation2] sm:$0xff]
    %v618 = vld [vmem:[#allocation2 + $0x8] sm:$0xff]
    %v619 = vld [vmem:[#allocation2 + $0x10] sm:$0xff]
    %v620 = vld [vmem:[#allocation2 + $0x18] sm:$0xff]
    %v621 = vld [vmem:[#allocation2 + $0x20] sm:$0xff]
    %v622 = vld [vmem:[#allocation2 + $0x28] sm:$0xff]
    %v623 = vld [vmem:[#allocation2 + $0x30] sm:$0xff]
    %v624 = vld [vmem:[#allocation2 + $0x38] sm:$0xff]
    %v625 = vld [vmem:[#allocation2 + $0x40] sm:$0xff]
    %v626 = vld [vmem:[#allocation2 + $0x48] sm:$0xff]
    %v627 = vld [vmem:[#allocation2 + $0x50] sm:$0xff]
    %v628 = vld [vmem:[#allocation2 + $0x58] sm:$0xff]
    %v629 = vld [vmem:[#allocation2 + $0x60] sm:$0xff]
    %v630 = vld [vmem:[#allocation2 + $0x68] sm:$0xff]
    %v631 = vld [vmem:[#allocation2 + $0x70] sm:$0xff]
    %v632 = vld [vmem:[#allocation2 + $0x78] sm:$0xff]
    %v633 = vld [vmem:[#allocation2 + $0x80] sm:$0xff]
    %v634 = vld [vmem:[#allocation2 + $0x88] sm:$0xff]
    %v635 = vld [vmem:[#allocation2 + $0x90] sm:$0xff]
    %v636 = vld [vmem:[#allocation2 + $0x98] sm:$0xff]
    %v637 = vld [vmem:[#allocation2 + $0xa0] sm:$0xff]
    %v638 = vld [vmem:[#allocation2 + $0xa8] sm:$0xff]
    %v639 = vld [vmem:[#allocation2 + $0xb0] sm:$0xff]
    %v640 = vld [vmem:[#allocation2 + $0xb8] sm:$0xff]
    %v641 = vld [vmem:[#allocation2 + $0xc0] sm:$0xff]
    %v642 = vld [vmem:[#allocation2 + $0xc8] sm:$0xff]
    %v643 = vld [vmem:[#allocation2 + $0xd0] sm:$0xff]
    %v644 = vld [vmem:[#allocation2 + $0xd8] sm:$0xff]
    %v645 = vld [vmem:[#allocation2 + $0xe0] sm:$0xff]
    %v646 = vld [vmem:[#allocation2 + $0xe8] sm:$0xff]
    %v647 = vld [vmem:[%s2] sm:$0x1]
    %v649 = vperm.slane %v647, 0
    %v651 = vadd.f32 %v617, %v649
    %v652 = vadd.f32 %v618, %v649
    %v653 = vadd.f32 %v619, %v649
    %v654 = vadd.f32 %v620, %v649
    %v655 = vadd.f32 %v621, %v649
    %v656 = vadd.f32 %v622, %v649
    %v657 = vadd.f32 %v623, %v649
    %v658 = vadd.f32 %v624, %v649
    %v659 = vadd.f32 %v625, %v649
    %v660 = vadd.f32 %v626, %v649
    %v661 = vadd.f32 %v627, %v649
    %v662 = vadd.f32 %v628, %v649
    %v663 = vadd.f32 %v629, %v649
    %v664 = vadd.f32 %v630, %v649
    %v665 = vadd.f32 %v631, %v649
    %v666 = vadd.f32 %v632, %v649
    %v667 = vadd.f32 %v633, %v649
    %v668 = vadd.f32 %v634, %v649
    %v669 = vadd.f32 %v635, %v649
    %v670 = vadd.f32 %v636, %v649
    %v671 = vadd.f32 %v637, %v649
    %v672 = vadd.f32 %v638, %v649
    %v673 = vadd.f32 %v639, %v649
    %v674 = vadd.f32 %v640, %v649
    %v675 = vadd.f32 %v641, %v649
    %v676 = vadd.f32 %v642, %v649
    %v677 = vadd.f32 %v643, %v649
    %v678 = vadd.f32 %v644, %v649
    %v679 = vadd.f32 %v645, %v649
    %v680 = vadd.f32 %v646, %v649
    %vm681 = vcmp.ge.f32.partialorder %v651, 0.0
    %vm682 = vcmp.ge.f32.partialorder %v652, 0.0
    %vm683 = vcmp.ge.f32.partialorder %v653, 0.0
    %vm684 = vcmp.ge.f32.partialorder %v654, 0.0
    %vm685 = vcmp.ge.f32.partialorder %v655, 0.0
    %vm686 = vcmp.ge.f32.partialorder %v656, 0.0
    %vm687 = vcmp.ge.f32.partialorder %v657, 0.0
    %vm688 = vcmp.ge.f32.partialorder %v658, 0.0
    %vm689 = vcmp.ge.f32.partialorder %v659, 0.0
    %vm690 = vcmp.ge.f32.partialorder %v660, 0.0
    %vm691 = vcmp.ge.f32.partialorder %v661, 0.0
    %vm692 = vcmp.ge.f32.partialorder %v662, 0.0
    %vm693 = vcmp.ge.f32.partialorder %v663, 0.0
    %vm694 = vcmp.ge.f32.partialorder %v664, 0.0
    %vm695 = vcmp.ge.f32.partialorder %v665, 0.0
    %vm696 = vcmp.ge.f32.partialorder %v666, 0.0
    %vm697 = vcmp.ge.f32.partialorder %v667, 0.0
    %vm698 = vcmp.ge.f32.partialorder %v668, 0.0
    %vm699 = vcmp.ge.f32.partialorder %v669, 0.0
    %vm700 = vcmp.ge.f32.partialorder %v670, 0.0
    %vm701 = vcmp.ge.f32.partialorder %v671, 0.0
    %vm702 = vcmp.ge.f32.partialorder %v672, 0.0
    %vm703 = vcmp.ge.f32.partialorder %v673, 0.0
    %vm704 = vcmp.ge.f32.partialorder %v674, 0.0
    %vm705 = vcmp.ge.f32.partialorder %v675, 0.0
    %vm706 = vcmp.ge.f32.partialorder %v676, 0.0
    %vm707 = vcmp.ge.f32.partialorder %v677, 0.0
    %vm708 = vcmp.ge.f32.partialorder %v678, 0.0
    %vm709 = vcmp.ge.f32.partialorder %v679, 0.0
    %vm710 = vcmp.ge.f32.partialorder %v680, 0.0
    %v711 = vmul.f32 %v651, 0.2
    %v712 = vmul.f32 %v652, 0.2
    %v713 = vmul.f32 %v653, 0.2
    %v714 = vmul.f32 %v654, 0.2
    %v715 = vmul.f32 %v655, 0.2
    %v716 = vmul.f32 %v656, 0.2
    %v717 = vmul.f32 %v657, 0.2
    %v718 = vmul.f32 %v658, 0.2
    %v719 = vmul.f32 %v659, 0.2
    %v720 = vmul.f32 %v660, 0.2
    %v721 = vmul.f32 %v661, 0.2
    %v722 = vmul.f32 %v662, 0.2
    %v723 = vmul.f32 %v663, 0.2
    %v724 = vmul.f32 %v664, 0.2
    %v725 = vmul.f32 %v665, 0.2
    %v726 = vmul.f32 %v666, 0.2
    %v727 = vmul.f32 %v667, 0.2
    %v728 = vmul.f32 %v668, 0.2
    %v729 = vmul.f32 %v669, 0.2
    %v730 = vmul.f32 %v670, 0.2
    %v731 = vmul.f32 %v671, 0.2
    %v732 = vmul.f32 %v672, 0.2
    %v733 = vmul.f32 %v673, 0.2
    %v734 = vmul.f32 %v674, 0.2
    %v735 = vmul.f32 %v675, 0.2
    %v736 = vmul.f32 %v676, 0.2
    %v737 = vmul.f32 %v677, 0.2
    %v738 = vmul.f32 %v678, 0.2
    %v739 = vmul.f32 %v679, 0.2
    %v740 = vmul.f32 %v680, 0.2
    %v741 = vsel %vm681, %v651, %v711
    %v742 = vsel %vm682, %v652, %v712
    %v743 = vsel %vm683, %v653, %v713
    %v744 = vsel %vm684, %v654, %v714
    %v745 = vsel %vm685, %v655, %v715
    %v746 = vsel %vm686, %v656, %v716
    %v747 = vsel %vm687, %v657, %v717
    %v748 = vsel %vm688, %v658, %v718
    %v749 = vsel %vm689, %v659, %v719
    %v750 = vsel %vm690, %v660, %v720
    %v751 = vsel %vm691, %v661, %v721
    %v752 = vsel %vm692, %v662, %v722
    %v753 = vsel %vm693, %v663, %v723
    %v754 = vsel %vm694, %v664, %v724
    %v755 = vsel %vm695, %v665, %v725
    %v756 = vsel %vm696, %v666, %v726
    %v757 = vsel %vm697, %v667, %v727
    %v758 = vsel %vm698, %v668, %v728
    %v759 = vsel %vm699, %v669, %v729
    %v760 = vsel %vm700, %v670, %v730
    %v761 = vsel %vm701, %v671, %v731
    %v762 = vsel %vm702, %v672, %v732
    %v763 = vsel %vm703, %v673, %v733
    %v764 = vsel %vm704, %v674, %v734
    %v765 = vsel %vm705, %v675, %v735
    %v766 = vsel %vm706, %v676, %v736
    %v767 = vsel %vm707, %v677, %v737
    %v768 = vsel %vm708, %v678, %v738
    %v769 = vsel %vm709, %v679, %v739
    %v770 = vsel %vm710, %v680, %v740
    %771 = vst [vmem:[%s3] sm:$0xff] %v741
    %772 = vst [vmem:[%s3 + $0x8] sm:$0xff] %v742
    %773 = vst [vmem:[%s3 + $0x10] sm:$0xff] %v743
    %774 = vst [vmem:[%s3 + $0x18] sm:$0xff] %v744
    %775 = vst [vmem:[%s3 + $0x20] sm:$0xff] %v745
    %776 = vst [vmem:[%s3 + $0x28] sm:$0xff] %v746
    %777 = vst [vmem:[%s3 + $0x30] sm:$0xff] %v747
    %778 = vst [vmem:[%s3 + $0x38] sm:$0xff] %v748
    %779 = vst [vmem:[%s3 + $0x40] sm:$0xff] %v749
    %780 = vst [vmem:[%s3 + $0x48] sm:$0xff] %v750
    %781 = vst [vmem:[%s3 + $0x50] sm:$0xff] %v751
    %782 = vst [vmem:[%s3 + $0x58] sm:$0xff] %v752
    %783 = vst [vmem:[%s3 + $0x60] sm:$0xff] %v753
    %784 = vst [vmem:[%s3 + $0x68] sm:$0xff] %v754
    %785 = vst [vmem:[%s3 + $0x70] sm:$0xff] %v755
    %786 = vst [vmem:[%s3 + $0x78] sm:$0xff] %v756
    %787 = vst [vmem:[%s3 + $0x80] sm:$0xff] %v757
    %788 = vst [vmem:[%s3 + $0x88] sm:$0xff] %v758
    %789 = vst [vmem:[%s3 + $0x90] sm:$0xff] %v759
    %790 = vst [vmem:[%s3 + $0x98] sm:$0xff] %v760
    %791 = vst [vmem:[%s3 + $0xa0] sm:$0xff] %v761
    %792 = vst [vmem:[%s3 + $0xa8] sm:$0xff] %v762
    %793 = vst [vmem:[%s3 + $0xb0] sm:$0xff] %v763
    %794 = vst [vmem:[%s3 + $0xb8] sm:$0xff] %v764
    %795 = vst [vmem:[%s3 + $0xc0] sm:$0xff] %v765
    %796 = vst [vmem:[%s3 + $0xc8] sm:$0xff] %v766
    %797 = vst [vmem:[%s3 + $0xd0] sm:$0xff] %v767
    %798 = vst [vmem:[%s3 + $0xd8] sm:$0xff] %v768
    %799 = vst [vmem:[%s3 + $0xe0] sm:$0xff] %v769
    %800 = vst [vmem:[%s3 + $0xe8] sm:$0xff] %v770
  $region21: #{stcl_act_forward.32} parent=0 // pred_fallthru
    _
  // Predicated region
  $region22: #{stcl_act_forward.32} parent=0 // pred_check
    _
  $region23: #{stcl_act_forward.32} parent=0 // pred_check_branch
    %802 = sbr.rel (0) target = $region25
  $region24: #{stcl_act_forward.32} parent=0 // pred_region
    _
  $region25: #{stcl_act_forward.32} parent=0 // pred_fallthru
    _
  // Predicated region
  $region26: #{stcl_act_forward.32} parent=0 // pred_check
    _
  $region27: #{stcl_act_forward.32} parent=0 // pred_check_branch
    %804 = sbr.rel (0) target = $region29
  $region28: #{stcl_act_forward.32} parent=0 // pred_region
    _
  $region29: #{stcl_act_forward.32} parent=0 // pred_fallthru
    _

// kernel: stcl_act_forward.35
$region0: #{stcl_act_forward.35}
  #allocation0 [shape = 'u32[]', space=smem, size = 0x4, offset = 0x4, fixed_abs, tag = 'smem constant byte address 0x4 - core index']
  #allocation1 [shape = 'u32[72,128]{1,0:T(1,128)}', space=vmem, size = 0x9000, scoped, tag = 'internal scratch']
  #allocation2 [shape = 'f32[24,128]{1,0:T(8,128)}', space=vmem, size = 0x3000, scoped, tag = 'scratch operand']
  %s0 = inlined_call_operand.vmem [shape: bf16[24,128], index: 0, kind: input, shape index: {}]
  %s1 = inlined_call_operand.vmem [shape: bf16[128,128], index: 1, kind: input, shape index: {}]
  %s2 = inlined_call_operand.vmem [shape: f32[1,128], index: 2, kind: input, shape index: {}]
  %s3 = inlined_call_operand.vmem [shape: f32[24,128], index: 3, kind: output, shape index: {}]
  %s4 = sld [smem:[#allocation0]]
  $region30: #{stcl_act_forward.35} parent=0
    _
  %s6 = ssub.s32 1, %s4
  %s7 = scalar_select 0, %s6, %s4
  // Predicated region
  $region2: #{stcl_act_forward.35} parent=0 // pred_check
    _
  $region3: #{stcl_act_forward.35} parent=0 // pred_check_branch
    %9 = sbr.rel (0) target = $region5
  $region4: #{stcl_act_forward.35} parent=0 // pred_region
    _
  $region5: #{stcl_act_forward.35} parent=0 // pred_fallthru
    _
  // Predicated region
  $region6: #{stcl_act_forward.35} parent=0 // pred_check
    _
  $region7: #{stcl_act_forward.35} parent=0 // pred_check_branch
    %11 = sbr.rel (0) target = $region9
  $region8: #{stcl_act_forward.35} parent=0 // pred_region
    _
  $region9: #{stcl_act_forward.35} parent=0 // pred_fallthru
    _
  // Predicated region
  $region10: #{stcl_act_forward.35} parent=0 // pred_check
    _
  $region11: #{stcl_act_forward.35} parent=0 // pred_check_branch
    %13 = sbr.rel (0) target = $region13
  $region12: #{stcl_act_forward.35} parent=0 // pred_region
    _
  $region13: #{stcl_act_forward.35} parent=0 // pred_fallthru
    _
  %p14 = scmp.eq.s32.totalorder 0, 0
  // Predicated region
  $region14: #{stcl_act_forward.35} parent=0 // pred_check
    %p15 = pneg %p14
  $region15: #{stcl_act_forward.35} parent=0 // pred_check_branch
    %17 = sbr.rel (%p15) target = $region17
  $region16: #{stcl_act_forward.35} parent=0 // pred_region
    %18 = vst [vmem:[#allocation2] sm:$0xff] 0.0
    %19 = vst [vmem:[#allocation2 + $0x8] sm:$0xff] 0.0
    %20 = vst [vmem:[#allocation2 + $0x10] sm:$0xff] 0.0
  $region17: #{stcl_act_forward.35} parent=0 // pred_fallthru
    _
  %v21 = vld [vmem:[#allocation2] sm:$0xff]
  %v22 = vld [vmem:[#allocation2 + $0x8] sm:$0xff]
  %v23 = vld [vmem:[#allocation2 + $0x10] sm:$0xff]
  %v24 = vld [vmem:[%s0] sm:$0xf]
  %v25 = vld [vmem:[%s0 + $0x4] sm:$0xf]
  %v26 = vld [vmem:[%s0 + $0x8] sm:$0xf]
  %v27 = vld [vmem:[%s1] sm:$0xf]
  %v28 = vld [vmem:[%s1 + $0x4] sm:$0xf]
  %v29 = vld [vmem:[%s1 + $0x8] sm:$0xf]
  %v30 = vld [vmem:[%s1 + $0xc] sm:$0xf]
  %v31 = vld [vmem:[%s1 + $0x10] sm:$0xf]
  %v32 = vld [vmem:[%s1 + $0x14] sm:$0xf]
  %v33 = vld [vmem:[%s1 + $0x18] sm:$0xf]
  %v34 = vld [vmem:[%s1 + $0x1c] sm:$0xf]
  %v35 = vld [vmem:[%s1 + $0x20] sm:$0xf]
  %v36 = vld [vmem:[%s1 + $0x24] sm:$0xf]
  %v37 = vld [vmem:[%s1 + $0x28] sm:$0xf]
  %v38 = vld [vmem:[%s1 + $0x2c] sm:$0xf]
  %v39 = vld [vmem:[%s1 + $0x30] sm:$0xf]
  %v40 = vld [vmem:[%s1 + $0x34] sm:$0xf]
  %v41 = vld [vmem:[%s1 + $0x38] sm:$0xf]
  %v42 = vld [vmem:[%s1 + $0x3c] sm:$0xf]
  %v46 = vunpack.c.l.b16 %v24
  %v47 = vunpack.c.l.b16 %v25
  %v48 = vunpack.c.l.b16 %v26
  %v49 = vpack.c.b16 %v47, %v46
  %v50 = vpack.c.b16 %v48, %v48
  %v69 = vunpack.c.l.b16 %v27
  %v70 = vunpack.c.l.b16 %v28
  %v71 = vunpack.c.l.b16 %v29
  %v72 = vunpack.c.l.b16 %v30
  %v73 = vunpack.c.l.b16 %v31
  %v74 = vunpack.c.l.b16 %v32
  %v75 = vunpack.c.l.b16 %v33
  %v76 = vunpack.c.l.b16 %v34
  %v77 = vunpack.c.l.b16 %v35
  %v78 = vunpack.c.l.b16 %v36
  %v79 = vunpack.c.l.b16 %v37
  %v80 = vunpack.c.l.b16 %v38
  %v81 = vunpack.c.l.b16 %v39
  %v82 = vunpack.c.l.b16 %v40
  %v83 = vunpack.c.l.b16 %v41
  %v84 = vunpack.c.l.b16 %v42
  %v85 = vpack.c.b16 %v70, %v69
  %v86 = vpack.c.b16 %v72, %v71
  %v87 = vpack.c.b16 %v74, %v73
  %v88 = vpack.c.b16 %v76, %v75
  %v89 = vpack.c.b16 %v78, %v77
  %v90 = vpack.c.b16 %v80, %v79
  %v91 = vpack.c.b16 %v82, %v81
  %v92 = vpack.c.b16 %v84, %v83
  %101 = vmatpush.bf16.msra.mxu0 %v92
  %102 = vmatpush.bf16.msra.mxu0 %v91
  %103 = vmatpush.bf16.msra.mxu0 %v90
  %104 = vmatpush.bf16.msra.mxu0 %v89
  %105 = vmatpush.bf16.msra.mxu0 %v88
  %106 = vmatpush.bf16.msra.mxu0 %v87
  %107 = vmatpush.bf16.msra.mxu0 %v86
  %108 = vmatpush.bf16.msra.mxu0 %v85
  %109 = vmatmul.bf16.gmra.mxu0 %v49
  %v110 = vpop.f32.mrf.mxu0
  %v111 = vadd.f32 0.0, %v110
  %v112 = vpop.f32.mrf.mxu0
  %v113 = vadd.f32 0.0, %v112
  %114 = vmatmul.bf16.gmra.mxu0 %v50
  %v115 = vpop.f32.mrf.mxu0
  %v116 = vadd.f32 0.0, %v115
  %v117 = vpop.f32.mrf.mxu0
  %118 = vdwg.mxu0
  %v119 = vadd.f32 %v21, %v111
  %v120 = vadd.f32 %v22, %v113
  %v121 = vadd.f32 %v23, %v116
  %122 = vst [vmem:[#allocation2] sm:$0xff] %v119
  %123 = vst [vmem:[#allocation2 + $0x8] sm:$0xff] %v120
  %124 = vst [vmem:[#allocation2 + $0x10] sm:$0xff] %v121
  // Predicated region
  $region18: #{stcl_act_forward.35} parent=0 // pred_check
    %p125 = pneg %p14
  $region19: #{stcl_act_forward.35} parent=0 // pred_check_branch
    %127 = sbr.rel (%p125) target = $region21
  $region20: #{stcl_act_forward.35} parent=0 // pred_region
    %v128 = vld [vmem:[#allocation2] sm:$0xff]
    %v129 = vld [vmem:[#allocation2 + $0x8] sm:$0xff]
    %v130 = vld [vmem:[#allocation2 + $0x10] sm:$0xff]
    %v131 = vld [vmem:[%s2] sm:$0x1]
    %v133 = vperm.slane %v131, 0
    %v135 = vadd.f32 %v128, %v133
    %v136 = vadd.f32 %v129, %v133
    %v137 = vadd.f32 %v130, %v133
    %138 = vst [vmem:[%s3] sm:$0xff] %v135
    %139 = vst [vmem:[%s3 + $0x8] sm:$0xff] %v136
    %140 = vst [vmem:[%s3 + $0x10] sm:$0xff] %v137
  $region21: #{stcl_act_forward.35} parent=0 // pred_fallthru
    _
  // Predicated region
  $region22: #{stcl_act_forward.35} parent=0 // pred_check
    _
  $region23: #{stcl_act_forward.35} parent=0 // pred_check_branch
    %142 = sbr.rel (0) target = $region25
  $region24: #{stcl_act_forward.35} parent=0 // pred_region
    _
  $region25: #{stcl_act_forward.35} parent=0 // pred_fallthru
    _
  // Predicated region
  $region26: #{stcl_act_forward.35} parent=0 // pred_check
    _
  $region27: #{stcl_act_forward.35} parent=0 // pred_check_branch
    %144 = sbr.rel (0) target = $region29
  $region28: #{stcl_act_forward.35} parent=0 // pred_region
    _
  $region29: #{stcl_act_forward.35} parent=0 // pred_fallthru
    _

// kernel: stcl_act_forward.36
$region0: #{stcl_act_forward.36}
  #allocation0 [shape = 'u32[]', space=smem, size = 0x4, offset = 0x4, fixed_abs, tag = 'smem constant byte address 0x4 - core index']
  #allocation1 [shape = 'u32[72,128]{1,0:T(1,128)}', space=vmem, size = 0x9000, scoped, tag = 'internal scratch']
  #allocation2 [shape = 'f32[16,1]{1,0:T(8,128)}', space=vmem, size = 0x2000, scoped, tag = 'scratch operand']
  #allocation3 [shape = 'f32[16,1]{1,0:T(8,128)}', space=vmem, size = 0x2000, scoped, tag = 'scratch operand']
  #allocation4 [shape = 'f32[16,64]{1,0:T(8,128)}', space=vmem, size = 0x2000, scoped, tag = 'scratch operand']
  %s0 = inlined_call_operand.vmem [shape: bf16[2,16,16], index: 0, kind: input, shape index: {}]
  %s1 = inlined_call_operand.vmem [shape: bf16[6,3,16], index: 1, kind: input, shape index: {}]
  %s2 = inlined_call_operand.vmem [shape: bf16[6,3,65], index: 2, kind: input, shape index: {}]
  %s3 = inlined_call_operand.vmem [shape: f32[2,16,64], index: 3, kind: output, shape index: {}]
  %s4 = sld [smem:[#allocation0]]
  $region53: #{stcl_act_forward.36} parent=0
    _
  %s6 = ssub.s32 1, %s4
  %s7 = scalar_select 0, %s6, %s4
  loop: start=0, step=1, limit=14
  $region2: #{stcl_act_forward.36} parent=0 // loop_pre_header
    _
  $region3: #{stcl_act_forward.36} parent=0 // loop_header
    %s9 = sphi 0, %s13
    %p10 = scmp.ge.s32.totalorder %s9, 14
    %s16 = sphi 0, %s28
    %s17 = sphi 0, %s24
    %s18 = sphi 0, %s16
    %s19 = sphi 0, %s17
    %s20 = sphi 0, %s18
    %s21 = sphi 0, %s19
    %s31 = sphi 0, %s33
    %s34 = sphi 0, %s31
    %s35 = sphi 0, %s34
    %s51 = sphi 0, %s35
    %s57 = sphi 0, %s59
    %s60 = sphi 0, %s57
    %s61 = sphi 0, %s60
    %s77 = sphi 0, %s61
    %s83 = sphi 0, %s85
    %s86 = sphi 0, %s83
    %s87 = sphi 0, %s86
    %s103 = sphi 0, %s87
    %s109 = sphi 0, %s111
    %s112 = sphi 0, %s109
    %s113 = sphi 0, %s112
    %s129 = sphi 0, %s113
  $region4: #{stcl_act_forward.36} parent=0 // loop_header_branch
    %12 = sbr.rel (%p10) target = $region8
  $region5: #{stcl_act_forward.36} parent=0 // loop_body
    %s14 = ssub.s32 %s9, 1
    %s15 = ssub.s32 %s9, 2
    %s22 = sadd.s32 1, %s17
    %p23 = scmp.ge.s32.totalorder %s22, 6
    %s24 = scalar_select %p23, 0, %s22
    %s25 = sadd.s32 1, %s16
    %s26 = scalar_select %p23, %s25, %s16
    %p27 = scmp.ge.s32.totalorder %s26, 2
    %s28 = scalar_select %p27, 0, %s26
    %s29 = ssub.s32 %s16, %s28
    %p30 = scmp.eq.s32.totalorder %s29, 0
    %s32 = sadd.s32 %s31, 1
    %s33 = scalar_select %p30, %s31, %s32
    %p36 = pneg %p30
    %p37 = scmp.eq.s32.totalorder %s9, 11
    %p38 = por %p36, %p37
    %p39 = scmp.ne.s32.totalorder %s31, %s34
    %p40 = scmp.eq.s32.totalorder %s9, 0
    %p41 = por %p39, %p40
    %p42 = scmp.ne.s32.totalorder %s31, %s34
    %p43 = scmp.eq.s32.totalorder %s14, 11
    %p44 = por %p42, %p43
    %p45 = scmp.ne.s32.totalorder %s34, %s35
    %p46 = scmp.eq.s32.totalorder %s14, 0
    %p47 = por %p45, %p46
    %p48 = scmp.ne.s32.totalorder %s34, %s35
    %p49 = scmp.eq.s32.totalorder %s15, 11
    %p50 = por %p48, %p49
    %p52 = scmp.ne.s32.totalorder %s35, %s51
    %p53 = scmp.eq.s32.totalorder %s15, 0
    %p54 = por %p52, %p53
    %s55 = ssub.s32 %s17, %s24
    %p56 = scmp.eq.s32.totalorder %s55, 0
    %s58 = sadd.s32 %s57, 1
    %s59 = scalar_select %p56, %s57, %s58
    %p62 = pneg %p56
    %p63 = scmp.eq.s32.totalorder %s9, 11
    %p64 = por %p62, %p63
    %p65 = scmp.ne.s32.totalorder %s57, %s60
    %p66 = scmp.eq.s32.totalorder %s9, 0
    %p67 = por %p65, %p66
    %p68 = scmp.ne.s32.totalorder %s57, %s60
    %p69 = scmp.eq.s32.totalorder %s14, 11
    %p70 = por %p68, %p69
    %p71 = scmp.ne.s32.totalorder %s60, %s61
    %p72 = scmp.eq.s32.totalorder %s14, 0
    %p73 = por %p71, %p72
    %p74 = scmp.ne.s32.totalorder %s60, %s61
    %p75 = scmp.eq.s32.totalorder %s15, 11
    %p76 = por %p74, %p75
    %p78 = scmp.ne.s32.totalorder %s61, %s77
    %p79 = scmp.eq.s32.totalorder %s15, 0
    %p80 = por %p78, %p79
    %s81 = ssub.s32 %s17, %s24
    %p82 = scmp.eq.s32.totalorder %s81, 0
    %s84 = sadd.s32 %s83, 1
    %s85 = scalar_select %p82, %s83, %s84
    %p88 = pneg %p82
    %p89 = scmp.eq.s32.totalorder %s9, 11
    %p90 = por %p88, %p89
    %p91 = scmp.ne.s32.totalorder %s83, %s86
    %p92 = scmp.eq.s32.totalorder %s9, 0
    %p93 = por %p91, %p92
    %p94 = scmp.ne.s32.totalorder %s83, %s86
    %p95 = scmp.eq.s32.totalorder %s14, 11
    %p96 = por %p94, %p95
    %p97 = scmp.ne.s32.totalorder %s86, %s87
    %p98 = scmp.eq.s32.totalorder %s14, 0
    %p99 = por %p97, %p98
    %p100 = scmp.ne.s32.totalorder %s86, %s87
    %p101 = scmp.eq.s32.totalorder %s15, 11
    %p102 = por %p100, %p101
    %p104 = scmp.ne.s32.totalorder %s87, %s103
    %p105 = scmp.eq.s32.totalorder %s15, 0
    %p106 = por %p104, %p105
    %s107 = ssub.s32 %s16, %s28
    %p108 = scmp.eq.s32.totalorder %s107, 0
    %s110 = sadd.s32 %s109, 1
    %s111 = scalar_select %p108, %s109, %s110
    %p114 = pneg %p108
    %p115 = scmp.eq.s32.totalorder %s9, 11
    %p116 = por %p114, %p115
    %p117 = scmp.ne.s32.totalorder %s109, %s112
    %p118 = scmp.eq.s32.totalorder %s9, 0
    %p119 = por %p117, %p118
    %p120 = scmp.ne.s32.totalorder %s109, %s112
    %p121 = scmp.eq.s32.totalorder %s14, 11
    %p122 = por %p120, %p121
    %p123 = scmp.ne.s32.totalorder %s112, %s113
    %p124 = scmp.eq.s32.totalorder %s14, 0
    %p125 = por %p123, %p124
    %p126 = scmp.ne.s32.totalorder %s112, %s113
    %p127 = scmp.eq.s32.totalorder %s15, 11
    %p128 = por %p126, %p127
    %p130 = scmp.ne.s32.totalorder %s113, %s129
    %p131 = scmp.eq.s32.totalorder %s15, 0
    %p132 = por %p130, %p131
    %p133 = scmp.le.s32.totalorder 1, %s9
    %p134 = scmp.lt.s32.totalorder %s9, 13
    %p135 = pnand %p133, %p134
    %p136 = pneg %p135
    // Predicated region
    $region9: #{stcl_act_forward.36} parent=5 // pred_check
      _
    $region10: #{stcl_act_forward.36} parent=5 // pred_check_branch
      %138 = sbr.rel (%p135) target = $region12
    $region11: #{stcl_act_forward.36} parent=5 // pred_region
      %s139 = ssub.s32 %s9, 1
    $region12: #{stcl_act_forward.36} parent=5 // pred_fallthru
      _
    %p140 = scmp.lt.s32.totalorder %s9, 12
    // Predicated region
    $region13: #{stcl_act_forward.36} parent=5 // pred_check
      %p141 = pneg %p140
    $region14: #{stcl_act_forward.36} parent=5 // pred_check_branch
      %143 = sbr.rel (%p141) target = $region16
    $region15: #{stcl_act_forward.36} parent=5 // pred_region
      // Predicated region
      $region17: #{stcl_act_forward.36} parent=15 // pred_check
        %p144 = pneg %p41
      $region18: #{stcl_act_forward.36} parent=15 // pred_check_branch
        %146 = sbr.rel (%p144) target = $region20
      $region19: #{stcl_act_forward.36} parent=15 // pred_region
        %p147 = scmp.lt.s32.totalorder %s16, 1
        %s148 = scalar_select %p147, %s16, 1
        %s149 = smul.addr %s148, 2
        %s150 = smul.addr %s149, 4
        %s151 = scalar_lea.vmem %s0, %s150
      $region20: #{stcl_act_forward.36} parent=15 // pred_fallthru
        _
      // Predicated region
      $region21: #{stcl_act_forward.36} parent=15 // pred_check
        %p152 = pneg %p67
      $region22: #{stcl_act_forward.36} parent=15 // pred_check_branch
        %154 = sbr.rel (%p152) target = $region24
      $region23: #{stcl_act_forward.36} parent=15 // pred_region
        %p155 = scmp.lt.s32.totalorder %s17, 5
        %s156 = scalar_select %p155, %s17, 5
        %s157 = smul.addr %s156, 2
        %s158 = scalar_lea.vmem %s1, %s157
      $region24: #{stcl_act_forward.36} parent=15 // pred_fallthru
        _
      // Predicated region
      $region25: #{stcl_act_forward.36} parent=15 // pred_check
        %p159 = pneg %p93
      $region26: #{stcl_act_forward.36} parent=15 // pred_check_branch
        %161 = sbr.rel (%p159) target = $region28
      $region27: #{stcl_act_forward.36} parent=15 // pred_region
        %p162 = scmp.lt.s32.totalorder %s17, 5
        %s163 = scalar_select %p162, %s17, 5
        %s164 = smul.addr %s163, 2
        %s165 = scalar_lea.vmem %s2, %s164
      $region28: #{stcl_act_forward.36} parent=15 // pred_fallthru
        _
    $region16: #{stcl_act_forward.36} parent=5 // pred_fallthru
      _
    %p166 = scmp.le.s32.totalorder 1, %s9
    %p167 = scmp.lt.s32.totalorder %s9, 13
    %p168 = pnand %p166, %p167
    %p169 = pneg %p168
    // Predicated region
    $region29: #{stcl_act_forward.36} parent=5 // pred_check
      _
    $region30: #{stcl_act_forward.36} parent=5 // pred_check_branch
      %171 = sbr.rel (%p168) target = $region32
    $region31: #{stcl_act_forward.36} parent=5 // pred_region
      %s172 = ssub.s32 %s9, 1
      %p173 = scmp.lt.s32.totalorder %s18, 1
      %s174 = scalar_select %p173, %s18, 1
      %s175 = smul.addr %s174, 2
      %s176 = smul.addr %s175, 4
      %s177 = scalar_lea.vmem %s0, %s176
      %p178 = pneg %p47
      %p179 = pneg %p44
      %p180 = scmp.lt.s32.totalorder %s19, 5
      %s181 = scalar_select %p180, %s19, 5
      %s182 = smul.addr %s181, 2
      %s183 = scalar_lea.vmem %s1, %s182
      %p184 = pneg %p73
      %p185 = pneg %p70
      %p186 = scmp.lt.s32.totalorder %s19, 5
      %s187 = scalar_select %p186, %s19, 5
      %s188 = smul.addr %s187, 2
      %s189 = scalar_lea.vmem %s2, %s188
      %p190 = pneg %p99
      %p191 = pneg %p96
      %p192 = pneg %p125
      %p193 = pneg %p122
      %p194 = scmp.lt.s32.totalorder %s18, 1
      %s195 = scalar_select %p194, %s18, 1
      %s196 = smul.addr %s195, 2
      %s197 = smul.addr %s196, 8
      %s198 = scalar_lea.vmem %s3, %s197
      %p199 = scmp.lt.s32.totalorder %s18, 1
      %s200 = scalar_select %p199, %s18, 1
      %s201 = smul.addr %s200, 2
      %s202 = smul.addr %s201, 4
      %s203 = scalar_lea.vmem %s0, %s202
      %p204 = scmp.lt.s32.totalorder %s19, 5
      %s205 = scalar_select %p204, %s19, 5
      %s206 = smul.addr %s205, 2
      %s207 = scalar_lea.vmem %s1, %s206
      %p208 = scmp.lt.s32.totalorder %s19, 5
      %s209 = scalar_select %p208, %s19, 5
      %s210 = smul.addr %s209, 2
      %s211 = scalar_lea.vmem %s2, %s210
      %p212 = scmp.lt.s32.totalorder %s18, 1
      %s213 = scalar_select %p212, %s18, 1
      %s214 = smul.addr %s213, 2
      %s215 = smul.addr %s214, 8
      %s216 = scalar_lea.vmem %s3, %s215
      %p218 = scmp.eq.s32.totalorder %s19, 0
      // Predicated region
      $region33: #{stcl_act_forward.36} parent=31 // pred_check
        %p219 = pneg %p218
      $region34: #{stcl_act_forward.36} parent=31 // pred_check_branch
        %221 = sbr.rel (%p219) target = $region36
      $region35: #{stcl_act_forward.36} parent=31 // pred_region
        %vm222 = vcmask 7168
        %223 = vst.msk [vmem:[#allocation2] sm:$0xff] %vm222, -inf
        %224 = vst.msk [vmem:[#allocation2 + $0x8] sm:$0xff] %vm222, -inf
        %225 = vst.msk [vmem:[#allocation3] sm:$0xff] %vm222, 0.0
        %226 = vst.msk [vmem:[#allocation3 + $0x8] sm:$0xff] %vm222, 0.0
        %vm227 = vcmask 523264
        %228 = vst.msk [vmem:[#allocation4] sm:$0xff] %vm227, 0.0
        %229 = vst.msk [vmem:[#allocation4 + $0x8] sm:$0xff] %vm227, 0.0
      $region36: #{stcl_act_forward.36} parent=31 // pred_fallthru
        _
      %v230 = vld [vmem:[%s203] sm:$0xf]
      %v231 = vld [vmem:[%s203 + $0x4] sm:$0xf]
      %v232 = vld [vmem:[%s207] sm:$0x3]
      %v235 = vunpack.c.l.b16 %v230
      %v236 = vunpack.c.l.b16 %v231
      %v237 = vpack.c.b16 %v236, %v235
      %vm238 = vcmask 130048
      %v240 = vsel %vm238, %v237, 0
      %v243 = vsel %vm238, %v232, 0
      %245 = vmatpush.bf16.xpose.msra.mxu0 0
      %246 = vmatpush.bf16.xpose.msra.mxu0 0
      %247 = vmatpush.bf16.xpose.msra.mxu0 0
      %248 = vmatpush.bf16.xpose.msra.mxu0 0
      %249 = vmatpush.bf16.xpose.msra.mxu0 0
      %250 = vmatpush.bf16.xpose.msra.mxu0 0
      %251 = vmatpush.bf16.xpose.msra.mxu0 0
      %252 = vmatpush.bf16.xpose.msra.mxu0 %v243
      %253 = vmatmul.bf16.gmra.mxu0 %v240
      %v254 = vpop.f32.mrf.mxu0
      %v255 = vadd.f32 0.0, %v254
      %v256 = vpop.f32.mrf.mxu0
      %v257 = vadd.f32 0.0, %v256
      %258 = vdwg.mxu0
      %vm259 = vcmask 23552
      %v260 = vsel %vm259, %v255, -inf
      %261 = vmax.xlane.f32.xlu0 %v260
      %v262 = vpop.xlane.xlu0 %261
      %v263 = vsel %vm259, %v257, -inf
      %264 = vmax.xlane.f32.xlu0 %v263
      %v265 = vpop.xlane.xlu0 %264
      %v266 = vsub.f32 %v255, %v262
      %v267 = vsub.f32 %v257, %v265
      %v268 = vmul.f32 %v266, 1.442695
      %v269 = vpow.pop %v268
      %v270 = vmul.f32 %v267, 1.442695
      %v271 = vpow.pop %v270
      %v272 = vsel %vm259, %v269, 0.0
      %273 = vadd.xlane.f32.xlu0 %v272
      %v274 = vpop.xlane.xlu0 %273
      %v275 = vsel %vm259, %v271, 0.0
      %276 = vadd.xlane.f32.xlu0 %v275
      %v277 = vpop.xlane.xlu0 %276
      %v278 = vrcp.pop %v274
      %v279 = vrcp.pop %v277
      %v280 = vmul.f32 %v269, %v278
      %v281 = vmul.f32 %v271, %v279
      %v282 = vpack.c.bf16 %v281, %v280
      %v283 = vld [vmem:[%s211] sm:$0x3]
      %v285 = vsel %vm259, %v282, 0
      %vm287 = vcmask 1040384
      %vm288 = vcmask 1041408
      %v289 = vsel %vm287, 4294967295, 65535
      %v290 = vsel %vm288, %v289, 0
      %v292 = vand.u32 %v283, %v290
      %294 = vmatpush.bf16.msra.mxu0 0
      %295 = vmatpush.bf16.msra.mxu0 0
      %296 = vmatpush.bf16.msra.mxu0 0
      %297 = vmatpush.bf16.msra.mxu0 0
      %298 = vmatpush.bf16.msra.mxu0 0
      %299 = vmatpush.bf16.msra.mxu0 0
      %300 = vmatpush.bf16.msra.mxu0 0
      %301 = vmatpush.bf16.msra.mxu0 %v292
      %302 = vmatmul.bf16.gmra.mxu0 %v285
      %v303 = vpop.f32.mrf.mxu0
      %v304 = vadd.f32 0.0, %v303
      %v305 = vpop.f32.mrf.mxu0
      %v306 = vadd.f32 0.0, %v305
      %307 = vdwg.mxu0
      %v308 = vld [vmem:[#allocation2] sm:$0xff]
      %v309 = vld [vmem:[#allocation2 + $0x8] sm:$0xff]
      %312 = vrot.lane.b32.xlu0 %v304, 64
      %v313 = vpop.permute.xlu0 %312
      %314 = vrot.lane.b32.xlu0 %v306, 64
      %v315 = vpop.permute.xlu0 %314
      %v318 = vmax.f32 %v308, %v313
      %v319 = vmax.f32 %v309, %v315
      %v320 = vsub.f32 %v308, %v318
      %v321 = vsub.f32 %v309, %v319
      %v322 = vmul.f32 %v320, 1.442695
      %v323 = vpow.pop %v322
      %v324 = vmul.f32 %v321, 1.442695
      %v325 = vpow.pop %v324
      %328 = vrot.lane.b32.xlu0 %v318, 64
      %v329 = vpop.permute.xlu0 %328
      %330 = vrot.lane.b32.xlu0 %v319, 64
      %v331 = vpop.permute.xlu0 %330
      %v334 = vsub.f32 %v304, %v329
      %v335 = vsub.f32 %v306, %v331
      %v336 = vmul.f32 %v334, 1.442695
      %v337 = vpow.pop %v336
      %v338 = vmul.f32 %v335, 1.442695
      %v339 = vpow.pop %v338
      %v340 = vld [vmem:[#allocation3] sm:$0xff]
      %v341 = vld [vmem:[#allocation3 + $0x8] sm:$0xff]
      %v342 = vmul.f32 %v323, %v340
      %v343 = vmul.f32 %v325, %v341
      %346 = vrot.lane.b32.xlu0 %v337, 64
      %v347 = vpop.permute.xlu0 %346
      %348 = vrot.lane.b32.xlu0 %v339, 64
      %v349 = vpop.permute.xlu0 %348
      %v352 = vadd.f32 %v342, %v347
      %v353 = vadd.f32 %v343, %v349
      %vm354 = vcmask 7168
      %355 = vst.msk [vmem:[#allocation3] sm:$0xff] %vm354, %v352
      %356 = vst.msk [vmem:[#allocation3 + $0x8] sm:$0xff] %vm354, %v353
      %v357 = vld [vmem:[#allocation4] sm:$0xff]
      %v358 = vld [vmem:[#allocation4 + $0x8] sm:$0xff]
      %360 = vset.pattern.permute.xlu0 0
      %361 = vperm.xlu0 %360, %v323
      %v362 = vpop.permute.xlu0 %361
      %365 = vset.pattern.permute.xlu0 0
      %366 = vperm.xlu0 %365, %v325
      %v367 = vpop.permute.xlu0 %366
      %v369 = vmul.f32 %v362, %v357
      %v370 = vmul.f32 %v367, %v358
      %371 = vset.pattern.permute.xlu0 64
      %372 = vperm.xlu0 %371, %v337
      %v373 = vpop.permute.xlu0 %372
      %375 = vset.pattern.permute.xlu0 64
      %376 = vperm.xlu0 %375, %v339
      %v377 = vpop.permute.xlu0 %376
      %v379 = vmul.f32 %v373, %v304
      %v380 = vmul.f32 %v377, %v306
      %v381 = vadd.f32 %v369, %v379
      %v382 = vadd.f32 %v370, %v380
      %vm383 = vcmask 523264
      %384 = vst.msk [vmem:[#allocation4] sm:$0xff] %vm383, %v381
      %385 = vst.msk [vmem:[#allocation4 + $0x8] sm:$0xff] %vm383, %v382
      %386 = vst.msk [vmem:[#allocation2] sm:$0xff] %vm354, %v318
      %387 = vst.msk [vmem:[#allocation2 + $0x8] sm:$0xff] %vm354, %v319
      %p388 = scmp.eq.s32.totalorder %s19, 5
      // Predicated region
      $region37: #{stcl_act_forward.36} parent=31 // pred_check
        %p389 = pneg %p388
      $region38: #{stcl_act_forward.36} parent=31 // pred_check_branch
        %391 = sbr.rel (%p389) target = $region40
      $region39: #{stcl_act_forward.36} parent=31 // pred_region
        %v392 = vld [vmem:[#allocation4] sm:$0xff]
        %v393 = vld [vmem:[#allocation4 + $0x8] sm:$0xff]
        %v394 = vld [vmem:[#allocation3] sm:$0xff]
        %v395 = vld [vmem:[#allocation3 + $0x8] sm:$0xff]
        %v396 = vrcp.pop %v394
        %v397 = vrcp.pop %v395
        %399 = vset.pattern.permute.xlu0 0
        %400 = vperm.xlu0 %399, %v396
        %v401 = vpop.permute.xlu0 %400
        %404 = vset.pattern.permute.xlu0 0
        %405 = vperm.xlu0 %404, %v397
        %v406 = vpop.permute.xlu0 %405
        %v408 = vmul.f32 %v392, %v401
        %v409 = vmul.f32 %v393, %v406
        %410 = vst.msk [vmem:[%s216] sm:$0xff] %vm383, %v408
        %411 = vst.msk [vmem:[%s216 + $0x8] sm:$0xff] %vm383, %v409
      $region40: #{stcl_act_forward.36} parent=31 // pred_fallthru
        _
      %p412 = scmp.lt.s32.totalorder %s18, 1
      %s413 = scalar_select %p412, %s18, 1
      %s414 = smul.addr %s413, 2
      %s415 = smul.addr %s414, 8
      %s416 = scalar_lea.vmem %s3, %s415
      // Predicated region
      $region41: #{stcl_act_forward.36} parent=31 // pred_check
        %p417 = pneg %p122
      $region42: #{stcl_act_forward.36} parent=31 // pred_check_branch
        %419 = sbr.rel (%p417) target = $region44
      $region43: #{stcl_act_forward.36} parent=31 // pred_region
        _
      $region44: #{stcl_act_forward.36} parent=31 // pred_fallthru
        _
    $region32: #{stcl_act_forward.36} parent=5 // pred_fallthru
      _
    %p420 = scmp.le.s32.totalorder 2, %s9
    // Predicated region
    $region45: #{stcl_act_forward.36} parent=5 // pred_check
      %p421 = pneg %p420
    $region46: #{stcl_act_forward.36} parent=5 // pred_check_branch
      %423 = sbr.rel (%p421) target = $region48
    $region47: #{stcl_act_forward.36} parent=5 // pred_region
      %s424 = ssub.s32 %s9, 2
      // Predicated region
      $region49: #{stcl_act_forward.36} parent=47 // pred_check
        %p425 = pneg %p128
      $region50: #{stcl_act_forward.36} parent=47 // pred_check_branch
        %427 = sbr.rel (%p425) target = $region52
      $region51: #{stcl_act_forward.36} parent=47 // pred_region
        %p428 = scmp.lt.s32.totalorder %s20, 1
        %s429 = scalar_select %p428, %s20, 1
        %s430 = smul.addr %s429, 2
        %s431 = smul.addr %s430, 8
        %s432 = scalar_lea.vmem %s3, %s431
      $region52: #{stcl_act_forward.36} parent=47 // pred_fallthru
        _
    $region48: #{stcl_act_forward.36} parent=5 // pred_fallthru
      _
  $region6: #{stcl_act_forward.36} parent=0 // loop_footer
    %s13 = sadd.s32 1, %s9
  $region7: #{stcl_act_forward.36} parent=0 // loop_footer_branch
    %8 = sbr.rel target = $region3
  $region8: #{stcl_act_forward.36} parent=0 // loop_exit
    _

// kernel: stcl_act_forward.26
$region0: #{stcl_act_forward.26}
  #allocation0 [shape = 'u32[]', space=smem, size = 0x4, offset = 0x4, fixed_abs, tag = 'smem constant byte address 0x4 - core index']
  #allocation1 [shape = 'u32[72,128]{1,0:T(1,128)}', space=vmem, size = 0x9000, scoped, tag = 'internal scratch']
  %s0 = inlined_call_operand.vmem [shape: f32[2,16,16], index: 0, kind: input, shape index: {}]
  %s1 = inlined_call_operand.vmem [shape: f32[2,16,64], index: 1, kind: input, shape index: {}]
  %s2 = inlined_call_operand.vmem [shape: f32[2,16,64], index: 2, kind: output, shape index: {}]
  %s3 = sld [smem:[#allocation0]]
  $region41: #{stcl_act_forward.26} parent=0
    _
  %s5 = ssub.s32 1, %s3
  %s6 = scalar_select 0, %s5, %s3
  loop: start=0, step=1, limit=4
  $region2: #{stcl_act_forward.26} parent=0 // loop_pre_header
    _
  $region3: #{stcl_act_forward.26} parent=0 // loop_header
    %s8 = sphi 0, %s12
    %p9 = scmp.ge.s32.totalorder %s8, 4
    %s18 = sphi 0, %s20
    %s21 = sphi 0, %s18
    %s22 = sphi 0, %s21
    %s38 = sphi 0, %s22
    %s44 = sphi 0, %s46
    %s47 = sphi 0, %s44
    %s48 = sphi 0, %s47
    %s64 = sphi 0, %s48
    %s70 = sphi 0, %s72
    %s73 = sphi 0, %s70
    %s74 = sphi 0, %s73
    %s90 = sphi 0, %s74
  $region4: #{stcl_act_forward.26} parent=0 // loop_header_branch
    %11 = sbr.rel (%p9) target = $region8
  $region5: #{stcl_act_forward.26} parent=0 // loop_body
    %s13 = ssub.s32 %s8, 1
    %s14 = ssub.s32 %s8, 2
    %s15 = sadd.s32 %s8, 1
    %s16 = ssub.s32 %s8, %s15
    %p17 = scmp.eq.s32.totalorder %s16, 0
    %s19 = sadd.s32 %s18, 1
    %s20 = scalar_select %p17, %s18, %s19
    %p23 = pneg %p17
    %p24 = scmp.eq.s32.totalorder %s8, 1
    %p25 = por %p23, %p24
    %p26 = scmp.ne.s32.totalorder %s18, %s21
    %p27 = scmp.eq.s32.totalorder %s8, 0
    %p28 = por %p26, %p27
    %p29 = scmp.ne.s32.totalorder %s18, %s21
    %p30 = scmp.eq.s32.totalorder %s13, 1
    %p31 = por %p29, %p30
    %p32 = scmp.ne.s32.totalorder %s21, %s22
    %p33 = scmp.eq.s32.totalorder %s13, 0
    %p34 = por %p32, %p33
    %p35 = scmp.ne.s32.totalorder %s21, %s22
    %p36 = scmp.eq.s32.totalorder %s14, 1
    %p37 = por %p35, %p36
    %p39 = scmp.ne.s32.totalorder %s22, %s38
    %p40 = scmp.eq.s32.totalorder %s14, 0
    %p41 = por %p39, %p40
    %s42 = ssub.s32 %s8, %s15
    %p43 = scmp.eq.s32.totalorder %s42, 0
    %s45 = sadd.s32 %s44, 1
    %s46 = scalar_select %p43, %s44, %s45
    %p49 = pneg %p43
    %p50 = scmp.eq.s32.totalorder %s8, 1
    %p51 = por %p49, %p50
    %p52 = scmp.ne.s32.totalorder %s44, %s47
    %p53 = scmp.eq.s32.totalorder %s8, 0
    %p54 = por %p52, %p53
    %p55 = scmp.ne.s32.totalorder %s44, %s47
    %p56 = scmp.eq.s32.totalorder %s13, 1
    %p57 = por %p55, %p56
    %p58 = scmp.ne.s32.totalorder %s47, %s48
    %p59 = scmp.eq.s32.totalorder %s13, 0
    %p60 = por %p58, %p59
    %p61 = scmp.ne.s32.totalorder %s47, %s48
    %p62 = scmp.eq.s32.totalorder %s14, 1
    %p63 = por %p61, %p62
    %p65 = scmp.ne.s32.totalorder %s48, %s64
    %p66 = scmp.eq.s32.totalorder %s14, 0
    %p67 = por %p65, %p66
    %s68 = ssub.s32 %s8, %s15
    %p69 = scmp.eq.s32.totalorder %s68, 0
    %s71 = sadd.s32 %s70, 1
    %s72 = scalar_select %p69, %s70, %s71
    %p75 = pneg %p69
    %p76 = scmp.eq.s32.totalorder %s8, 1
    %p77 = por %p75, %p76
    %p78 = scmp.ne.s32.totalorder %s70, %s73
    %p79 = scmp.eq.s32.totalorder %s8, 0
    %p80 = por %p78, %p79
    %p81 = scmp.ne.s32.totalorder %s70, %s73
    %p82 = scmp.eq.s32.totalorder %s13, 1
    %p83 = por %p81, %p82
    %p84 = scmp.ne.s32.totalorder %s73, %s74
    %p85 = scmp.eq.s32.totalorder %s13, 0
    %p86 = por %p84, %p85
    %p87 = scmp.ne.s32.totalorder %s73, %s74
    %p88 = scmp.eq.s32.totalorder %s14, 1
    %p89 = por %p87, %p88
    %p91 = scmp.ne.s32.totalorder %s74, %s90
    %p92 = scmp.eq.s32.totalorder %s14, 0
    %p93 = por %p91, %p92
    %p94 = scmp.le.s32.totalorder 1, %s8
    %p95 = scmp.lt.s32.totalorder %s8, 3
    %p96 = pnand %p94, %p95
    %p97 = pneg %p96
    // Predicated region
    $region9: #{stcl_act_forward.26} parent=5 // pred_check
      _
    $region10: #{stcl_act_forward.26} parent=5 // pred_check_branch
      %99 = sbr.rel (%p96) target = $region12
    $region11: #{stcl_act_forward.26} parent=5 // pred_region
      %s100 = ssub.s32 %s8, 1
    $region12: #{stcl_act_forward.26} parent=5 // pred_fallthru
      _
    %p101 = scmp.lt.s32.totalorder %s8, 2
    // Predicated region
    $region13: #{stcl_act_forward.26} parent=5 // pred_check
      %p102 = pneg %p101
    $region14: #{stcl_act_forward.26} parent=5 // pred_check_branch
      %104 = sbr.rel (%p102) target = $region16
    $region15: #{stcl_act_forward.26} parent=5 // pred_region
      // Predicated region
      $region17: #{stcl_act_forward.26} parent=15 // pred_check
        %p105 = pneg %p28
      $region18: #{stcl_act_forward.26} parent=15 // pred_check_branch
        %107 = sbr.rel (%p105) target = $region20
      $region19: #{stcl_act_forward.26} parent=15 // pred_region
        %p108 = scmp.lt.s32.totalorder %s8, 1
        %s109 = scalar_select %p108, %s8, 1
        %s110 = smul.addr %s109, 2
        %s111 = smul.addr %s110, 8
        %s112 = scalar_lea.vmem %s0, %s111
      $region20: #{stcl_act_forward.26} parent=15 // pred_fallthru
        _
      // Predicated region
      $region21: #{stcl_act_forward.26} parent=15 // pred_check
        %p113 = pneg %p54
      $region22: #{stcl_act_forward.26} parent=15 // pred_check_branch
        %115 = sbr.rel (%p113) target = $region24
      $region23: #{stcl_act_forward.26} parent=15 // pred_region
        %p116 = scmp.lt.s32.totalorder %s8, 1
        %s117 = scalar_select %p116, %s8, 1
        %s118 = smul.addr %s117, 2
        %s119 = smul.addr %s118, 8
        %s120 = scalar_lea.vmem %s1, %s119
      $region24: #{stcl_act_forward.26} parent=15 // pred_fallthru
        _
    $region16: #{stcl_act_forward.26} parent=5 // pred_fallthru
      _
    %p121 = scmp.le.s32.totalorder 1, %s8
    %p122 = scmp.lt.s32.totalorder %s8, 3
    %p123 = pnand %p121, %p122
    %p124 = pneg %p123
    // Predicated region
    $region25: #{stcl_act_forward.26} parent=5 // pred_check
      _
    $region26: #{stcl_act_forward.26} parent=5 // pred_check_branch
      %126 = sbr.rel (%p123) target = $region28
    $region27: #{stcl_act_forward.26} parent=5 // pred_region
      %s127 = ssub.s32 %s8, 1
      %p128 = scmp.lt.s32.totalorder %s13, 1
      %s129 = scalar_select %p128, %s13, 1
      %s130 = smul.addr %s129, 2
      %s131 = smul.addr %s130, 8
      %s132 = scalar_lea.vmem %s0, %s131
      %p133 = pneg %p34
      %p134 = pneg %p31
      %p135 = scmp.lt.s32.totalorder %s13, 1
      %s136 = scalar_select %p135, %s13, 1
      %s137 = smul.addr %s136, 2
      %s138 = smul.addr %s137, 8
      %s139 = scalar_lea.vmem %s1, %s138
      %p140 = pneg %p60
      %p141 = pneg %p57
      %p142 = pneg %p86
      %p143 = pneg %p83
      %p144 = scmp.lt.s32.totalorder %s13, 1
      %s145 = scalar_select %p144, %s13, 1
      %s146 = smul.addr %s145, 2
      %s147 = smul.addr %s146, 8
      %s148 = scalar_lea.vmem %s2, %s147
      %p149 = scmp.lt.s32.totalorder %s13, 1
      %s150 = scalar_select %p149, %s13, 1
      %s151 = smul.addr %s150, 2
      %s152 = smul.addr %s151, 8
      %s153 = scalar_lea.vmem %s0, %s152
      %p154 = scmp.lt.s32.totalorder %s13, 1
      %s155 = scalar_select %p154, %s13, 1
      %s156 = smul.addr %s155, 2
      %s157 = smul.addr %s156, 8
      %s158 = scalar_lea.vmem %s1, %s157
      %p159 = scmp.lt.s32.totalorder %s13, 1
      %s160 = scalar_select %p159, %s13, 1
      %s161 = smul.addr %s160, 2
      %s162 = smul.addr %s161, 8
      %s163 = scalar_lea.vmem %s2, %s162
      %v165 = vld [vmem:[%s153] sm:$0xff]
      %v166 = vld [vmem:[%s153 + $0x8] sm:$0xff]
      %v167 = vmul.f32 %v165, %v165
      %v168 = vmul.f32 %v166, %v166
      %vm169 = vcmask 130048
      %v170 = vsel %vm169, %v167, 0.0
      %171 = vadd.xlane.f32.xlu0 %v170
      %v172 = vpop.xlane.xlu0 %171
      %v173 = vsel %vm169, %v168, 0.0
      %174 = vadd.xlane.f32.xlu0 %v173
      %v175 = vpop.xlane.xlu0 %174
      %v176 = vrsqrt.pop %v172
      %v177 = vmul.f32 %v176, %v172
      %v178 = vmul.f32 %v177, %v176
      %v179 = vmul.f32 0.5, %v178
      %v180 = vsub.f32 1.5, %v179
      %v181 = vmul.f32 %v176, %v180
      %v182 = vmul.f32 %v172, %v181
      %vm183 = vcmp.eq.f32.partialorder %v172, inf
      %v184 = vsel %vm183, %v172, %v182
      %vm185 = vcmp.eq.f32.partialorder %v172, 0.0
      %v186 = vand.u32 %v172, 2147483648
      %v187 = vsel %vm185, %v186, %v184
      %v188 = vrsqrt.pop %v175
      %v189 = vmul.f32 %v188, %v175
      %v190 = vmul.f32 %v189, %v188
      %v191 = vmul.f32 0.5, %v190
      %v192 = vsub.f32 1.5, %v191
      %v193 = vmul.f32 %v188, %v192
      %v194 = vmul.f32 %v175, %v193
      %vm195 = vcmp.eq.f32.partialorder %v175, inf
      %v196 = vsel %vm195, %v175, %v194
      %vm197 = vcmp.eq.f32.partialorder %v175, 0.0
      %v198 = vand.u32 %v175, 2147483648
      %v199 = vsel %vm197, %v198, %v196
      %v200 = vmax.f32 %v187, 1e-12
      %v201 = vmax.f32 %v199, 1e-12
      %v202 = vrcp.pop %v200
      %v203 = vmul.f32 %v200, %v202
      %v204 = vsub.f32 1.0, %v203
      %v205 = vmul.f32 %v202, %v204
      %v206 = vadd.f32 %v202, %v205
      %vm207 = vweird.f32 %v200
      %vm208 = vweird.f32 %v202
      %vm209 = vmor %vm207, %vm208
      %v210 = vsel %vm209, %v202, %v206
      %v211 = vand.u32 2147483647, %v200
      %vm212 = vcmp.eq.f32.partialorder %v211, 8.507059e+37
      %v213 = vand.u32 %v200, 2147483648
      %v214 = vor.u32 1.1754944e-38, %v213
      %v215 = vsel %vm212, %v214, %v210
      %v216 = vmul.f32 %v165, %v215
      %v217 = vrcp.pop %v201
      %v218 = vmul.f32 %v201, %v217
      %v219 = vsub.f32 1.0, %v218
      %v220 = vmul.f32 %v217, %v219
      %v221 = vadd.f32 %v217, %v220
      %vm222 = vweird.f32 %v201
      %vm223 = vweird.f32 %v217
      %vm224 = vmor %vm222, %vm223
      %v225 = vsel %vm224, %v217, %v221
      %v226 = vand.u32 2147483647, %v201
      %vm227 = vcmp.eq.f32.partialorder %v226, 8.507059e+37
      %v228 = vand.u32 %v201, 2147483648
      %v229 = vor.u32 1.1754944e-38, %v228
      %v230 = vsel %vm227, %v229, %v225
      %v231 = vmul.f32 %v166, %v230
      %v232 = vpack.c.bf16 %v231, %v216
      %v234 = vsel %vm169, %v232, 0
      %236 = vmatpush.bf16.xpose.msra.mxu0 0
      %237 = vmatpush.bf16.xpose.msra.mxu0 0
      %238 = vmatpush.bf16.xpose.msra.mxu0 0
      %239 = vmatpush.bf16.xpose.msra.mxu0 0
      %240 = vmatpush.bf16.xpose.msra.mxu0 0
      %241 = vmatpush.bf16.xpose.msra.mxu0 0
      %242 = vmatpush.bf16.xpose.msra.mxu0 0
      %243 = vmatpush.bf16.xpose.msra.mxu0 %v234
      %244 = vmatmul.bf16.gmra.mxu0 %v234
      %v245 = vpop.f32.mrf.mxu0
      %v246 = vadd.f32 0.0, %v245
      %v247 = vpop.f32.mrf.mxu0
      %v248 = vadd.f32 0.0, %v247
      %249 = vdwg.mxu0
      %v250 = vsel %vm169, %v246, -inf
      %251 = vmax.xlane.f32.xlu0 %v250
      %v252 = vpop.xlane.xlu0 %251
      %v253 = vsel %vm169, %v248, -inf
      %254 = vmax.xlane.f32.xlu0 %v253
      %v255 = vpop.xlane.xlu0 %254
      %v256 = vsub.f32 %v246, %v252
      %v257 = vsub.f32 %v248, %v255
      %v258 = vmul.f32 %v256, 1.442695
      %v259 = vpow.pop %v258
      %v260 = vmul.f32 %v257, 1.442695
      %v261 = vpow.pop %v260
      %v262 = vsel %vm169, %v259, 0.0
      %263 = vadd.xlane.f32.xlu0 %v262
      %v264 = vpop.xlane.xlu0 %263
      %v265 = vsel %vm169, %v261, 0.0
      %266 = vadd.xlane.f32.xlu0 %v265
      %v267 = vpop.xlane.xlu0 %266
      %v268 = vrcp.pop %v264
      %v269 = vrcp.pop %v267
      %v270 = vmul.f32 %v259, %v268
      %v271 = vmul.f32 %v261, %v269
      %v272 = vld [vmem:[%s158] sm:$0xff]
      %v273 = vld [vmem:[%s158 + $0x8] sm:$0xff]
      %v274 = vpack.c.bf16 %v271, %v270
      %v275 = vpack.c.bf16 %v273, %v272
      %v277 = vsel %vm169, %v274, 0
      %279 = vmatpush.bf16.msra.mxu0 0
      %280 = vmatpush.bf16.msra.mxu0 0
      %281 = vmatpush.bf16.msra.mxu0 0
      %282 = vmatpush.bf16.msra.mxu0 0
      %283 = vmatpush.bf16.msra.mxu0 0
      %284 = vmatpush.bf16.msra.mxu0 0
      %285 = vmatpush.bf16.msra.mxu0 0
      %286 = vmatpush.bf16.msra.mxu0 %v275
      %287 = vmatmul.bf16.gmra.mxu0 %v277
      %v288 = vpop.f32.mrf.mxu0
      %v289 = vadd.f32 %v272, %v288
      %v290 = vpop.f32.mrf.mxu0
      %v291 = vadd.f32 %v273, %v290
      %292 = vdwg.mxu0
      %v293 = vmax.f32 %v289, 0.0
      %v294 = vmax.f32 %v291, 0.0
      %vm295 = vcmask 523264
      %296 = vst.msk [vmem:[%s163] sm:$0xff] %vm295, %v293
      %297 = vst.msk [vmem:[%s163 + $0x8] sm:$0xff] %vm295, %v294
      %p298 = scmp.lt.s32.totalorder %s13, 1
      %s299 = scalar_select %p298, %s13, 1
      %s300 = smul.addr %s299, 2
      %s301 = smul.addr %s300, 8
      %s302 = scalar_lea.vmem %s2, %s301
      // Predicated region
      $region29: #{stcl_act_forward.26} parent=27 // pred_check
        %p303 = pneg %p83
      $region30: #{stcl_act_forward.26} parent=27 // pred_check_branch
        %305 = sbr.rel (%p303) target = $region32
      $region31: #{stcl_act_forward.26} parent=27 // pred_region
        _
      $region32: #{stcl_act_forward.26} parent=27 // pred_fallthru
        _
    $region28: #{stcl_act_forward.26} parent=5 // pred_fallthru
      _
    %p306 = scmp.le.s32.totalorder 2, %s8
    // Predicated region
    $region33: #{stcl_act_forward.26} parent=5 // pred_check
      %p307 = pneg %p306
    $region34: #{stcl_act_forward.26} parent=5 // pred_check_branch
      %309 = sbr.rel (%p307) target = $region36
    $region35: #{stcl_act_forward.26} parent=5 // pred_region
      %s310 = ssub.s32 %s8, 2
      // Predicated region
      $region37: #{stcl_act_forward.26} parent=35 // pred_check
        %p311 = pneg %p89
      $region38: #{stcl_act_forward.26} parent=35 // pred_check_branch
        %313 = sbr.rel (%p311) target = $region40
      $region39: #{stcl_act_forward.26} parent=35 // pred_region
        %p314 = scmp.lt.s32.totalorder %s14, 1
        %s315 = scalar_select %p314, %s14, 1
        %s316 = smul.addr %s315, 2
        %s317 = smul.addr %s316, 8
        %s318 = scalar_lea.vmem %s2, %s317
      $region40: #{stcl_act_forward.26} parent=35 // pred_fallthru
        _
    $region36: #{stcl_act_forward.26} parent=5 // pred_fallthru
      _
  $region6: #{stcl_act_forward.26} parent=0 // loop_footer
    %s12 = sadd.s32 1, %s8
  $region7: #{stcl_act_forward.26} parent=0 // loop_footer_branch
    %7 = sbr.rel target = $region3
  $region8: #{stcl_act_forward.26} parent=0 // loop_exit
    _

// kernel: stcl_act_forward.27
$region0: #{stcl_act_forward.27}
  #allocation0 [shape = 'u32[]', space=smem, size = 0x4, offset = 0x4, fixed_abs, tag = 'smem constant byte address 0x4 - core index']
  #allocation1 [shape = 'u32[72,128]{1,0:T(1,128)}', space=vmem, size = 0x9000, scoped, tag = 'internal scratch']
  #allocation2 [shape = 'f32[32,128]{1,0:T(8,128)}', space=vmem, size = 0x4000, scoped, tag = 'scratch operand']
  %s0 = inlined_call_operand.vmem [shape: bf16[32,256], index: 0, kind: input, shape index: {}]
  %s1 = inlined_call_operand.vmem [shape: bf16[256,128], index: 1, kind: input, shape index: {}]
  %s2 = inlined_call_operand.vmem [shape: f32[1,128], index: 2, kind: input, shape index: {}]
  %s3 = inlined_call_operand.vmem [shape: f32[32,128], index: 3, kind: output, shape index: {}]
  %s4 = sld [smem:[#allocation0]]
  $region30: #{stcl_act_forward.27} parent=0
    _
  %s6 = ssub.s32 1, %s4
  %s7 = scalar_select 0, %s6, %s4
  // Predicated region
  $region2: #{stcl_act_forward.27} parent=0 // pred_check
    _
  $region3: #{stcl_act_forward.27} parent=0 // pred_check_branch
    %9 = sbr.rel (0) target = $region5
  $region4: #{stcl_act_forward.27} parent=0 // pred_region
    _
  $region5: #{stcl_act_forward.27} parent=0 // pred_fallthru
    _
  // Predicated region
  $region6: #{stcl_act_forward.27} parent=0 // pred_check
    _
  $region7: #{stcl_act_forward.27} parent=0 // pred_check_branch
    %11 = sbr.rel (0) target = $region9
  $region8: #{stcl_act_forward.27} parent=0 // pred_region
    _
  $region9: #{stcl_act_forward.27} parent=0 // pred_fallthru
    _
  // Predicated region
  $region10: #{stcl_act_forward.27} parent=0 // pred_check
    _
  $region11: #{stcl_act_forward.27} parent=0 // pred_check_branch
    %13 = sbr.rel (0) target = $region13
  $region12: #{stcl_act_forward.27} parent=0 // pred_region
    _
  $region13: #{stcl_act_forward.27} parent=0 // pred_fallthru
    _
  %p14 = scmp.eq.s32.totalorder 0, 0
  // Predicated region
  $region14: #{stcl_act_forward.27} parent=0 // pred_check
    %p15 = pneg %p14
  $region15: #{stcl_act_forward.27} parent=0 // pred_check_branch
    %17 = sbr.rel (%p15) target = $region17
  $region16: #{stcl_act_forward.27} parent=0 // pred_region
    %18 = vst [vmem:[#allocation2] sm:$0xff] 0.0
    %19 = vst [vmem:[#allocation2 + $0x8] sm:$0xff] 0.0
    %20 = vst [vmem:[#allocation2 + $0x10] sm:$0xff] 0.0
    %21 = vst [vmem:[#allocation2 + $0x18] sm:$0xff] 0.0
  $region17: #{stcl_act_forward.27} parent=0 // pred_fallthru
    _
  %v22 = vld [vmem:[#allocation2] sm:$0xff]
  %v23 = vld [vmem:[#allocation2 + $0x8] sm:$0xff]
  %v24 = vld [vmem:[#allocation2 + $0x10] sm:$0xff]
  %v25 = vld [vmem:[#allocation2 + $0x18] sm:$0xff]
  %v26 = vld [vmem:[%s0] sm:$0xff]
  %v27 = vld [vmem:[%s0 + $0x8] sm:$0xff]
  %v28 = vld [vmem:[%s0 + $0x10] sm:$0xff]
  %v29 = vld [vmem:[%s0 + $0x18] sm:$0xff]
  %v30 = vld [vmem:[%s1] sm:$0xf]
  %v31 = vld [vmem:[%s1 + $0x4] sm:$0xf]
  %v32 = vld [vmem:[%s1 + $0x8] sm:$0xf]
  %v33 = vld [vmem:[%s1 + $0xc] sm:$0xf]
  %v34 = vld [vmem:[%s1 + $0x10] sm:$0xf]
  %v35 = vld [vmem:[%s1 + $0x14] sm:$0xf]
  %v36 = vld [vmem:[%s1 + $0x18] sm:$0xf]
  %v37 = vld [vmem:[%s1 + $0x1c] sm:$0xf]
  %v38 = vld [vmem:[%s1 + $0x20] sm:$0xf]
  %v39 = vld [vmem:[%s1 + $0x24] sm:$0xf]
  %v40 = vld [vmem:[%s1 + $0x28] sm:$0xf]
  %v41 = vld [vmem:[%s1 + $0x2c] sm:$0xf]
  %v42 = vld [vmem:[%s1 + $0x30] sm:$0xf]
  %v43 = vld [vmem:[%s1 + $0x34] sm:$0xf]
  %v44 = vld [vmem:[%s1 + $0x38] sm:$0xf]
  %v45 = vld [vmem:[%s1 + $0x3c] sm:$0xf]
  %v46 = vld [vmem:[%s1 + $0x40] sm:$0xf]
  %v47 = vld [vmem:[%s1 + $0x44] sm:$0xf]
  %v48 = vld [vmem:[%s1 + $0x48] sm:$0xf]
  %v49 = vld [vmem:[%s1 + $0x4c] sm:$0xf]
  %v50 = vld [vmem:[%s1 + $0x50] sm:$0xf]
  %v51 = vld [vmem:[%s1 + $0x54] sm:$0xf]
  %v52 = vld [vmem:[%s1 + $0x58] sm:$0xf]
  %v53 = vld [vmem:[%s1 + $0x5c] sm:$0xf]
  %v54 = vld [vmem:[%s1 + $0x60] sm:$0xf]
  %v55 = vld [vmem:[%s1 + $0x64] sm:$0xf]
  %v56 = vld [vmem:[%s1 + $0x68] sm:$0xf]
  %v57 = vld [vmem:[%s1 + $0x6c] sm:$0xf]
  %v58 = vld [vmem:[%s1 + $0x70] sm:$0xf]
  %v59 = vld [vmem:[%s1 + $0x74] sm:$0xf]
  %v60 = vld [vmem:[%s1 + $0x78] sm:$0xf]
  %v61 = vld [vmem:[%s1 + $0x7c] sm:$0xf]
  %v66 = vunpack.c.l.b16 %v26
  %v67 = vunpack.c.h.b16 %v26
  %v68 = vunpack.c.l.b16 %v27
  %v69 = vunpack.c.h.b16 %v27
  %v70 = vunpack.c.l.b16 %v28
  %v71 = vunpack.c.h.b16 %v28
  %v72 = vunpack.c.l.b16 %v29
  %v73 = vunpack.c.h.b16 %v29
  %v74 = vpack.c.b16 %v68, %v66
  %v75 = vpack.c.b16 %v69, %v67
  %v76 = vpack.c.b16 %v72, %v70
  %v77 = vpack.c.b16 %v73, %v71
  %v114 = vunpack.c.l.b16 %v30
  %v115 = vunpack.c.l.b16 %v31
  %v116 = vunpack.c.l.b16 %v32
  %v117 = vunpack.c.l.b16 %v33
  %v118 = vunpack.c.l.b16 %v34
  %v119 = vunpack.c.l.b16 %v35
  %v120 = vunpack.c.l.b16 %v36
  %v121 = vunpack.c.l.b16 %v37
  %v122 = vunpack.c.l.b16 %v38
  %v123 = vunpack.c.l.b16 %v39
  %v124 = vunpack.c.l.b16 %v40
  %v125 = vunpack.c.l.b16 %v41
  %v126 = vunpack.c.l.b16 %v42
  %v127 = vunpack.c.l.b16 %v43
  %v128 = vunpack.c.l.b16 %v44
  %v129 = vunpack.c.l.b16 %v45
  %v130 = vunpack.c.l.b16 %v46
  %v131 = vunpack.c.l.b16 %v47
  %v132 = vunpack.c.l.b16 %v48
  %v133 = vunpack.c.l.b16 %v49
  %v134 = vunpack.c.l.b16 %v50
  %v135 = vunpack.c.l.b16 %v51
  %v136 = vunpack.c.l.b16 %v52
  %v137 = vunpack.c.l.b16 %v53
  %v138 = vunpack.c.l.b16 %v54
  %v139 = vunpack.c.l.b16 %v55
  %v140 = vunpack.c.l.b16 %v56
  %v141 = vunpack.c.l.b16 %v57
  %v142 = vunpack.c.l.b16 %v58
  %v143 = vunpack.c.l.b16 %v59
  %v144 = vunpack.c.l.b16 %v60
  %v145 = vunpack.c.l.b16 %v61
  %v146 = vpack.c.b16 %v115, %v114
  %v147 = vpack.c.b16 %v117, %v116
  %v148 = vpack.c.b16 %v119, %v118
  %v149 = vpack.c.b16 %v121, %v120
  %v150 = vpack.c.b16 %v123, %v122
  %v151 = vpack.c.b16 %v125, %v124
  %v152 = vpack.c.b16 %v127, %v126
  %v153 = vpack.c.b16 %v129, %v128
  %v154 = vpack.c.b16 %v131, %v130
  %v155 = vpack.c.b16 %v133, %v132
  %v156 = vpack.c.b16 %v135, %v134
  %v157 = vpack.c.b16 %v137, %v136
  %v158 = vpack.c.b16 %v139, %v138
  %v159 = vpack.c.b16 %v141, %v140
  %v160 = vpack.c.b16 %v143, %v142
  %v161 = vpack.c.b16 %v145, %v144
  %178 = vmatpush.bf16.msra.mxu0 %v153
  %179 = vmatpush.bf16.msra.mxu0 %v152
  %180 = vmatpush.bf16.msra.mxu0 %v151
  %181 = vmatpush.bf16.msra.mxu0 %v150
  %182 = vmatpush.bf16.msra.mxu0 %v149
  %183 = vmatpush.bf16.msra.mxu0 %v148
  %184 = vmatpush.bf16.msra.mxu0 %v147
  %185 = vmatpush.bf16.msra.mxu0 %v146
  %186 = vmatmul.bf16.gmra.mxu0 %v74
  %v187 = vpop.f32.mrf.mxu0
  %v188 = vadd.f32 0.0, %v187
  %v189 = vpop.f32.mrf.mxu0
  %v190 = vadd.f32 0.0, %v189
  %191 = vmatmul.bf16.gmra.mxu0 %v76
  %v192 = vpop.f32.mrf.mxu0
  %v193 = vadd.f32 0.0, %v192
  %v194 = vpop.f32.mrf.mxu0
  %v195 = vadd.f32 0.0, %v194
  %196 = vdwg.mxu0
  %197 = vmatpush.bf16.msra.mxu0 %v161
  %198 = vmatpush.bf16.msra.mxu0 %v160
  %199 = vmatpush.bf16.msra.mxu0 %v159
  %200 = vmatpush.bf16.msra.mxu0 %v158
  %201 = vmatpush.bf16.msra.mxu0 %v157
  %202 = vmatpush.bf16.msra.mxu0 %v156
  %203 = vmatpush.bf16.msra.mxu0 %v155
  %204 = vmatpush.bf16.msra.mxu0 %v154
  %205 = vmatmul.bf16.gmra.mxu0 %v75
  %v206 = vpop.f32.mrf.mxu0
  %v207 = vadd.f32 %v188, %v206
  %v208 = vpop.f32.mrf.mxu0
  %v209 = vadd.f32 %v190, %v208
  %210 = vmatmul.bf16.gmra.mxu0 %v77
  %v211 = vpop.f32.mrf.mxu0
  %v212 = vadd.f32 %v193, %v211
  %v213 = vpop.f32.mrf.mxu0
  %v214 = vadd.f32 %v195, %v213
  %215 = vdwg.mxu0
  %v216 = vadd.f32 %v22, %v207
  %v217 = vadd.f32 %v23, %v209
  %v218 = vadd.f32 %v24, %v212
  %v219 = vadd.f32 %v25, %v214
  %220 = vst [vmem:[#allocation2] sm:$0xff] %v216
  %221 = vst [vmem:[#allocation2 + $0x8] sm:$0xff] %v217
  %222 = vst [vmem:[#allocation2 + $0x10] sm:$0xff] %v218
  %223 = vst [vmem:[#allocation2 + $0x18] sm:$0xff] %v219
  // Predicated region
  $region18: #{stcl_act_forward.27} parent=0 // pred_check
    %p224 = pneg %p14
  $region19: #{stcl_act_forward.27} parent=0 // pred_check_branch
    %226 = sbr.rel (%p224) target = $region21
  $region20: #{stcl_act_forward.27} parent=0 // pred_region
    %v227 = vld [vmem:[#allocation2] sm:$0xff]
    %v228 = vld [vmem:[#allocation2 + $0x8] sm:$0xff]
    %v229 = vld [vmem:[#allocation2 + $0x10] sm:$0xff]
    %v230 = vld [vmem:[#allocation2 + $0x18] sm:$0xff]
    %v231 = vld [vmem:[%s2] sm:$0x1]
    %v233 = vperm.slane %v231, 0
    %v235 = vadd.f32 %v227, %v233
    %v236 = vadd.f32 %v228, %v233
    %v237 = vadd.f32 %v229, %v233
    %v238 = vadd.f32 %v230, %v233
    %vm239 = vcmp.ge.f32.partialorder %v235, 0.0
    %vm240 = vcmp.ge.f32.partialorder %v236, 0.0
    %vm241 = vcmp.ge.f32.partialorder %v237, 0.0
    %vm242 = vcmp.ge.f32.partialorder %v238, 0.0
    %v243 = vmul.f32 %v235, 0.2
    %v244 = vmul.f32 %v236, 0.2
    %v245 = vmul.f32 %v237, 0.2
    %v246 = vmul.f32 %v238, 0.2
    %v247 = vsel %vm239, %v235, %v243
    %v248 = vsel %vm240, %v236, %v244
    %v249 = vsel %vm241, %v237, %v245
    %v250 = vsel %vm242, %v238, %v246
    %251 = vst [vmem:[%s3] sm:$0xff] %v247
    %252 = vst [vmem:[%s3 + $0x8] sm:$0xff] %v248
    %253 = vst [vmem:[%s3 + $0x10] sm:$0xff] %v249
    %254 = vst [vmem:[%s3 + $0x18] sm:$0xff] %v250
  $region21: #{stcl_act_forward.27} parent=0 // pred_fallthru
    _
  // Predicated region
  $region22: #{stcl_act_forward.27} parent=0 // pred_check
    _
  $region23: #{stcl_act_forward.27} parent=0 // pred_check_branch
    %256 = sbr.rel (0) target = $region25
  $region24: #{stcl_act_forward.27} parent=0 // pred_region
    _
  $region25: #{stcl_act_forward.27} parent=0 // pred_fallthru
    _
  // Predicated region
  $region26: #{stcl_act_forward.27} parent=0 // pred_check
    _
  $region27: #{stcl_act_forward.27} parent=0 // pred_check_branch
    %258 = sbr.rel (0) target = $region29
  $region28: #{stcl_act_forward.27} parent=0 // pred_region
    _
  $region29: #{stcl_act_forward.27} parent=0 // pred_fallthru
    _

// kernel: stcl_act_forward.37
$region0: #{stcl_act_forward.37}
  #allocation0 [shape = 'u32[]', space=smem, size = 0x4, offset = 0x4, fixed_abs, tag = 'smem constant byte address 0x4 - core index']
  #allocation1 [shape = 'u32[72,128]{1,0:T(1,128)}', space=vmem, size = 0x9000, scoped, tag = 'internal scratch']
  #allocation2 [shape = 'f32[32,128]{1,0:T(8,128)}', space=vmem, size = 0x4000, scoped, tag = 'scratch operand']
  %s0 = inlined_call_operand.vmem [shape: bf16[32,384], index: 0, kind: input, shape index: {}]
  %s1 = inlined_call_operand.vmem [shape: bf16[384,128], index: 1, kind: input, shape index: {}]
  %s2 = inlined_call_operand.vmem [shape: f32[1,128], index: 2, kind: input, shape index: {}]
  %s3 = inlined_call_operand.vmem [shape: f32[32,128], index: 3, kind: output, shape index: {}]
  %s4 = sld [smem:[#allocation0]]
  $region30: #{stcl_act_forward.37} parent=0
    _
  %s6 = ssub.s32 1, %s4
  %s7 = scalar_select 0, %s6, %s4
  // Predicated region
  $region2: #{stcl_act_forward.37} parent=0 // pred_check
    _
  $region3: #{stcl_act_forward.37} parent=0 // pred_check_branch
    %9 = sbr.rel (0) target = $region5
  $region4: #{stcl_act_forward.37} parent=0 // pred_region
    _
  $region5: #{stcl_act_forward.37} parent=0 // pred_fallthru
    _
  // Predicated region
  $region6: #{stcl_act_forward.37} parent=0 // pred_check
    _
  $region7: #{stcl_act_forward.37} parent=0 // pred_check_branch
    %11 = sbr.rel (0) target = $region9
  $region8: #{stcl_act_forward.37} parent=0 // pred_region
    _
  $region9: #{stcl_act_forward.37} parent=0 // pred_fallthru
    _
  // Predicated region
  $region10: #{stcl_act_forward.37} parent=0 // pred_check
    _
  $region11: #{stcl_act_forward.37} parent=0 // pred_check_branch
    %13 = sbr.rel (0) target = $region13
  $region12: #{stcl_act_forward.37} parent=0 // pred_region
    _
  $region13: #{stcl_act_forward.37} parent=0 // pred_fallthru
    _
  %p14 = scmp.eq.s32.totalorder 0, 0
  // Predicated region
  $region14: #{stcl_act_forward.37} parent=0 // pred_check
    %p15 = pneg %p14
  $region15: #{stcl_act_forward.37} parent=0 // pred_check_branch
    %17 = sbr.rel (%p15) target = $region17
  $region16: #{stcl_act_forward.37} parent=0 // pred_region
    %18 = vst [vmem:[#allocation2] sm:$0xff] 0.0
    %19 = vst [vmem:[#allocation2 + $0x8] sm:$0xff] 0.0
    %20 = vst [vmem:[#allocation2 + $0x10] sm:$0xff] 0.0
    %21 = vst [vmem:[#allocation2 + $0x18] sm:$0xff] 0.0
  $region17: #{stcl_act_forward.37} parent=0 // pred_fallthru
    _
  %v22 = vld [vmem:[#allocation2] sm:$0xff]
  %v23 = vld [vmem:[#allocation2 + $0x8] sm:$0xff]
  %v24 = vld [vmem:[#allocation2 + $0x10] sm:$0xff]
  %v25 = vld [vmem:[#allocation2 + $0x18] sm:$0xff]
  %v26 = vld [vmem:[%s0] sm:$0xff]
  %v27 = vld [vmem:[%s0 + $0x8] sm:$0xf]
  %v28 = vld [vmem:[%s0 + $0xc] sm:$0xff]
  %v29 = vld [vmem:[%s0 + $0x14] sm:$0xf]
  %v30 = vld [vmem:[%s0 + $0x18] sm:$0xff]
  %v31 = vld [vmem:[%s0 + $0x20] sm:$0xf]
  %v32 = vld [vmem:[%s0 + $0x24] sm:$0xff]
  %v33 = vld [vmem:[%s0 + $0x2c] sm:$0xf]
  %v34 = vld [vmem:[%s1] sm:$0xf]
  %v35 = vld [vmem:[%s1 + $0x4] sm:$0xf]
  %v36 = vld [vmem:[%s1 + $0x8] sm:$0xf]
  %v37 = vld [vmem:[%s1 + $0xc] sm:$0xf]
  %v38 = vld [vmem:[%s1 + $0x10] sm:$0xf]
  %v39 = vld [vmem:[%s1 + $0x14] sm:$0xf]
  %v40 = vld [vmem:[%s1 + $0x18] sm:$0xf]
  %v41 = vld [vmem:[%s1 + $0x1c] sm:$0xf]
  %v42 = vld [vmem:[%s1 + $0x20] sm:$0xf]
  %v43 = vld [vmem:[%s1 + $0x24] sm:$0xf]
  %v44 = vld [vmem:[%s1 + $0x28] sm:$0xf]
  %v45 = vld [vmem:[%s1 + $0x2c] sm:$0xf]
  %v46 = vld [vmem:[%s1 + $0x30] sm:$0xf]
  %v47 = vld [vmem:[%s1 + $0x34] sm:$0xf]
  %v48 = vld [vmem:[%s1 + $0x38] sm:$0xf]
  %v49 = vld [vmem:[%s1 + $0x3c] sm:$0xf]
  %v50 = vld [vmem:[%s1 + $0x40] sm:$0xf]
  %v51 = vld [vmem:[%s1 + $0x44] sm:$0xf]
  %v52 = vld [vmem:[%s1 + $0x48] sm:$0xf]
  %v53 = vld [vmem:[%s1 + $0x4c] sm:$0xf]
  %v54 = vld [vmem:[%s1 + $0x50] sm:$0xf]
  %v55 = vld [vmem:[%s1 + $0x54] sm:$0xf]
  %v56 = vld [vmem:[%s1 + $0x58] sm:$0xf]
  %v57 = vld [vmem:[%s1 + $0x5c] sm:$0xf]
  %v58 = vld [vmem:[%s1 + $0x60] sm:$0xf]
  %v59 = vld [vmem:[%s1 + $0x64] sm:$0xf]
  %v60 = vld [vmem:[%s1 + $0x68] sm:$0xf]
  %v61 = vld [vmem:[%s1 + $0x6c] sm:$0xf]
  %v62 = vld [vmem:[%s1 + $0x70] sm:$0xf]
  %v63 = vld [vmem:[%s1 + $0x74] sm:$0xf]
  %v64 = vld [vmem:[%s1 + $0x78] sm:$0xf]
  %v65 = vld [vmem:[%s1 + $0x7c] sm:$0xf]
  %v66 = vld [vmem:[%s1 + $0x80] sm:$0xf]
  %v67 = vld [vmem:[%s1 + $0x84] sm:$0xf]
  %v68 = vld [vmem:[%s1 + $0x88] sm:$0xf]
  %v69 = vld [vmem:[%s1 + $0x8c] sm:$0xf]
  %v70 = vld [vmem:[%s1 + $0x90] sm:$0xf]
  %v71 = vld [vmem:[%s1 + $0x94] sm:$0xf]
  %v72 = vld [vmem:[%s1 + $0x98] sm:$0xf]
  %v73 = vld [vmem:[%s1 + $0x9c] sm:$0xf]
  %v74 = vld [vmem:[%s1 + $0xa0] sm:$0xf]
  %v75 = vld [vmem:[%s1 + $0xa4] sm:$0xf]
  %v76 = vld [vmem:[%s1 + $0xa8] sm:$0xf]
  %v77 = vld [vmem:[%s1 + $0xac] sm:$0xf]
  %v78 = vld [vmem:[%s1 + $0xb0] sm:$0xf]
  %v79 = vld [vmem:[%s1 + $0xb4] sm:$0xf]
  %v80 = vld [vmem:[%s1 + $0xb8] sm:$0xf]
  %v81 = vld [vmem:[%s1 + $0xbc] sm:$0xf]
  %v90 = vunpack.c.l.b16 %v26
  %v91 = vunpack.c.h.b16 %v26
  %v92 = vunpack.c.l.b16 %v27
  %v93 = vunpack.c.l.b16 %v28
  %v94 = vunpack.c.h.b16 %v28
  %v95 = vunpack.c.l.b16 %v29
  %v96 = vunpack.c.l.b16 %v30
  %v97 = vunpack.c.h.b16 %v30
  %v98 = vunpack.c.l.b16 %v31
  %v99 = vunpack.c.l.b16 %v32
  %v100 = vunpack.c.h.b16 %v32
  %v101 = vunpack.c.l.b16 %v33
  %v102 = vpack.c.b16 %v93, %v90
  %v103 = vpack.c.b16 %v94, %v91
  %v104 = vpack.c.b16 %v95, %v92
  %v105 = vpack.c.b16 %v99, %v96
  %v106 = vpack.c.b16 %v100, %v97
  %v107 = vpack.c.b16 %v101, %v98
  %v162 = vunpack.c.l.b16 %v34
  %v163 = vunpack.c.l.b16 %v35
  %v164 = vunpack.c.l.b16 %v36
  %v165 = vunpack.c.l.b16 %v37
  %v166 = vunpack.c.l.b16 %v38
  %v167 = vunpack.c.l.b16 %v39
  %v168 = vunpack.c.l.b16 %v40
  %v169 = vunpack.c.l.b16 %v41
  %v170 = vunpack.c.l.b16 %v42
  %v171 = vunpack.c.l.b16 %v43
  %v172 = vunpack.c.l.b16 %v44
  %v173 = vunpack.c.l.b16 %v45
  %v174 = vunpack.c.l.b16 %v46
  %v175 = vunpack.c.l.b16 %v47
  %v176 = vunpack.c.l.b16 %v48
  %v177 = vunpack.c.l.b16 %v49
  %v178 = vunpack.c.l.b16 %v50
  %v179 = vunpack.c.l.b16 %v51
  %v180 = vunpack.c.l.b16 %v52
  %v181 = vunpack.c.l.b16 %v53
  %v182 = vunpack.c.l.b16 %v54
  %v183 = vunpack.c.l.b16 %v55
  %v184 = vunpack.c.l.b16 %v56
  %v185 = vunpack.c.l.b16 %v57
  %v186 = vunpack.c.l.b16 %v58
  %v187 = vunpack.c.l.b16 %v59
  %v188 = vunpack.c.l.b16 %v60
  %v189 = vunpack.c.l.b16 %v61
  %v190 = vunpack.c.l.b16 %v62
  %v191 = vunpack.c.l.b16 %v63
  %v192 = vunpack.c.l.b16 %v64
  %v193 = vunpack.c.l.b16 %v65
  %v194 = vunpack.c.l.b16 %v66
  %v195 = vunpack.c.l.b16 %v67
  %v196 = vunpack.c.l.b16 %v68
  %v197 = vunpack.c.l.b16 %v69
  %v198 = vunpack.c.l.b16 %v70
  %v199 = vunpack.c.l.b16 %v71
  %v200 = vunpack.c.l.b16 %v72
  %v201 = vunpack.c.l.b16 %v73
  %v202 = vunpack.c.l.b16 %v74
  %v203 = vunpack.c.l.b16 %v75
  %v204 = vunpack.c.l.b16 %v76
  %v205 = vunpack.c.l.b16 %v77
  %v206 = vunpack.c.l.b16 %v78
  %v207 = vunpack.c.l.b16 %v79
  %v208 = vunpack.c.l.b16 %v80
  %v209 = vunpack.c.l.b16 %v81
  %v210 = vpack.c.b16 %v163, %v162
  %v211 = vpack.c.b16 %v165, %v164
  %v212 = vpack.c.b16 %v167, %v166
  %v213 = vpack.c.b16 %v169, %v168
  %v214 = vpack.c.b16 %v171, %v170
  %v215 = vpack.c.b16 %v173, %v172
  %v216 = vpack.c.b16 %v175, %v174
  %v217 = vpack.c.b16 %v177, %v176
  %v218 = vpack.c.b16 %v179, %v178
  %v219 = vpack.c.b16 %v181, %v180
  %v220 = vpack.c.b16 %v183, %v182
  %v221 = vpack.c.b16 %v185, %v184
  %v222 = vpack.c.b16 %v187, %v186
  %v223 = vpack.c.b16 %v189, %v188
  %v224 = vpack.c.b16 %v191, %v190
  %v225 = vpack.c.b16 %v193, %v192
  %v226 = vpack.c.b16 %v195, %v194
  %v227 = vpack.c.b16 %v197, %v196
  %v228 = vpack.c.b16 %v199, %v198
  %v229 = vpack.c.b16 %v201, %v200
  %v230 = vpack.c.b16 %v203, %v202
  %v231 = vpack.c.b16 %v205, %v204
  %v232 = vpack.c.b16 %v207, %v206
  %v233 = vpack.c.b16 %v209, %v208
  %258 = vmatpush.bf16.msra.mxu0 %v217
  %259 = vmatpush.bf16.msra.mxu0 %v216
  %260 = vmatpush.bf16.msra.mxu0 %v215
  %261 = vmatpush.bf16.msra.mxu0 %v214
  %262 = vmatpush.bf16.msra.mxu0 %v213
  %263 = vmatpush.bf16.msra.mxu0 %v212
  %264 = vmatpush.bf16.msra.mxu0 %v211
  %265 = vmatpush.bf16.msra.mxu0 %v210
  %266 = vmatmul.bf16.gmra.mxu0 %v102
  %v267 = vpop.f32.mrf.mxu0
  %v268 = vadd.f32 0.0, %v267
  %v269 = vpop.f32.mrf.mxu0
  %v270 = vadd.f32 0.0, %v269
  %271 = vmatmul.bf16.gmra.mxu0 %v105
  %v272 = vpop.f32.mrf.mxu0
  %v273 = vadd.f32 0.0, %v272
  %v274 = vpop.f32.mrf.mxu0
  %v275 = vadd.f32 0.0, %v274
  %276 = vdwg.mxu0
  %277 = vmatpush.bf16.msra.mxu0 %v225
  %278 = vmatpush.bf16.msra.mxu0 %v224
  %279 = vmatpush.bf16.msra.mxu0 %v223
  %280 = vmatpush.bf16.msra.mxu0 %v222
  %281 = vmatpush.bf16.msra.mxu0 %v221
  %282 = vmatpush.bf16.msra.mxu0 %v220
  %283 = vmatpush.bf16.msra.mxu0 %v219
  %284 = vmatpush.bf16.msra.mxu0 %v218
  %285 = vmatmul.bf16.gmra.mxu0 %v103
  %v286 = vpop.f32.mrf.mxu0
  %v287 = vadd.f32 %v268, %v286
  %v288 = vpop.f32.mrf.mxu0
  %v289 = vadd.f32 %v270, %v288
  %290 = vmatmul.bf16.gmra.mxu0 %v106
  %v291 = vpop.f32.mrf.mxu0
  %v292 = vadd.f32 %v273, %v291
  %v293 = vpop.f32.mrf.mxu0
  %v294 = vadd.f32 %v275, %v293
  %295 = vdwg.mxu0
  %296 = vmatpush.bf16.msra.mxu0 %v233
  %297 = vmatpush.bf16.msra.mxu0 %v232
  %298 = vmatpush.bf16.msra.mxu0 %v231
  %299 = vmatpush.bf16.msra.mxu0 %v230
  %300 = vmatpush.bf16.msra.mxu0 %v229
  %301 = vmatpush.bf16.msra.mxu0 %v228
  %302 = vmatpush.bf16.msra.mxu0 %v227
  %303 = vmatpush.bf16.msra.mxu0 %v226
  %304 = vmatmul.bf16.gmra.mxu0 %v104
  %v305 = vpop.f32.mrf.mxu0
  %v306 = vadd.f32 %v287, %v305
  %v307 = vpop.f32.mrf.mxu0
  %v308 = vadd.f32 %v289, %v307
  %309 = vmatmul.bf16.gmra.mxu0 %v107
  %v310 = vpop.f32.mrf.mxu0
  %v311 = vadd.f32 %v292, %v310
  %v312 = vpop.f32.mrf.mxu0
  %v313 = vadd.f32 %v294, %v312
  %314 = vdwg.mxu0
  %v315 = vadd.f32 %v22, %v306
  %v316 = vadd.f32 %v23, %v308
  %v317 = vadd.f32 %v24, %v311
  %v318 = vadd.f32 %v25, %v313
  %319 = vst [vmem:[#allocation2] sm:$0xff] %v315
  %320 = vst [vmem:[#allocation2 + $0x8] sm:$0xff] %v316
  %321 = vst [vmem:[#allocation2 + $0x10] sm:$0xff] %v317
  %322 = vst [vmem:[#allocation2 + $0x18] sm:$0xff] %v318
  // Predicated region
  $region18: #{stcl_act_forward.37} parent=0 // pred_check
    %p323 = pneg %p14
  $region19: #{stcl_act_forward.37} parent=0 // pred_check_branch
    %325 = sbr.rel (%p323) target = $region21
  $region20: #{stcl_act_forward.37} parent=0 // pred_region
    %v326 = vld [vmem:[#allocation2] sm:$0xff]
    %v327 = vld [vmem:[#allocation2 + $0x8] sm:$0xff]
    %v328 = vld [vmem:[#allocation2 + $0x10] sm:$0xff]
    %v329 = vld [vmem:[#allocation2 + $0x18] sm:$0xff]
    %v330 = vld [vmem:[%s2] sm:$0x1]
    %v332 = vperm.slane %v330, 0
    %v334 = vadd.f32 %v326, %v332
    %v335 = vadd.f32 %v327, %v332
    %v336 = vadd.f32 %v328, %v332
    %v337 = vadd.f32 %v329, %v332
    %vm338 = vcmp.ge.f32.partialorder %v334, 0.0
    %vm339 = vcmp.ge.f32.partialorder %v335, 0.0
    %vm340 = vcmp.ge.f32.partialorder %v336, 0.0
    %vm341 = vcmp.ge.f32.partialorder %v337, 0.0
    %v342 = vmul.f32 %v334, 0.2
    %v343 = vmul.f32 %v335, 0.2
    %v344 = vmul.f32 %v336, 0.2
    %v345 = vmul.f32 %v337, 0.2
    %v346 = vsel %vm338, %v334, %v342
    %v347 = vsel %vm339, %v335, %v343
    %v348 = vsel %vm340, %v336, %v344
    %v349 = vsel %vm341, %v337, %v345
    %350 = vst [vmem:[%s3] sm:$0xff] %v346
    %351 = vst [vmem:[%s3 + $0x8] sm:$0xff] %v347
    %352 = vst [vmem:[%s3 + $0x10] sm:$0xff] %v348
    %353 = vst [vmem:[%s3 + $0x18] sm:$0xff] %v349
  $region21: #{stcl_act_forward.37} parent=0 // pred_fallthru
    _
  // Predicated region
  $region22: #{stcl_act_forward.37} parent=0 // pred_check
    _
  $region23: #{stcl_act_forward.37} parent=0 // pred_check_branch
    %355 = sbr.rel (0) target = $region25
  $region24: #{stcl_act_forward.37} parent=0 // pred_region
    _
  $region25: #{stcl_act_forward.37} parent=0 // pred_fallthru
    _
  // Predicated region
  $region26: #{stcl_act_forward.37} parent=0 // pred_check
    _
  $region27: #{stcl_act_forward.37} parent=0 // pred_check_branch
    %357 = sbr.rel (0) target = $region29
  $region28: #{stcl_act_forward.37} parent=0 // pred_region
    _
  $region29: #{stcl_act_forward.37} parent=0 // pred_fallthru
    _

// kernel: stcl_act_forward.39
$region0: #{stcl_act_forward.39}
  #allocation0 [shape = 'u32[]', space=smem, size = 0x4, offset = 0x4, fixed_abs, tag = 'smem constant byte address 0x4 - core index']
  #allocation1 [shape = 'u32[72,128]{1,0:T(1,128)}', space=vmem, size = 0x9000, scoped, tag = 'internal scratch']
  %s0 = inlined_call_operand.vmem [shape: f32[2,20,21], index: 0, kind: input, shape index: {}]
  %s1 = inlined_call_operand.vmem [shape: f32[2,16,21], index: 1, kind: output, shape index: {}]
  %s2 = sld [smem:[#allocation0]]
  $region37: #{stcl_act_forward.39} parent=0
    _
  %s4 = ssub.s32 1, %s2
  %s5 = scalar_select 0, %s4, %s2
  loop: start=0, step=1, limit=4
  $region2: #{stcl_act_forward.39} parent=0 // loop_pre_header
    _
  $region3: #{stcl_act_forward.39} parent=0 // loop_header
    %s7 = sphi 0, %s11
    %p8 = scmp.ge.s32.totalorder %s7, 4
    %s17 = sphi 0, %s19
    %s20 = sphi 0, %s17
    %s21 = sphi 0, %s20
    %s37 = sphi 0, %s21
    %s43 = sphi 0, %s45
    %s46 = sphi 0, %s43
    %s47 = sphi 0, %s46
    %s63 = sphi 0, %s47
  $region4: #{stcl_act_forward.39} parent=0 // loop_header_branch
    %10 = sbr.rel (%p8) target = $region8
  $region5: #{stcl_act_forward.39} parent=0 // loop_body
    %s12 = ssub.s32 %s7, 1
    %s13 = ssub.s32 %s7, 2
    %s14 = sadd.s32 %s7, 1
    %s15 = ssub.s32 %s7, %s14
    %p16 = scmp.eq.s32.totalorder %s15, 0
    %s18 = sadd.s32 %s17, 1
    %s19 = scalar_select %p16, %s17, %s18
    %p22 = pneg %p16
    %p23 = scmp.eq.s32.totalorder %s7, 1
    %p24 = por %p22, %p23
    %p25 = scmp.ne.s32.totalorder %s17, %s20
    %p26 = scmp.eq.s32.totalorder %s7, 0
    %p27 = por %p25, %p26
    %p28 = scmp.ne.s32.totalorder %s17, %s20
    %p29 = scmp.eq.s32.totalorder %s12, 1
    %p30 = por %p28, %p29
    %p31 = scmp.ne.s32.totalorder %s20, %s21
    %p32 = scmp.eq.s32.totalorder %s12, 0
    %p33 = por %p31, %p32
    %p34 = scmp.ne.s32.totalorder %s20, %s21
    %p35 = scmp.eq.s32.totalorder %s13, 1
    %p36 = por %p34, %p35
    %p38 = scmp.ne.s32.totalorder %s21, %s37
    %p39 = scmp.eq.s32.totalorder %s13, 0
    %p40 = por %p38, %p39
    %s41 = ssub.s32 %s7, %s14
    %p42 = scmp.eq.s32.totalorder %s41, 0
    %s44 = sadd.s32 %s43, 1
    %s45 = scalar_select %p42, %s43, %s44
    %p48 = pneg %p42
    %p49 = scmp.eq.s32.totalorder %s7, 1
    %p50 = por %p48, %p49
    %p51 = scmp.ne.s32.totalorder %s43, %s46
    %p52 = scmp.eq.s32.totalorder %s7, 0
    %p53 = por %p51, %p52
    %p54 = scmp.ne.s32.totalorder %s43, %s46
    %p55 = scmp.eq.s32.totalorder %s12, 1
    %p56 = por %p54, %p55
    %p57 = scmp.ne.s32.totalorder %s46, %s47
    %p58 = scmp.eq.s32.totalorder %s12, 0
    %p59 = por %p57, %p58
    %p60 = scmp.ne.s32.totalorder %s46, %s47
    %p61 = scmp.eq.s32.totalorder %s13, 1
    %p62 = por %p60, %p61
    %p64 = scmp.ne.s32.totalorder %s47, %s63
    %p65 = scmp.eq.s32.totalorder %s13, 0
    %p66 = por %p64, %p65
    %p67 = scmp.le.s32.totalorder 1, %s7
    %p68 = scmp.lt.s32.totalorder %s7, 3
    %p69 = pnand %p67, %p68
    %p70 = pneg %p69
    // Predicated region
    $region9: #{stcl_act_forward.39} parent=5 // pred_check
      _
    $region10: #{stcl_act_forward.39} parent=5 // pred_check_branch
      %72 = sbr.rel (%p69) target = $region12
    $region11: #{stcl_act_forward.39} parent=5 // pred_region
      %s73 = ssub.s32 %s7, 1
    $region12: #{stcl_act_forward.39} parent=5 // pred_fallthru
      _
    %p74 = scmp.lt.s32.totalorder %s7, 2
    // Predicated region
    $region13: #{stcl_act_forward.39} parent=5 // pred_check
      %p75 = pneg %p74
    $region14: #{stcl_act_forward.39} parent=5 // pred_check_branch
      %77 = sbr.rel (%p75) target = $region16
    $region15: #{stcl_act_forward.39} parent=5 // pred_region
      // Predicated region
      $region17: #{stcl_act_forward.39} parent=15 // pred_check
        %p78 = pneg %p27
      $region18: #{stcl_act_forward.39} parent=15 // pred_check_branch
        %80 = sbr.rel (%p78) target = $region20
      $region19: #{stcl_act_forward.39} parent=15 // pred_region
        %p81 = scmp.lt.s32.totalorder %s7, 1
        %s82 = scalar_select %p81, %s7, 1
        %s83 = smul.addr %s82, 3
        %s84 = smul.addr %s83, 8
        %s85 = scalar_lea.vmem %s0, %s84
      $region20: #{stcl_act_forward.39} parent=15 // pred_fallthru
        _
    $region16: #{stcl_act_forward.39} parent=5 // pred_fallthru
      _
    %p86 = scmp.le.s32.totalorder 1, %s7
    %p87 = scmp.lt.s32.totalorder %s7, 3
    %p88 = pnand %p86, %p87
    %p89 = pneg %p88
    // Predicated region
    $region21: #{stcl_act_forward.39} parent=5 // pred_check
      _
    $region22: #{stcl_act_forward.39} parent=5 // pred_check_branch
      %91 = sbr.rel (%p88) target = $region24
    $region23: #{stcl_act_forward.39} parent=5 // pred_region
      %s92 = ssub.s32 %s7, 1
      %p93 = scmp.lt.s32.totalorder %s12, 1
      %s94 = scalar_select %p93, %s12, 1
      %s95 = smul.addr %s94, 3
      %s96 = smul.addr %s95, 8
      %s97 = scalar_lea.vmem %s0, %s96
      %p98 = pneg %p33
      %p99 = pneg %p30
      %p100 = pneg %p59
      %p101 = pneg %p56
      %p102 = scmp.lt.s32.totalorder %s12, 1
      %s103 = scalar_select %p102, %s12, 1
      %s104 = smul.addr %s103, 2
      %s105 = smul.addr %s104, 8
      %s106 = scalar_lea.vmem %s1, %s105
      %p107 = scmp.lt.s32.totalorder %s12, 1
      %s108 = scalar_select %p107, %s12, 1
      %s109 = smul.addr %s108, 3
      %s110 = smul.addr %s109, 8
      %s111 = scalar_lea.vmem %s0, %s110
      %p112 = scmp.lt.s32.totalorder %s12, 1
      %s113 = scalar_select %p112, %s12, 1
      %s114 = smul.addr %s113, 2
      %s115 = smul.addr %s114, 8
      %s116 = scalar_lea.vmem %s1, %s115
      %v117 = vld [vmem:[%s111] sm:$0xff]
      %v118 = vld [vmem:[%s111 + $0x8] sm:$0xff]
      %v119 = vld [vmem:[%s111 + $0x10] sm:$0xf]
      %vm123 = vcmask 1046528
      %v124 = vrot.slane %v117, 1
      %v125 = vrot.slane %v118, 1
      %v126 = vsel %vm123, %v124, %v125
      %v127 = vrot.slane %v119, 1
      %v128 = vsel %vm123, %v125, %v127
      %v131 = vadd.f32 %v117, %v126
      %v132 = vadd.f32 %v118, %v128
      %vm133 = vcmask 1045504
      %v134 = vrot.slane %v117, 2
      %v135 = vrot.slane %v118, 2
      %v136 = vsel %vm133, %v134, %v135
      %v137 = vrot.slane %v119, 2
      %v138 = vsel %vm133, %v135, %v137
      %v141 = vadd.f32 %v131, %v136
      %v142 = vadd.f32 %v132, %v138
      %vm143 = vcmask 1044480
      %v144 = vrot.slane %v117, 3
      %v145 = vrot.slane %v118, 3
      %v146 = vsel %vm143, %v144, %v145
      %v147 = vrot.slane %v119, 3
      %v148 = vsel %vm143, %v145, %v147
      %v151 = vadd.f32 %v141, %v146
      %v152 = vadd.f32 %v142, %v148
      %vm153 = vcmask 1043456
      %v154 = vrot.slane %v117, 4
      %v155 = vrot.slane %v118, 4
      %v156 = vsel %vm153, %v154, %v155
      %v157 = vrot.slane %v119, 4
      %v158 = vsel %vm153, %v155, %v157
      %v161 = vadd.f32 %v151, %v156
      %v162 = vadd.f32 %v152, %v158
      %v163 = vmul.f32 %v161, 0.2
      %v164 = vmul.f32 %v162, 0.2
      %vm165 = vcmask 171008
      %166 = vst.msk [vmem:[%s116] sm:$0xff] %vm165, %v163
      %167 = vst.msk [vmem:[%s116 + $0x8] sm:$0xff] %vm165, %v164
      %p168 = scmp.lt.s32.totalorder %s12, 1
      %s169 = scalar_select %p168, %s12, 1
      %s170 = smul.addr %s169, 2
      %s171 = smul.addr %s170, 8
      %s172 = scalar_lea.vmem %s1, %s171
      // Predicated region
      $region25: #{stcl_act_forward.39} parent=23 // pred_check
        %p173 = pneg %p56
      $region26: #{stcl_act_forward.39} parent=23 // pred_check_branch
        %175 = sbr.rel (%p173) target = $region28
      $region27: #{stcl_act_forward.39} parent=23 // pred_region
        _
      $region28: #{stcl_act_forward.39} parent=23 // pred_fallthru
        _
    $region24: #{stcl_act_forward.39} parent=5 // pred_fallthru
      _
    %p176 = scmp.le.s32.totalorder 2, %s7
    // Predicated region
    $region29: #{stcl_act_forward.39} parent=5 // pred_check
      %p177 = pneg %p176
    $region30: #{stcl_act_forward.39} parent=5 // pred_check_branch
      %179 = sbr.rel (%p177) target = $region32
    $region31: #{stcl_act_forward.39} parent=5 // pred_region
      %s180 = ssub.s32 %s7, 2
      // Predicated region
      $region33: #{stcl_act_forward.39} parent=31 // pred_check
        %p181 = pneg %p62
      $region34: #{stcl_act_forward.39} parent=31 // pred_check_branch
        %183 = sbr.rel (%p181) target = $region36
      $region35: #{stcl_act_forward.39} parent=31 // pred_region
        %p184 = scmp.lt.s32.totalorder %s13, 1
        %s185 = scalar_select %p184, %s13, 1
        %s186 = smul.addr %s185, 2
        %s187 = smul.addr %s186, 8
        %s188 = scalar_lea.vmem %s1, %s187
      $region36: #{stcl_act_forward.39} parent=31 // pred_fallthru
        _
    $region32: #{stcl_act_forward.39} parent=5 // pred_fallthru
      _
  $region6: #{stcl_act_forward.39} parent=0 // loop_footer
    %s11 = sadd.s32 1, %s7
  $region7: #{stcl_act_forward.39} parent=0 // loop_footer_branch
    %6 = sbr.rel target = $region3
  $region8: #{stcl_act_forward.39} parent=0 // loop_exit
    _

</llo_original>
